<compile_context>
chip_gen: v6e
topology: v6e:2x2x1
jax: 0.10.0
libtpu: 0.0.40
codegen_flags: <defaults>
</compile_context>

<pallas_src>
import jax
import jax.numpy as jnp
from jax.experimental import pallas as pl
from jax.experimental.pallas import tpu as pltpu

# Model hyper-parameters implied by the module definition.
CIN, COUT, K, PAD = 20, 32, 3, 2
L_IN = 40
L_OUT = L_IN + 2 * PAD - K + 1          # 42
FLAT = COUT * L_OUT                     # 1344  (= fc1 in_features)
H1, OUT_DIM = 16, 1                     # output_dim = 1 (module default)


def _round_up(n, m):
    return ((n + m - 1) // m) * m


def pack_params(wc, bc, w1, b1, w2, b2, *, r=8):
    """Repack the PyTorch parameters once (hoisted out of the per-call path).

    r = outputs per im2col row.  r=8 -> (256, 256) conv weight (v6e/v7x MXU
    tile); r=4 -> (128, 128) (v5e MXU tile).
    """
    win = r + K - 1                                   # input positions per window
    ndim = r * COUT                                   # matmul N
    kdim = _round_up(win * CIN + 1, 128)              # matmul K (+1 bias lane)
    nj = -(-L_OUT // r)                               # number of time blocks
    l_out_pad = nj * r

    # Blocked conv weight (kdim, ndim):
    #   row p*CIN + ci, col t'*COUT + co  =  wc[co, ci, p - t']  if 0 <= p-t' < K
    #   row win*CIN (matching the im2col 1.0 lane)              =  bc[co]
    wc_k = jnp.transpose(wc, (2, 1, 0))                              # (K, CIN, COUT)
    blk = jnp.zeros((win, CIN, r, COUT), jnp.float32)
    for tp in range(r):
        blk = blk.at[tp:tp + K, :, tp, :].set(wc_k)
    wc_block = blk.reshape(win * CIN, ndim)
    bias_row = jnp.tile(bc.reshape(1, 1, COUT).astype(jnp.float32), (1, r, 1)).reshape(1, ndim)
    wc_block = jnp.concatenate(
        [wc_block, bias_row,
         jnp.zeros((kdim - win * CIN - 1, ndim), jnp.float32)], axis=0)
    wc_block = wc_block.astype(jnp.bfloat16)                         # (kdim, ndim)

    # fc1 weight per time block.  PyTorch flatten column index is co*L_OUT + t;
    # the kernel's conv_j column index is t'*COUT + co with t = r*j + t'.
    w1_t = jnp.transpose(w1.T.reshape(COUT, L_OUT, H1), (1, 0, 2))   # (L_OUT, COUT, H1)
    # Rows t >= L_OUT MUST stay exactly zero: they multiply the relu(bias)
    # values produced at padded output positions and must kill them.
    w1_t = jnp.pad(w1_t, ((0, l_out_pad - L_OUT), (0, 0), (0, 0)))
    w1_blocks = w1_t.reshape(nj, ndim, H1).astype(jnp.bfloat16)      # (nj, ndim, H1)

    b1_r = b1.reshape(1, H1).astype(jnp.float32)
    w2_col = w2.reshape(OUT_DIM, H1).T.astype(jnp.float32)           # (H1, 1)
    b2_r = b2.reshape(1, OUT_DIM).astype(jnp.float32)
    return dict(wc=wc_block, w1=w1_blocks, b1=b1_r, w2=w2_col, b2=b2_r, r=r)


def seq32_kernel(x_ref, wc_ref, w1_ref, b1_ref, w2_ref, b2_ref, o_ref):
    # x_ref : (TB, NJ*KDIM) bf16 — pre-packed blocked-im2col rows (1.0 bias lane included)
    # wc_ref: (KDIM, NDIM)  bf16 — blocked conv weight, conv bias folded in
    # w1_ref: (NJ, NDIM, H1) bf16 — fc1 weight split per time block (padded-t rows are zero)
    # b1_ref: (1, H1) f32 ; w2_ref: (H1, 1) f32 ; b2_ref: (1, 1) f32
    # o_ref : (1, 1, TB) f32 — lane-dense output (batch on lanes)
    tb = x_ref.shape[0]
    nj = w1_ref.shape[0]
    kdim = wc_ref.shape[0]
    h1 = b1_ref.shape[1]

    z1 = jnp.broadcast_to(b1_ref[...], (tb, h1))      # f32 accumulator, hoisted broadcast

    # Static unroll over the NJ (=6 for r=8) time blocks: conv + fc1 fused,
    # the conv output is consumed in place (no flatten relayout).
    for j in range(nj):
        x_j = x_ref[:, j * kdim:(j + 1) * kdim]                              # (TB, KDIM) lane block
        conv_j = jnp.dot(x_j, wc_ref[...], preferred_element_type=jnp.float32)
        h_j = jnp.maximum(conv_j, 0.0).astype(jnp.bfloat16)                  # ReLU
        z1 = z1 + jnp.dot(h_j, w1_ref[j], preferred_element_type=jnp.float32)

    z1 = jnp.maximum(z1, 0.0)                                                # ReLU
    # Dropout(p=0.5) is identity at inference time.

    # fc2 (16 -> 1) on the VPU/XLU: batch on the lane axis -> lane-dense store.
    z1t = z1.T                                                               # (H1, TB)
    out_row = jnp.sum(z1t * w2_ref[...], axis=0, keepdims=True) + b2_ref[...]  # (1, TB)
    o_ref[...] = out_row.reshape(1, 1, tb)


def seq32_forward(x_ncl, packed, *, block_b=512):
    """x_ncl: (B, 20, 40) float32 — same layout as the PyTorch module input.
    packed: output of pack_params()."""
    wc_block, w1_blocks = packed["wc"], packed["w1"]
    b1_r, w2_col, b2_r, r = packed["b1"], packed["w2"], packed["b2"], packed["r"]
    nj, ndim, _ = w1_blocks.shape
    kdim = wc_block.shape[0]
    win = r + K - 1
    l_out_pad = nj * r

    B = x_ncl.shape[0]
    tb = min(block_b, _round_up(B, 128))      # multiple of 128 -> unmasked lane-dense vst
    b_pad = _round_up(B, tb)
    nb = b_pad // tb                          # keep nb >= 2 on v7x for megacore use

    # One fused host pass over x: NCL->NLC, bf16 cast, conv-length pad and
    # blocked-im2col row packing (lane-dense, bias lane = 1.0, zero lane pad).
    x_nlc = jnp.transpose(x_ncl, (0, 2, 1)).astype(jnp.bfloat16)             # (B, 40, 20)
    t_total = l_out_pad + K - 1
    xp = jnp.pad(x_nlc, ((0, b_pad - B), (PAD, t_total - PAD - L_IN), (0, 0)))  # (Bp, 50, 20)
    wins = jnp.stack([xp[:, r * j:r * j + win, :] for j in range(nj)], axis=1)  # (Bp, nj, win, CIN)
    wins = wins.reshape(b_pad, nj, win * CIN)
    x_packed = jnp.concatenate(
        [wins,
         jnp.ones((b_pad, nj, 1), jnp.bfloat16),                              # bias lane
         jnp.zeros((b_pad, nj, kdim - win * CIN - 1), jnp.bfloat16)], axis=-1)
    x_packed = x_packed.reshape(b_pad, nj * kdim)                             # (Bp, nj*kdim)

    flops = 2 * b_pad * nj * ndim * (kdim + H1) + 2 * b_pad * H1
    bytes_accessed = (x_packed.size * 2 + wc_block.size * 2 + w1_blocks.size * 2
                      + (b1_r.size + w2_col.size + b2_r.size) * 4 + b_pad * 4)

    out = pl.pallas_call(
        seq32_kernel,
        out_shape=jax.ShapeDtypeStruct((nb, 1, tb), jnp.float32),
        grid=(nb,),
        in_specs=[
            pl.BlockSpec((tb, nj * kdim), lambda i: (i, 0)),        # x tile (pipelined)
            pl.BlockSpec((kdim, ndim), lambda i: (0, 0)),           # conv weight (resident)
            pl.BlockSpec((nj, ndim, H1), lambda i: (0, 0, 0)),      # fc1 weight (resident)
            pl.BlockSpec((1, H1), lambda i: (0, 0)),                # fc1 bias
            pl.BlockSpec((H1, OUT_DIM), lambda i: (0, 0)),          # fc2 weight
            pl.BlockSpec((1, OUT_DIM), lambda i: (0, 0)),           # fc2 bias
        ],
        out_specs=pl.BlockSpec((1, 1, tb), lambda i: (i, 0, 0)),
        compiler_params=pltpu.CompilerParams(
            dimension_semantics=("parallel",),
            vmem_limit_bytes=32 * 1024 * 1024),
        cost_estimate=pl.CostEstimate(flops=int(flops), transcendentals=0,
                                      bytes_accessed=int(bytes_accessed)),
    )(x_packed, wc_block, w1_blocks, b1_r, w2_col, b2_r)

    return out.reshape(b_pad)[:B].reshape(B, OUT_DIM)


def reference_forward(x, wc, bc, w1, b1, w2, b2):
    """Pure-JAX f32 reference mirroring the PyTorch forward (eval mode)."""
    xp = jnp.pad(x, ((0, 0), (0, 0), (PAD, PAD)))
    conv = bc[None, :, None]
    for k in range(K):
        conv = conv + jnp.einsum('ncl,oc->nol', xp[:, :, k:k + L_OUT], wc[:, :, k])
    h = jnp.maximum(conv, 0.0)
    flat = h.reshape(x.shape[0], -1)                 # PyTorch NCL flatten: co*L_OUT + t
    z1 = jnp.maximum(flat @ w1.T + b1, 0.0)
    return z1 @ w2.T + b2


if __name__ == "__main__":
    B = 2
    key = jax.random.PRNGKey(0)
    ks = jax.random.split(key, 7)

    x = jax.random.normal(ks[0], (B, CIN, L_IN), jnp.float32)
    wc = jax.random.normal(ks[1], (COUT, CIN, K), jnp.float32) * 0.1
    bc = jax.random.normal(ks[2], (COUT,), jnp.float32) * 0.1
    w1 = jax.random.normal(ks[3], (H1, FLAT), jnp.float32) * 0.02
    b1 = jax.random.normal(ks[4], (H1,), jnp.float32) * 0.02
    w2 = jax.random.normal(ks[5], (OUT_DIM, H1), jnp.float32) * 0.1
    b2 = jax.random.normal(ks[6], (OUT_DIM,), jnp.float32) * 0.1

    # Weight repacking is done once (not per forward).  Use r=4 on v5e.
    packed = pack_params(wc, bc, w1, b1, w2, b2, r=8)

    out = seq32_forward(x, packed)
    out = jax.block_until_ready(out)

    ref = reference_forward(x, wc, bc, w1, b1, w2, b2)
    assert out.shape == (B, OUT_DIM)
    # bf16 inputs/weights with f32 accumulation -> loosened tolerance vs f32 reference.
    assert jnp.allclose(out, ref, rtol=3e-2, atol=3e-2), (out, ref)

    print("KERNEL_OK")
</pallas_src>

<mosaic_0001>
module attributes {stable_mosaic.version = 11 : i64} {
  func.func @seq32_kernel(%arg0: i32, %arg1: memref<128x1536xbf16, #tpu.memory_space<vmem>>, %arg2: memref<256x256xbf16, #tpu.memory_space<vmem>>, %arg3: memref<6x256x16xbf16, #tpu.memory_space<vmem>>, %arg4: memref<1x16xf32, #tpu.memory_space<vmem>>, %arg5: memref<16x1xf32, #tpu.memory_space<vmem>>, %arg6: memref<1x1xf32, #tpu.memory_space<vmem>>, %arg7: memref<1x1x128xf32, #tpu.memory_space<vmem>>) attributes {dimension_semantics = [#tpu.dimension_semantics<parallel>], iteration_bounds = array<i64: 1>, scalar_prefetch = 0 : i64, scratch_operands = 0 : i64, tpu.core_type = #tpu.core_type<tc>, window_params = [{transform_indices = @transform_0, window_bounds = array<i64: 128, 1536>}, {pipeline_mode = #tpu.pipeline_mode<synchronous>, transform_indices = @transform_1, window_bounds = array<i64: 256, 256>}, {pipeline_mode = #tpu.pipeline_mode<synchronous>, transform_indices = @transform_2, window_bounds = array<i64: 6, 256, 16>}, {pipeline_mode = #tpu.pipeline_mode<synchronous>, transform_indices = @transform_3, window_bounds = array<i64: 1, 16>}, {pipeline_mode = #tpu.pipeline_mode<synchronous>, transform_indices = @transform_4, window_bounds = array<i64: 16, 1>}, {pipeline_mode = #tpu.pipeline_mode<synchronous>, transform_indices = @transform_5, window_bounds = array<i64: 1, 1>}, {transform_indices = @transform_6, window_bounds = array<i64: 1, 1, 128>}]} {
    %c0 = arith.constant 0 : index
    %c0_0 = arith.constant 0 : index
    %0 = vector.load %arg4[%c0, %c0_0] : memref<1x16xf32, #tpu.memory_space<vmem>>, vector<1x16xf32>
    %1 = vector.shape_cast %0 : vector<1x16xf32> to vector<1x16xf32>
    %2 = vector.broadcast %1 : vector<1x16xf32> to vector<128x16xf32>
    %c0_1 = arith.constant 0 : index
    %c0_2 = arith.constant 0 : index
    %3 = vector.load %arg1[%c0_1, %c0_2] : memref<128x1536xbf16, #tpu.memory_space<vmem>>, vector<128x256xbf16>
    %c0_3 = arith.constant 0 : index
    %c0_4 = arith.constant 0 : index
    %4 = vector.load %arg2[%c0_3, %c0_4] : memref<256x256xbf16, #tpu.memory_space<vmem>>, vector<256x256xbf16>
    %cst = arith.constant dense<0.000000e+00> : vector<128x256xf32>
    %5 = tpu.matmul %3, %4, %cst {dimension_numbers = #tpu.dot_dimension_numbers<[1], [0], [0], [1], [0, 0, 1, 1], [], []>} : vector<128x256xbf16>, vector<256x256xbf16>, vector<128x256xf32> -> vector<128x256xf32>
    %cst_5 = arith.constant 0.000000e+00 : f32
    %6 = vector.broadcast %cst_5 : f32 to vector<128x256xf32>
    %7 = arith.maximumf %5, %6 : vector<128x256xf32>
    %8 = arith.truncf %7 : vector<128x256xf32> to vector<128x256xbf16>
    %c0_6 = arith.constant 0 : index
    %c0_7 = arith.constant 0 : index
    %c0_8 = arith.constant 0 : index
    %9 = vector.load %arg3[%c0_6, %c0_7, %c0_8] : memref<6x256x16xbf16, #tpu.memory_space<vmem>>, vector<1x256x16xbf16>
    %10 = vector.shape_cast %9 : vector<1x256x16xbf16> to vector<256x16xbf16>
    %cst_9 = arith.constant dense<0.000000e+00> : vector<128x16xf32>
    %11 = tpu.matmul %8, %10, %cst_9 {dimension_numbers = #tpu.dot_dimension_numbers<[1], [0], [0], [1], [0, 0, 1, 1], [], []>} : vector<128x256xbf16>, vector<256x16xbf16>, vector<128x16xf32> -> vector<128x16xf32>
    %12 = arith.addf %2, %11 : vector<128x16xf32>
    %c0_10 = arith.constant 0 : index
    %c256 = arith.constant 256 : index
    %13 = vector.load %arg1[%c0_10, %c256] : memref<128x1536xbf16, #tpu.memory_space<vmem>>, vector<128x256xbf16>
    %c0_11 = arith.constant 0 : index
    %c0_12 = arith.constant 0 : index
    %14 = vector.load %arg2[%c0_11, %c0_12] : memref<256x256xbf16, #tpu.memory_space<vmem>>, vector<256x256xbf16>
    %cst_13 = arith.constant dense<0.000000e+00> : vector<128x256xf32>
    %15 = tpu.matmul %13, %14, %cst_13 {dimension_numbers = #tpu.dot_dimension_numbers<[1], [0], [0], [1], [0, 0, 1, 1], [], []>} : vector<128x256xbf16>, vector<256x256xbf16>, vector<128x256xf32> -> vector<128x256xf32>
    %cst_14 = arith.constant 0.000000e+00 : f32
    %16 = vector.broadcast %cst_14 : f32 to vector<128x256xf32>
    %17 = arith.maximumf %15, %16 : vector<128x256xf32>
    %18 = arith.truncf %17 : vector<128x256xf32> to vector<128x256xbf16>
    %c1 = arith.constant 1 : index
    %c0_15 = arith.constant 0 : index
    %c0_16 = arith.constant 0 : index
    %19 = vector.load %arg3[%c1, %c0_15, %c0_16] : memref<6x256x16xbf16, #tpu.memory_space<vmem>>, vector<1x256x16xbf16>
    %20 = vector.shape_cast %19 : vector<1x256x16xbf16> to vector<256x16xbf16>
    %cst_17 = arith.constant dense<0.000000e+00> : vector<128x16xf32>
    %21 = tpu.matmul %18, %20, %cst_17 {dimension_numbers = #tpu.dot_dimension_numbers<[1], [0], [0], [1], [0, 0, 1, 1], [], []>} : vector<128x256xbf16>, vector<256x16xbf16>, vector<128x16xf32> -> vector<128x16xf32>
    %22 = arith.addf %12, %21 : vector<128x16xf32>
    %c0_18 = arith.constant 0 : index
    %c512 = arith.constant 512 : index
    %23 = vector.load %arg1[%c0_18, %c512] : memref<128x1536xbf16, #tpu.memory_space<vmem>>, vector<128x256xbf16>
    %c0_19 = arith.constant 0 : index
    %c0_20 = arith.constant 0 : index
    %24 = vector.load %arg2[%c0_19, %c0_20] : memref<256x256xbf16, #tpu.memory_space<vmem>>, vector<256x256xbf16>
    %cst_21 = arith.constant dense<0.000000e+00> : vector<128x256xf32>
    %25 = tpu.matmul %23, %24, %cst_21 {dimension_numbers = #tpu.dot_dimension_numbers<[1], [0], [0], [1], [0, 0, 1, 1], [], []>} : vector<128x256xbf16>, vector<256x256xbf16>, vector<128x256xf32> -> vector<128x256xf32>
    %cst_22 = arith.constant 0.000000e+00 : f32
    %26 = vector.broadcast %cst_22 : f32 to vector<128x256xf32>
    %27 = arith.maximumf %25, %26 : vector<128x256xf32>
    %28 = arith.truncf %27 : vector<128x256xf32> to vector<128x256xbf16>
    %c2 = arith.constant 2 : index
    %c0_23 = arith.constant 0 : index
    %c0_24 = arith.constant 0 : index
    %29 = vector.load %arg3[%c2, %c0_23, %c0_24] : memref<6x256x16xbf16, #tpu.memory_space<vmem>>, vector<1x256x16xbf16>
    %30 = vector.shape_cast %29 : vector<1x256x16xbf16> to vector<256x16xbf16>
    %cst_25 = arith.constant dense<0.000000e+00> : vector<128x16xf32>
    %31 = tpu.matmul %28, %30, %cst_25 {dimension_numbers = #tpu.dot_dimension_numbers<[1], [0], [0], [1], [0, 0, 1, 1], [], []>} : vector<128x256xbf16>, vector<256x16xbf16>, vector<128x16xf32> -> vector<128x16xf32>
    %32 = arith.addf %22, %31 : vector<128x16xf32>
    %c0_26 = arith.constant 0 : index
    %c768 = arith.constant 768 : index
    %33 = vector.load %arg1[%c0_26, %c768] : memref<128x1536xbf16, #tpu.memory_space<vmem>>, vector<128x256xbf16>
    %c0_27 = arith.constant 0 : index
    %c0_28 = arith.constant 0 : index
    %34 = vector.load %arg2[%c0_27, %c0_28] : memref<256x256xbf16, #tpu.memory_space<vmem>>, vector<256x256xbf16>
    %cst_29 = arith.constant dense<0.000000e+00> : vector<128x256xf32>
    %35 = tpu.matmul %33, %34, %cst_29 {dimension_numbers = #tpu.dot_dimension_numbers<[1], [0], [0], [1], [0, 0, 1, 1], [], []>} : vector<128x256xbf16>, vector<256x256xbf16>, vector<128x256xf32> -> vector<128x256xf32>
    %cst_30 = arith.constant 0.000000e+00 : f32
    %36 = vector.broadcast %cst_30 : f32 to vector<128x256xf32>
    %37 = arith.maximumf %35, %36 : vector<128x256xf32>
    %38 = arith.truncf %37 : vector<128x256xf32> to vector<128x256xbf16>
    %c3 = arith.constant 3 : index
    %c0_31 = arith.constant 0 : index
    %c0_32 = arith.constant 0 : index
    %39 = vector.load %arg3[%c3, %c0_31, %c0_32] : memref<6x256x16xbf16, #tpu.memory_space<vmem>>, vector<1x256x16xbf16>
    %40 = vector.shape_cast %39 : vector<1x256x16xbf16> to vector<256x16xbf16>
    %cst_33 = arith.constant dense<0.000000e+00> : vector<128x16xf32>
    %41 = tpu.matmul %38, %40, %cst_33 {dimension_numbers = #tpu.dot_dimension_numbers<[1], [0], [0], [1], [0, 0, 1, 1], [], []>} : vector<128x256xbf16>, vector<256x16xbf16>, vector<128x16xf32> -> vector<128x16xf32>
    %42 = arith.addf %32, %41 : vector<128x16xf32>
    %c0_34 = arith.constant 0 : index
    %c1024 = arith.constant 1024 : index
    %43 = vector.load %arg1[%c0_34, %c1024] : memref<128x1536xbf16, #tpu.memory_space<vmem>>, vector<128x256xbf16>
    %c0_35 = arith.constant 0 : index
    %c0_36 = arith.constant 0 : index
    %44 = vector.load %arg2[%c0_35, %c0_36] : memref<256x256xbf16, #tpu.memory_space<vmem>>, vector<256x256xbf16>
    %cst_37 = arith.constant dense<0.000000e+00> : vector<128x256xf32>
    %45 = tpu.matmul %43, %44, %cst_37 {dimension_numbers = #tpu.dot_dimension_numbers<[1], [0], [0], [1], [0, 0, 1, 1], [], []>} : vector<128x256xbf16>, vector<256x256xbf16>, vector<128x256xf32> -> vector<128x256xf32>
    %cst_38 = arith.constant 0.000000e+00 : f32
    %46 = vector.broadcast %cst_38 : f32 to vector<128x256xf32>
    %47 = arith.maximumf %45, %46 : vector<128x256xf32>
    %48 = arith.truncf %47 : vector<128x256xf32> to vector<128x256xbf16>
    %c4 = arith.constant 4 : index
    %c0_39 = arith.constant 0 : index
    %c0_40 = arith.constant 0 : index
    %49 = vector.load %arg3[%c4, %c0_39, %c0_40] : memref<6x256x16xbf16, #tpu.memory_space<vmem>>, vector<1x256x16xbf16>
    %50 = vector.shape_cast %49 : vector<1x256x16xbf16> to vector<256x16xbf16>
    %cst_41 = arith.constant dense<0.000000e+00> : vector<128x16xf32>
    %51 = tpu.matmul %48, %50, %cst_41 {dimension_numbers = #tpu.dot_dimension_numbers<[1], [0], [0], [1], [0, 0, 1, 1], [], []>} : vector<128x256xbf16>, vector<256x16xbf16>, vector<128x16xf32> -> vector<128x16xf32>
    %52 = arith.addf %42, %51 : vector<128x16xf32>
    %c0_42 = arith.constant 0 : index
    %c1280 = arith.constant 1280 : index
    %53 = vector.load %arg1[%c0_42, %c1280] : memref<128x1536xbf16, #tpu.memory_space<vmem>>, vector<128x256xbf16>
    %c0_43 = arith.constant 0 : index
    %c0_44 = arith.constant 0 : index
    %54 = vector.load %arg2[%c0_43, %c0_44] : memref<256x256xbf16, #tpu.memory_space<vmem>>, vector<256x256xbf16>
    %cst_45 = arith.constant dense<0.000000e+00> : vector<128x256xf32>
    %55 = tpu.matmul %53, %54, %cst_45 {dimension_numbers = #tpu.dot_dimension_numbers<[1], [0], [0], [1], [0, 0, 1, 1], [], []>} : vector<128x256xbf16>, vector<256x256xbf16>, vector<128x256xf32> -> vector<128x256xf32>
    %cst_46 = arith.constant 0.000000e+00 : f32
    %56 = vector.broadcast %cst_46 : f32 to vector<128x256xf32>
    %57 = arith.maximumf %55, %56 : vector<128x256xf32>
    %58 = arith.truncf %57 : vector<128x256xf32> to vector<128x256xbf16>
    %c5 = arith.constant 5 : index
    %c0_47 = arith.constant 0 : index
    %c0_48 = arith.constant 0 : index
    %59 = vector.load %arg3[%c5, %c0_47, %c0_48] : memref<6x256x16xbf16, #tpu.memory_space<vmem>>, vector<1x256x16xbf16>
    %60 = vector.shape_cast %59 : vector<1x256x16xbf16> to vector<256x16xbf16>
    %cst_49 = arith.constant dense<0.000000e+00> : vector<128x16xf32>
    %61 = tpu.matmul %58, %60, %cst_49 {dimension_numbers = #tpu.dot_dimension_numbers<[1], [0], [0], [1], [0, 0, 1, 1], [], []>} : vector<128x256xbf16>, vector<256x16xbf16>, vector<128x16xf32> -> vector<128x16xf32>
    %62 = arith.addf %52, %61 : vector<128x16xf32>
    %cst_50 = arith.constant 0.000000e+00 : f32
    %63 = vector.broadcast %cst_50 : f32 to vector<128x16xf32>
    %64 = arith.maximumf %62, %63 : vector<128x16xf32>
    %65 = tpu.transpose %64, [1, 0] : vector<128x16xf32> -> vector<16x128xf32>
    %c0_51 = arith.constant 0 : index
    %c0_52 = arith.constant 0 : index
    %66 = vector.load %arg5[%c0_51, %c0_52] : memref<16x1xf32, #tpu.memory_space<vmem>>, vector<16x1xf32>
    %67 = vector.broadcast %66 : vector<16x1xf32> to vector<16x128xf32>
    %68 = arith.mulf %65, %67 : vector<16x128xf32>
    %cst_53 = arith.constant dense<0.000000e+00> : vector<128xf32>
    %69 = vector.multi_reduction <add>, %68, %cst_53 [0] : vector<16x128xf32> to vector<128xf32>
    %70 = vector.shape_cast %69 : vector<128xf32> to vector<1x128xf32>
    %c0_54 = arith.constant 0 : index
    %c0_55 = arith.constant 0 : index
    %71 = vector.load %arg6[%c0_54, %c0_55] : memref<1x1xf32, #tpu.memory_space<vmem>>, vector<1x1xf32>
    %72 = vector.broadcast %71 : vector<1x1xf32> to vector<1x128xf32>
    %73 = arith.addf %70, %72 : vector<1x128xf32>
    %74 = vector.shape_cast %73 : vector<1x128xf32> to vector<1x1x128xf32>
    %c0_56 = arith.constant 0 : index
    %c0_57 = arith.constant 0 : index
    %c0_58 = arith.constant 0 : index
    %75 = vector.load %arg7[%c0_56, %c0_57, %c0_58] : memref<1x1x128xf32, #tpu.memory_space<vmem>>, vector<1x1x128xf32>
    tpu.vector_store %arg7[%c0_56, %c0_57, %c0_58], %74 {strides = array<i32>} : memref<1x1x128xf32, #tpu.memory_space<vmem>>, vector<1x1x128xf32>,
    return
  }
  func.func @transform_0(%arg0: i32) -> (i32, i32) {
    %c0_i32 = arith.constant 0 : i32
    %c0_i32_0 = arith.constant 0 : i32
    return %arg0, %c0_i32 : i32, i32
  }
  func.func @transform_1(%arg0: i32) -> (i32, i32) {
    %c0_i32 = arith.constant 0 : i32
    %c0_i32_0 = arith.constant 0 : i32
    %c0_i32_1 = arith.constant 0 : i32
    return %c0_i32, %c0_i32_0 : i32, i32
  }
  func.func @transform_2(%arg0: i32) -> (i32, i32, i32) {
    %c0_i32 = arith.constant 0 : i32
    %c0_i32_0 = arith.constant 0 : i32
    %c0_i32_1 = arith.constant 0 : i32
    %c0_i32_2 = arith.constant 0 : i32
    return %c0_i32, %c0_i32_0, %c0_i32_1 : i32, i32, i32
  }
  func.func @transform_3(%arg0: i32) -> (i32, i32) {
    %c0_i32 = arith.constant 0 : i32
    %c0_i32_0 = arith.constant 0 : i32
    %c0_i32_1 = arith.constant 0 : i32
    return %c0_i32, %c0_i32_0 : i32, i32
  }
  func.func @transform_4(%arg0: i32) -> (i32, i32) {
    %c0_i32 = arith.constant 0 : i32
    %c0_i32_0 = arith.constant 0 : i32
    %c0_i32_1 = arith.constant 0 : i32
    return %c0_i32, %c0_i32_0 : i32, i32
  }
  func.func @transform_5(%arg0: i32) -> (i32, i32) {
    %c0_i32 = arith.constant 0 : i32
    %c0_i32_0 = arith.constant 0 : i32
    %c0_i32_1 = arith.constant 0 : i32
    return %c0_i32, %c0_i32_0 : i32, i32
  }
  func.func @transform_6(%arg0: i32) -> (i32, i32, i32) {
    %c0_i32 = arith.constant 0 : i32
    %c0_i32_0 = arith.constant 0 : i32
    %c0_i32_1 = arith.constant 0 : i32
    return %arg0, %c0_i32, %c0_i32_0 : i32, i32, i32
  }
}

</mosaic_0001>

<llo_original>
// kernel: tpu_custom_call.1
$region0: #{tpu_custom_call.1}
  #allocation0 [shape = 'u32[]', space=smem, size = 0x4, offset = 0x4, fixed_abs, tag = 'smem constant byte address 0x4 - core index']
  #allocation1 [shape = 'u32[144,128]{1,0:T(1,128)}', space=vmem, size = 0x12000, scoped, tag = 'internal scratch']
  #allocation2 [shape = 'f32[1,1]{1,0:T(1,128)S(1)}', space=vmem, size = 0x200, scoped, tag = 'scoped memory for tpu_custom_call.1']
  %s0 = inlined_call_operand.vmem [shape: bf16[128,1536], index: 0, kind: input, shape index: {}]
  %s1 = inlined_call_operand.hbm [shape: bf16[256,256], index: 1, kind: input, shape index: {}]
  %s2 = inlined_call_operand.vmem [shape: bf16[6,256,16], index: 2, kind: input, shape index: {}]
  %s3 = inlined_call_operand.vmem [shape: f32[1,16], index: 3, kind: input, shape index: {}]
  %s4 = inlined_call_operand.vmem [shape: f32[16,1], index: 4, kind: input, shape index: {}]
  %s5 = inlined_call_operand.<no memory space> [shape: f32[1,1], index: 5, kind: input, shape index: {}]
  %s6 = inlined_call_operand.hbm [shape: f32[1,1,128], index: 6, kind: output, shape index: {}]
  %s7 = sld [smem:[#allocation0]]
  $region38: #{tpu_custom_call.1} parent=0
    _
  %s9 = ssub.s32 1, %s7
  %s10 = scalar_select 0, %s9, %s7
  %v11 = vstv %s5
  %12 = vst [vmem:[#allocation2] sm:$0x1] %v11
  $region1: #{tpu_custom_call.1} parent=0
    #allocation3 [shape = 'u8[131072]{0}', space=vmem, size = 0x20000, scoped, tag = 'input window, operand 1, single buffered']
    #allocation4 [shape = 's32[1]{0}', space=sflag, size = 0x4, scoped, tag = 'scoped memory for tpu_custom_call.1']
    #allocation5 [shape = 's32[1]{0}', space=sflag, size = 0x4, scoped, tag = 'scoped memory for tpu_custom_call.1']
    #allocation6 [shape = 'u8[512]{0}', space=vmem, size = 0x400, scoped, tag = 'output window, operand 0, single buffered']
    %13 = vsyncpa [#allocation4], 0
    %14 = vsyncpa [#allocation5], 0
    // Predicated region
    $region2: #{tpu_custom_call.1} parent=1 // pred_check
      _
    $region3: #{tpu_custom_call.1} parent=1 // pred_check_branch
      %16 = sbr.rel (0) target = $region5
    $region4: #{tpu_custom_call.1} parent=1 // pred_region
      _
    $region5: #{tpu_custom_call.1} parent=1 // pred_fallthru
      _
    // Predicated region
    $region6: #{tpu_custom_call.1} parent=1 // pred_check
      _
    $region7: #{tpu_custom_call.1} parent=1 // pred_check_branch
      %18 = sbr.rel (0) target = $region9
    $region8: #{tpu_custom_call.1} parent=1 // pred_region
      %s20 = ssub.s32 4096, 4096
      %21 = vsyncadd [#allocation4], %s20
      %s22 = sshll.u32 [#allocation3], 4
      %s23 = int_to_ptr.vmem [resolvable:$true] %s22
      %28 = dma.hbm_to_vmem [thread:$0]  %s1, 4096, %s23, [#allocation4], 128, 128, 8
    $region9: #{tpu_custom_call.1} parent=1 // pred_fallthru
      _
    // Predicated region
    $region10: #{tpu_custom_call.1} parent=1 // pred_check
      _
    $region11: #{tpu_custom_call.1} parent=1 // pred_check_branch
      %30 = sbr.rel (0) target = $region13
    $region12: #{tpu_custom_call.1} parent=1 // pred_region
      _
    $region13: #{tpu_custom_call.1} parent=1 // pred_fallthru
      _
    // Predicated region
    $region14: #{tpu_custom_call.1} parent=1 // pred_check
      _
    $region15: #{tpu_custom_call.1} parent=1 // pred_check_branch
      %32 = sbr.rel (0) target = $region17
    $region16: #{tpu_custom_call.1} parent=1 // pred_region
      _
    $region17: #{tpu_custom_call.1} parent=1 // pred_fallthru
      _
    // Predicated region
    $region18: #{tpu_custom_call.1} parent=1 // pred_check
      _
    $region19: #{tpu_custom_call.1} parent=1 // pred_check_branch
      %34 = sbr.rel (0) target = $region21
    $region20: #{tpu_custom_call.1} parent=1 // pred_region
      _
    $region21: #{tpu_custom_call.1} parent=1 // pred_fallthru
      _
    // Predicated region
    $region22: #{tpu_custom_call.1} parent=1 // pred_check
      _
    $region23: #{tpu_custom_call.1} parent=1 // pred_check_branch
      %36 = sbr.rel (0) target = $region25
    $region24: #{tpu_custom_call.1} parent=1 // pred_region
      _
    $region25: #{tpu_custom_call.1} parent=1 // pred_fallthru
      _
    // Predicated region
    $region26: #{tpu_custom_call.1} parent=1 // pred_check
      _
    $region27: #{tpu_custom_call.1} parent=1 // pred_check_branch
      %38 = sbr.rel (0) target = $region29
    $region28: #{tpu_custom_call.1} parent=1 // pred_region
      %39 = dma.done [#allocation4], 4096
    $region29: #{tpu_custom_call.1} parent=1 // pred_fallthru
      _
    %v41 = vld [vmem:[%s3] sm:$0x1]
    %v43 = vlaneseq
    %v44 = vshrl.u32 %v43, 7
    %v45 = vsub.s32 0, %v44
    %v46 = vrot.slane %v41, %v45
    %v48 = vld [vmem:[%s0] sm:$0xff]
    %v49 = vld [vmem:[%s0 + $0x30] sm:$0xff]
    %v50 = vld [vmem:[%s0 + $0x60] sm:$0xff]
    %v51 = vld [vmem:[%s0 + $0x90] sm:$0xff]
    %v52 = vld [vmem:[%s0 + $0xc0] sm:$0xff]
    %v53 = vld [vmem:[%s0 + $0xf0] sm:$0xff]
    %v54 = vld [vmem:[%s0 + $0x120] sm:$0xff]
    %v55 = vld [vmem:[%s0 + $0x150] sm:$0xff]
    %v56 = vld [vmem:[%s0 + $0x180] sm:$0xff]
    %v57 = vld [vmem:[%s0 + $0x1b0] sm:$0xff]
    %v58 = vld [vmem:[%s0 + $0x1e0] sm:$0xff]
    %v59 = vld [vmem:[%s0 + $0x210] sm:$0xff]
    %v60 = vld [vmem:[%s0 + $0x240] sm:$0xff]
    %v61 = vld [vmem:[%s0 + $0x270] sm:$0xff]
    %v62 = vld [vmem:[%s0 + $0x2a0] sm:$0xff]
    %v63 = vld [vmem:[%s0 + $0x2d0] sm:$0xff]
    %v64 = vld [vmem:[#allocation3] sm:$0xff]
    %v65 = vld [vmem:[#allocation3 + $0x8] sm:$0xff]
    %v66 = vld [vmem:[#allocation3 + $0x10] sm:$0xff]
    %v67 = vld [vmem:[#allocation3 + $0x18] sm:$0xff]
    %v68 = vld [vmem:[#allocation3 + $0x20] sm:$0xff]
    %v69 = vld [vmem:[#allocation3 + $0x28] sm:$0xff]
    %v70 = vld [vmem:[#allocation3 + $0x30] sm:$0xff]
    %v71 = vld [vmem:[#allocation3 + $0x38] sm:$0xff]
    %v72 = vld [vmem:[#allocation3 + $0x40] sm:$0xff]
    %v73 = vld [vmem:[#allocation3 + $0x48] sm:$0xff]
    %v74 = vld [vmem:[#allocation3 + $0x50] sm:$0xff]
    %v75 = vld [vmem:[#allocation3 + $0x58] sm:$0xff]
    %v76 = vld [vmem:[#allocation3 + $0x60] sm:$0xff]
    %v77 = vld [vmem:[#allocation3 + $0x68] sm:$0xff]
    %v78 = vld [vmem:[#allocation3 + $0x70] sm:$0xff]
    %v79 = vld [vmem:[#allocation3 + $0x78] sm:$0xff]
    %v80 = vld [vmem:[#allocation3 + $0x80] sm:$0xff]
    %v81 = vld [vmem:[#allocation3 + $0x88] sm:$0xff]
    %v82 = vld [vmem:[#allocation3 + $0x90] sm:$0xff]
    %v83 = vld [vmem:[#allocation3 + $0x98] sm:$0xff]
    %v84 = vld [vmem:[#allocation3 + $0xa0] sm:$0xff]
    %v85 = vld [vmem:[#allocation3 + $0xa8] sm:$0xff]
    %v86 = vld [vmem:[#allocation3 + $0xb0] sm:$0xff]
    %v87 = vld [vmem:[#allocation3 + $0xb8] sm:$0xff]
    %v88 = vld [vmem:[#allocation3 + $0xc0] sm:$0xff]
    %v89 = vld [vmem:[#allocation3 + $0xc8] sm:$0xff]
    %v90 = vld [vmem:[#allocation3 + $0xd0] sm:$0xff]
    %v91 = vld [vmem:[#allocation3 + $0xd8] sm:$0xff]
    %v92 = vld [vmem:[#allocation3 + $0xe0] sm:$0xff]
    %v93 = vld [vmem:[#allocation3 + $0xe8] sm:$0xff]
    %v94 = vld [vmem:[#allocation3 + $0xf0] sm:$0xff]
    %v95 = vld [vmem:[#allocation3 + $0xf8] sm:$0xff]
    %v112 = vunpack.c.l.b16 %v48
    %v113 = vunpack.c.h.b16 %v48
    %v114 = vunpack.c.l.b16 %v49
    %v115 = vunpack.c.h.b16 %v49
    %v116 = vunpack.c.l.b16 %v50
    %v117 = vunpack.c.h.b16 %v50
    %v118 = vunpack.c.l.b16 %v51
    %v119 = vunpack.c.h.b16 %v51
    %v120 = vunpack.c.l.b16 %v52
    %v121 = vunpack.c.h.b16 %v52
    %v122 = vunpack.c.l.b16 %v53
    %v123 = vunpack.c.h.b16 %v53
    %v124 = vunpack.c.l.b16 %v54
    %v125 = vunpack.c.h.b16 %v54
    %v126 = vunpack.c.l.b16 %v55
    %v127 = vunpack.c.h.b16 %v55
    %v128 = vunpack.c.l.b16 %v56
    %v129 = vunpack.c.h.b16 %v56
    %v130 = vunpack.c.l.b16 %v57
    %v131 = vunpack.c.h.b16 %v57
    %v132 = vunpack.c.l.b16 %v58
    %v133 = vunpack.c.h.b16 %v58
    %v134 = vunpack.c.l.b16 %v59
    %v135 = vunpack.c.h.b16 %v59
    %v136 = vunpack.c.l.b16 %v60
    %v137 = vunpack.c.h.b16 %v60
    %v138 = vunpack.c.l.b16 %v61
    %v139 = vunpack.c.h.b16 %v61
    %v140 = vunpack.c.l.b16 %v62
    %v141 = vunpack.c.h.b16 %v62
    %v142 = vunpack.c.l.b16 %v63
    %v143 = vunpack.c.h.b16 %v63
    %v144 = vpack.c.b16 %v114, %v112
    %v145 = vpack.c.b16 %v115, %v113
    %v146 = vpack.c.b16 %v118, %v116
    %v147 = vpack.c.b16 %v119, %v117
    %v148 = vpack.c.b16 %v122, %v120
    %v149 = vpack.c.b16 %v123, %v121
    %v150 = vpack.c.b16 %v126, %v124
    %v151 = vpack.c.b16 %v127, %v125
    %v152 = vpack.c.b16 %v130, %v128
    %v153 = vpack.c.b16 %v131, %v129
    %v154 = vpack.c.b16 %v134, %v132
    %v155 = vpack.c.b16 %v135, %v133
    %v156 = vpack.c.b16 %v138, %v136
    %v157 = vpack.c.b16 %v139, %v137
    %v158 = vpack.c.b16 %v142, %v140
    %v159 = vpack.c.b16 %v143, %v141
    %v208 = vunpack.c.l.b16 %v64
    %v209 = vunpack.c.h.b16 %v64
    %v210 = vunpack.c.l.b16 %v65
    %v211 = vunpack.c.h.b16 %v65
    %v212 = vunpack.c.l.b16 %v66
    %v213 = vunpack.c.h.b16 %v66
    %v214 = vunpack.c.l.b16 %v67
    %v215 = vunpack.c.h.b16 %v67
    %v216 = vunpack.c.l.b16 %v68
    %v217 = vunpack.c.h.b16 %v68
    %v218 = vunpack.c.l.b16 %v69
    %v219 = vunpack.c.h.b16 %v69
    %v220 = vunpack.c.l.b16 %v70
    %v221 = vunpack.c.h.b16 %v70
    %v222 = vunpack.c.l.b16 %v71
    %v223 = vunpack.c.h.b16 %v71
    %v224 = vunpack.c.l.b16 %v72
    %v225 = vunpack.c.h.b16 %v72
    %v226 = vunpack.c.l.b16 %v73
    %v227 = vunpack.c.h.b16 %v73
    %v228 = vunpack.c.l.b16 %v74
    %v229 = vunpack.c.h.b16 %v74
    %v230 = vunpack.c.l.b16 %v75
    %v231 = vunpack.c.h.b16 %v75
    %v232 = vunpack.c.l.b16 %v76
    %v233 = vunpack.c.h.b16 %v76
    %v234 = vunpack.c.l.b16 %v77
    %v235 = vunpack.c.h.b16 %v77
    %v236 = vunpack.c.l.b16 %v78
    %v237 = vunpack.c.h.b16 %v78
    %v238 = vunpack.c.l.b16 %v79
    %v239 = vunpack.c.h.b16 %v79
    %v240 = vunpack.c.l.b16 %v80
    %v241 = vunpack.c.h.b16 %v80
    %v242 = vunpack.c.l.b16 %v81
    %v243 = vunpack.c.h.b16 %v81
    %v244 = vunpack.c.l.b16 %v82
    %v245 = vunpack.c.h.b16 %v82
    %v246 = vunpack.c.l.b16 %v83
    %v247 = vunpack.c.h.b16 %v83
    %v248 = vunpack.c.l.b16 %v84
    %v249 = vunpack.c.h.b16 %v84
    %v250 = vunpack.c.l.b16 %v85
    %v251 = vunpack.c.h.b16 %v85
    %v252 = vunpack.c.l.b16 %v86
    %v253 = vunpack.c.h.b16 %v86
    %v254 = vunpack.c.l.b16 %v87
    %v255 = vunpack.c.h.b16 %v87
    %v256 = vunpack.c.l.b16 %v88
    %v257 = vunpack.c.h.b16 %v88
    %v258 = vunpack.c.l.b16 %v89
    %v259 = vunpack.c.h.b16 %v89
    %v260 = vunpack.c.l.b16 %v90
    %v261 = vunpack.c.h.b16 %v90
    %v262 = vunpack.c.l.b16 %v91
    %v263 = vunpack.c.h.b16 %v91
    %v264 = vunpack.c.l.b16 %v92
    %v265 = vunpack.c.h.b16 %v92
    %v266 = vunpack.c.l.b16 %v93
    %v267 = vunpack.c.h.b16 %v93
    %v268 = vunpack.c.l.b16 %v94
    %v269 = vunpack.c.h.b16 %v94
    %v270 = vunpack.c.l.b16 %v95
    %v271 = vunpack.c.h.b16 %v95
    %v272 = vpack.c.b16 %v210, %v208
    %v273 = vpack.c.b16 %v211, %v209
    %v274 = vpack.c.b16 %v214, %v212
    %v275 = vpack.c.b16 %v215, %v213
    %v276 = vpack.c.b16 %v218, %v216
    %v277 = vpack.c.b16 %v219, %v217
    %v278 = vpack.c.b16 %v222, %v220
    %v279 = vpack.c.b16 %v223, %v221
    %v280 = vpack.c.b16 %v226, %v224
    %v281 = vpack.c.b16 %v227, %v225
    %v282 = vpack.c.b16 %v230, %v228
    %v283 = vpack.c.b16 %v231, %v229
    %v284 = vpack.c.b16 %v234, %v232
    %v285 = vpack.c.b16 %v235, %v233
    %v286 = vpack.c.b16 %v238, %v236
    %v287 = vpack.c.b16 %v239, %v237
    %v288 = vpack.c.b16 %v242, %v240
    %v289 = vpack.c.b16 %v243, %v241
    %v290 = vpack.c.b16 %v246, %v244
    %v291 = vpack.c.b16 %v247, %v245
    %v292 = vpack.c.b16 %v250, %v248
    %v293 = vpack.c.b16 %v251, %v249
    %v294 = vpack.c.b16 %v254, %v252
    %v295 = vpack.c.b16 %v255, %v253
    %v296 = vpack.c.b16 %v258, %v256
    %v297 = vpack.c.b16 %v259, %v257
    %v298 = vpack.c.b16 %v262, %v260
    %v299 = vpack.c.b16 %v263, %v261
    %v300 = vpack.c.b16 %v266, %v264
    %v301 = vpack.c.b16 %v267, %v265
    %v302 = vpack.c.b16 %v270, %v268
    %v303 = vpack.c.b16 %v271, %v269
    %336 = vmatprep.subr.bf16.mxu0 %v287
    %337 = vmatpush1.bf16.msra.mxu0 %v286
    %338 = vmatprep.subr.bf16.mxu0 %v285
    %339 = vmatpush1.bf16.msra.mxu0 %v284
    %340 = vmatprep.subr.bf16.mxu0 %v283
    %341 = vmatpush1.bf16.msra.mxu0 %v282
    %342 = vmatprep.subr.bf16.mxu0 %v281
    %343 = vmatpush1.bf16.msra.mxu0 %v280
    %344 = vmatprep.subr.bf16.mxu0 %v279
    %345 = vmatpush1.bf16.msra.mxu0 %v278
    %346 = vmatprep.subr.bf16.mxu0 %v277
    %347 = vmatpush1.bf16.msra.mxu0 %v276
    %348 = vmatprep.subr.bf16.mxu0 %v275
    %349 = vmatpush1.bf16.msra.mxu0 %v274
    %350 = vmatprep.subr.bf16.mxu0 %v273
    %351 = vmatpush1.bf16.msra.mxu0 %v272
    %352 = vmatprep.subr.bf16.mxu0 %v303
    %353 = vmatpush2.bf16.msra.mxu0 %v302
    %354 = vmatprep.subr.bf16.mxu0 %v301
    %355 = vmatpush2.bf16.msra.mxu0 %v300
    %356 = vmatprep.subr.bf16.mxu0 %v299
    %357 = vmatpush2.bf16.msra.mxu0 %v298
    %358 = vmatprep.subr.bf16.mxu0 %v297
    %359 = vmatpush2.bf16.msra.mxu0 %v296
    %360 = vmatprep.subr.bf16.mxu0 %v295
    %361 = vmatpush2.bf16.msra.mxu0 %v294
    %362 = vmatprep.subr.bf16.mxu0 %v293
    %363 = vmatpush2.bf16.msra.mxu0 %v292
    %364 = vmatprep.subr.bf16.mxu0 %v291
    %365 = vmatpush2.bf16.msra.mxu0 %v290
    %366 = vmatprep.subr.bf16.mxu0 %v289
    %367 = vmatpush2.bf16.msra.mxu0 %v288
    %368 = vmatprep.mubr.bf16.mxu0 %v145
    %369 = vmatmul.mubr.bf16.gmra.mxu0 %v144
    %v370 = vpop.f32.mrf.mxu0
    %v371 = vadd.f32 0.0, %v370
    %v372 = vpop.f32.mrf.mxu0
    %v373 = vadd.f32 0.0, %v372
    %v374 = vpop.f32.mrf.mxu0
    %v375 = vadd.f32 0.0, %v374
    %v376 = vpop.f32.mrf.mxu0
    %v377 = vadd.f32 0.0, %v376
    %378 = vmatprep.mubr.bf16.mxu0 %v147
    %379 = vmatmul.mubr.bf16.gmra.mxu0 %v146
    %v380 = vpop.f32.mrf.mxu0
    %v381 = vadd.f32 0.0, %v380
    %v382 = vpop.f32.mrf.mxu0
    %v383 = vadd.f32 0.0, %v382
    %v384 = vpop.f32.mrf.mxu0
    %v385 = vadd.f32 0.0, %v384
    %v386 = vpop.f32.mrf.mxu0
    %v387 = vadd.f32 0.0, %v386
    %388 = vmatprep.mubr.bf16.mxu0 %v149
    %389 = vmatmul.mubr.bf16.gmra.mxu0 %v148
    %v390 = vpop.f32.mrf.mxu0
    %v391 = vadd.f32 0.0, %v390
    %v392 = vpop.f32.mrf.mxu0
    %v393 = vadd.f32 0.0, %v392
    %v394 = vpop.f32.mrf.mxu0
    %v395 = vadd.f32 0.0, %v394
    %v396 = vpop.f32.mrf.mxu0
    %v397 = vadd.f32 0.0, %v396
    %398 = vmatprep.mubr.bf16.mxu0 %v151
    %399 = vmatmul.mubr.bf16.gmra.mxu0 %v150
    %v400 = vpop.f32.mrf.mxu0
    %v401 = vadd.f32 0.0, %v400
    %v402 = vpop.f32.mrf.mxu0
    %v403 = vadd.f32 0.0, %v402
    %v404 = vpop.f32.mrf.mxu0
    %v405 = vadd.f32 0.0, %v404
    %v406 = vpop.f32.mrf.mxu0
    %v407 = vadd.f32 0.0, %v406
    %408 = vmatprep.mubr.bf16.mxu0 %v153
    %409 = vmatmul.mubr.bf16.gmra.mxu0 %v152
    %v410 = vpop.f32.mrf.mxu0
    %v411 = vadd.f32 0.0, %v410
    %v412 = vpop.f32.mrf.mxu0
    %v413 = vadd.f32 0.0, %v412
    %v414 = vpop.f32.mrf.mxu0
    %v415 = vadd.f32 0.0, %v414
    %v416 = vpop.f32.mrf.mxu0
    %v417 = vadd.f32 0.0, %v416
    %418 = vmatprep.mubr.bf16.mxu0 %v155
    %419 = vmatmul.mubr.bf16.gmra.mxu0 %v154
    %v420 = vpop.f32.mrf.mxu0
    %v421 = vadd.f32 0.0, %v420
    %v422 = vpop.f32.mrf.mxu0
    %v423 = vadd.f32 0.0, %v422
    %v424 = vpop.f32.mrf.mxu0
    %v425 = vadd.f32 0.0, %v424
    %v426 = vpop.f32.mrf.mxu0
    %v427 = vadd.f32 0.0, %v426
    %428 = vmatprep.mubr.bf16.mxu0 %v157
    %429 = vmatmul.mubr.bf16.gmra.mxu0 %v156
    %v430 = vpop.f32.mrf.mxu0
    %v431 = vadd.f32 0.0, %v430
    %v432 = vpop.f32.mrf.mxu0
    %v433 = vadd.f32 0.0, %v432
    %v434 = vpop.f32.mrf.mxu0
    %v435 = vadd.f32 0.0, %v434
    %v436 = vpop.f32.mrf.mxu0
    %v437 = vadd.f32 0.0, %v436
    %438 = vmatprep.mubr.bf16.mxu0 %v159
    %439 = vmatmul.mubr.bf16.gmra.mxu0 %v158
    %v440 = vpop.f32.mrf.mxu0
    %v441 = vadd.f32 0.0, %v440
    %v442 = vpop.f32.mrf.mxu0
    %v443 = vadd.f32 0.0, %v442
    %v444 = vpop.f32.mrf.mxu0
    %v445 = vadd.f32 0.0, %v444
    %v446 = vpop.f32.mrf.mxu0
    %v447 = vadd.f32 0.0, %v446
    %448 = vdwg.mxu0
    %v449 = vmax.f32 %v371, 0.0
    %v450 = vmax.f32 %v373, 0.0
    %v451 = vmax.f32 %v375, 0.0
    %v452 = vmax.f32 %v377, 0.0
    %v453 = vmax.f32 %v381, 0.0
    %v454 = vmax.f32 %v383, 0.0
    %v455 = vmax.f32 %v385, 0.0
    %v456 = vmax.f32 %v387, 0.0
    %v457 = vmax.f32 %v391, 0.0
    %v458 = vmax.f32 %v393, 0.0
    %v459 = vmax.f32 %v395, 0.0
    %v460 = vmax.f32 %v397, 0.0
    %v461 = vmax.f32 %v401, 0.0
    %v462 = vmax.f32 %v403, 0.0
    %v463 = vmax.f32 %v405, 0.0
    %v464 = vmax.f32 %v407, 0.0
    %v465 = vmax.f32 %v411, 0.0
    %v466 = vmax.f32 %v413, 0.0
    %v467 = vmax.f32 %v415, 0.0
    %v468 = vmax.f32 %v417, 0.0
    %v469 = vmax.f32 %v421, 0.0
    %v470 = vmax.f32 %v423, 0.0
    %v471 = vmax.f32 %v425, 0.0
    %v472 = vmax.f32 %v427, 0.0
    %v473 = vmax.f32 %v431, 0.0
    %v474 = vmax.f32 %v433, 0.0
    %v475 = vmax.f32 %v435, 0.0
    %v476 = vmax.f32 %v437, 0.0
    %v477 = vmax.f32 %v441, 0.0
    %v478 = vmax.f32 %v443, 0.0
    %v479 = vmax.f32 %v445, 0.0
    %v480 = vmax.f32 %v447, 0.0
    %v481 = vpack.c.bf16 %v451, %v449
    %v482 = vpack.c.bf16 %v452, %v450
    %v483 = vpack.c.bf16 %v455, %v453
    %v484 = vpack.c.bf16 %v456, %v454
    %v485 = vpack.c.bf16 %v459, %v457
    %v486 = vpack.c.bf16 %v460, %v458
    %v487 = vpack.c.bf16 %v463, %v461
    %v488 = vpack.c.bf16 %v464, %v462
    %v489 = vpack.c.bf16 %v467, %v465
    %v490 = vpack.c.bf16 %v468, %v466
    %v491 = vpack.c.bf16 %v471, %v469
    %v492 = vpack.c.bf16 %v472, %v470
    %v493 = vpack.c.bf16 %v475, %v473
    %v494 = vpack.c.bf16 %v476, %v474
    %v495 = vpack.c.bf16 %v479, %v477
    %v496 = vpack.c.bf16 %v480, %v478
    %v497 = vld [vmem:[%s2] sm:$0xf]
    %v498 = vld [vmem:[%s2 + $0x4] sm:$0xf]
    %v499 = vld [vmem:[%s2 + $0x8] sm:$0xf]
    %v500 = vld [vmem:[%s2 + $0xc] sm:$0xf]
    %v501 = vld [vmem:[%s2 + $0x10] sm:$0xf]
    %v502 = vld [vmem:[%s2 + $0x14] sm:$0xf]
    %v503 = vld [vmem:[%s2 + $0x18] sm:$0xf]
    %v504 = vld [vmem:[%s2 + $0x1c] sm:$0xf]
    %v505 = vld [vmem:[%s2 + $0x20] sm:$0xf]
    %v506 = vld [vmem:[%s2 + $0x24] sm:$0xf]
    %v507 = vld [vmem:[%s2 + $0x28] sm:$0xf]
    %v508 = vld [vmem:[%s2 + $0x2c] sm:$0xf]
    %v509 = vld [vmem:[%s2 + $0x30] sm:$0xf]
    %v510 = vld [vmem:[%s2 + $0x34] sm:$0xf]
    %v511 = vld [vmem:[%s2 + $0x38] sm:$0xf]
    %v512 = vld [vmem:[%s2 + $0x3c] sm:$0xf]
    %v513 = vld [vmem:[%s2 + $0x40] sm:$0xf]
    %v514 = vld [vmem:[%s2 + $0x44] sm:$0xf]
    %v515 = vld [vmem:[%s2 + $0x48] sm:$0xf]
    %v516 = vld [vmem:[%s2 + $0x4c] sm:$0xf]
    %v517 = vld [vmem:[%s2 + $0x50] sm:$0xf]
    %v518 = vld [vmem:[%s2 + $0x54] sm:$0xf]
    %v519 = vld [vmem:[%s2 + $0x58] sm:$0xf]
    %v520 = vld [vmem:[%s2 + $0x5c] sm:$0xf]
    %v521 = vld [vmem:[%s2 + $0x60] sm:$0xf]
    %v522 = vld [vmem:[%s2 + $0x64] sm:$0xf]
    %v523 = vld [vmem:[%s2 + $0x68] sm:$0xf]
    %v524 = vld [vmem:[%s2 + $0x6c] sm:$0xf]
    %v525 = vld [vmem:[%s2 + $0x70] sm:$0xf]
    %v526 = vld [vmem:[%s2 + $0x74] sm:$0xf]
    %v527 = vld [vmem:[%s2 + $0x78] sm:$0xf]
    %v528 = vld [vmem:[%s2 + $0x7c] sm:$0xf]
    %v561 = vunpack.c.l.b16 %v497
    %v562 = vunpack.c.l.b16 %v498
    %v563 = vunpack.c.l.b16 %v499
    %v564 = vunpack.c.l.b16 %v500
    %v565 = vunpack.c.l.b16 %v501
    %v566 = vunpack.c.l.b16 %v502
    %v567 = vunpack.c.l.b16 %v503
    %v568 = vunpack.c.l.b16 %v504
    %v569 = vunpack.c.l.b16 %v505
    %v570 = vunpack.c.l.b16 %v506
    %v571 = vunpack.c.l.b16 %v507
    %v572 = vunpack.c.l.b16 %v508
    %v573 = vunpack.c.l.b16 %v509
    %v574 = vunpack.c.l.b16 %v510
    %v575 = vunpack.c.l.b16 %v511
    %v576 = vunpack.c.l.b16 %v512
    %v577 = vunpack.c.l.b16 %v513
    %v578 = vunpack.c.l.b16 %v514
    %v579 = vunpack.c.l.b16 %v515
    %v580 = vunpack.c.l.b16 %v516
    %v581 = vunpack.c.l.b16 %v517
    %v582 = vunpack.c.l.b16 %v518
    %v583 = vunpack.c.l.b16 %v519
    %v584 = vunpack.c.l.b16 %v520
    %v585 = vunpack.c.l.b16 %v521
    %v586 = vunpack.c.l.b16 %v522
    %v587 = vunpack.c.l.b16 %v523
    %v588 = vunpack.c.l.b16 %v524
    %v589 = vunpack.c.l.b16 %v525
    %v590 = vunpack.c.l.b16 %v526
    %v591 = vunpack.c.l.b16 %v527
    %v592 = vunpack.c.l.b16 %v528
    %v593 = vpack.c.b16 %v562, %v561
    %v594 = vpack.c.b16 %v564, %v563
    %v595 = vpack.c.b16 %v566, %v565
    %v596 = vpack.c.b16 %v568, %v567
    %v597 = vpack.c.b16 %v570, %v569
    %v598 = vpack.c.b16 %v572, %v571
    %v599 = vpack.c.b16 %v574, %v573
    %v600 = vpack.c.b16 %v576, %v575
    %v601 = vpack.c.b16 %v578, %v577
    %v602 = vpack.c.b16 %v580, %v579
    %v603 = vpack.c.b16 %v582, %v581
    %v604 = vpack.c.b16 %v584, %v583
    %v605 = vpack.c.b16 %v586, %v585
    %v606 = vpack.c.b16 %v588, %v587
    %v607 = vpack.c.b16 %v590, %v589
    %v608 = vpack.c.b16 %v592, %v591
    %625 = vmatprep.subr.bf16.mxu0 0
    %626 = vmatpush1.bf16.msra.mxu0 %v600
    %627 = vmatprep.subr.bf16.mxu0 0
    %628 = vmatpush1.bf16.msra.mxu0 %v599
    %629 = vmatprep.subr.bf16.mxu0 0
    %630 = vmatpush1.bf16.msra.mxu0 %v598
    %631 = vmatprep.subr.bf16.mxu0 0
    %632 = vmatpush1.bf16.msra.mxu0 %v597
    %633 = vmatprep.subr.bf16.mxu0 0
    %634 = vmatpush1.bf16.msra.mxu0 %v596
    %635 = vmatprep.subr.bf16.mxu0 0
    %636 = vmatpush1.bf16.msra.mxu0 %v595
    %637 = vmatprep.subr.bf16.mxu0 0
    %638 = vmatpush1.bf16.msra.mxu0 %v594
    %639 = vmatprep.subr.bf16.mxu0 0
    %640 = vmatpush1.bf16.msra.mxu0 %v593
    %641 = vmatprep.subr.bf16.mxu0 0
    %642 = vmatpush2.bf16.msra.mxu0 %v608
    %643 = vmatprep.subr.bf16.mxu0 0
    %644 = vmatpush2.bf16.msra.mxu0 %v607
    %645 = vmatprep.subr.bf16.mxu0 0
    %646 = vmatpush2.bf16.msra.mxu0 %v606
    %647 = vmatprep.subr.bf16.mxu0 0
    %648 = vmatpush2.bf16.msra.mxu0 %v605
    %649 = vmatprep.subr.bf16.mxu0 0
    %650 = vmatpush2.bf16.msra.mxu0 %v604
    %651 = vmatprep.subr.bf16.mxu0 0
    %652 = vmatpush2.bf16.msra.mxu0 %v603
    %653 = vmatprep.subr.bf16.mxu0 0
    %654 = vmatpush2.bf16.msra.mxu0 %v602
    %655 = vmatprep.subr.bf16.mxu0 0
    %656 = vmatpush2.bf16.msra.mxu0 %v601
    %657 = vmatprep.mubr.bf16.mxu0 %v482
    %658 = vmatmul.mubr.bf16.gmra.mxu0 %v481
    %v659 = vpop.f32.mrf.mxu0
    %v660 = vadd.f32 0.0, %v659
    %v661 = vpop.f32.mrf.mxu0
    %v662 = vpop.f32.mrf.mxu0
    %v663 = vadd.f32 0.0, %v662
    %v664 = vpop.f32.mrf.mxu0
    %665 = vmatprep.mubr.bf16.mxu0 %v484
    %666 = vmatmul.mubr.bf16.gmra.mxu0 %v483
    %v667 = vpop.f32.mrf.mxu0
    %v668 = vadd.f32 0.0, %v667
    %v669 = vpop.f32.mrf.mxu0
    %v670 = vpop.f32.mrf.mxu0
    %v671 = vadd.f32 0.0, %v670
    %v672 = vpop.f32.mrf.mxu0
    %673 = vmatprep.mubr.bf16.mxu0 %v486
    %674 = vmatmul.mubr.bf16.gmra.mxu0 %v485
    %v675 = vpop.f32.mrf.mxu0
    %v676 = vadd.f32 0.0, %v675
    %v677 = vpop.f32.mrf.mxu0
    %v678 = vpop.f32.mrf.mxu0
    %v679 = vadd.f32 0.0, %v678
    %v680 = vpop.f32.mrf.mxu0
    %681 = vmatprep.mubr.bf16.mxu0 %v488
    %682 = vmatmul.mubr.bf16.gmra.mxu0 %v487
    %v683 = vpop.f32.mrf.mxu0
    %v684 = vadd.f32 0.0, %v683
    %v685 = vpop.f32.mrf.mxu0
    %v686 = vpop.f32.mrf.mxu0
    %v687 = vadd.f32 0.0, %v686
    %v688 = vpop.f32.mrf.mxu0
    %689 = vmatprep.mubr.bf16.mxu0 %v490
    %690 = vmatmul.mubr.bf16.gmra.mxu0 %v489
    %v691 = vpop.f32.mrf.mxu0
    %v692 = vadd.f32 0.0, %v691
    %v693 = vpop.f32.mrf.mxu0
    %v694 = vpop.f32.mrf.mxu0
    %v695 = vadd.f32 0.0, %v694
    %v696 = vpop.f32.mrf.mxu0
    %697 = vmatprep.mubr.bf16.mxu0 %v492
    %698 = vmatmul.mubr.bf16.gmra.mxu0 %v491
    %v699 = vpop.f32.mrf.mxu0
    %v700 = vadd.f32 0.0, %v699
    %v701 = vpop.f32.mrf.mxu0
    %v702 = vpop.f32.mrf.mxu0
    %v703 = vadd.f32 0.0, %v702
    %v704 = vpop.f32.mrf.mxu0
    %705 = vmatprep.mubr.bf16.mxu0 %v494
    %706 = vmatmul.mubr.bf16.gmra.mxu0 %v493
    %v707 = vpop.f32.mrf.mxu0
    %v708 = vadd.f32 0.0, %v707
    %v709 = vpop.f32.mrf.mxu0
    %v710 = vpop.f32.mrf.mxu0
    %v711 = vadd.f32 0.0, %v710
    %v712 = vpop.f32.mrf.mxu0
    %713 = vmatprep.mubr.bf16.mxu0 %v496
    %714 = vmatmul.mubr.bf16.gmra.mxu0 %v495
    %v715 = vpop.f32.mrf.mxu0
    %v716 = vadd.f32 0.0, %v715
    %v717 = vpop.f32.mrf.mxu0
    %v718 = vpop.f32.mrf.mxu0
    %v719 = vadd.f32 0.0, %v718
    %v720 = vpop.f32.mrf.mxu0
    %721 = vdwg.mxu0
    %v722 = vadd.f32 %v46, %v660
    %v723 = vadd.f32 %v46, %v663
    %v724 = vadd.f32 %v46, %v668
    %v725 = vadd.f32 %v46, %v671
    %v726 = vadd.f32 %v46, %v676
    %v727 = vadd.f32 %v46, %v679
    %v728 = vadd.f32 %v46, %v684
    %v729 = vadd.f32 %v46, %v687
    %v730 = vadd.f32 %v46, %v692
    %v731 = vadd.f32 %v46, %v695
    %v732 = vadd.f32 %v46, %v700
    %v733 = vadd.f32 %v46, %v703
    %v734 = vadd.f32 %v46, %v708
    %v735 = vadd.f32 %v46, %v711
    %v736 = vadd.f32 %v46, %v716
    %v737 = vadd.f32 %v46, %v719
    %v738 = vld [vmem:[%s0 + $0x8] sm:$0xff]
    %v739 = vld [vmem:[%s0 + $0x38] sm:$0xff]
    %v740 = vld [vmem:[%s0 + $0x68] sm:$0xff]
    %v741 = vld [vmem:[%s0 + $0x98] sm:$0xff]
    %v742 = vld [vmem:[%s0 + $0xc8] sm:$0xff]
    %v743 = vld [vmem:[%s0 + $0xf8] sm:$0xff]
    %v744 = vld [vmem:[%s0 + $0x128] sm:$0xff]
    %v745 = vld [vmem:[%s0 + $0x158] sm:$0xff]
    %v746 = vld [vmem:[%s0 + $0x188] sm:$0xff]
    %v747 = vld [vmem:[%s0 + $0x1b8] sm:$0xff]
    %v748 = vld [vmem:[%s0 + $0x1e8] sm:$0xff]
    %v749 = vld [vmem:[%s0 + $0x218] sm:$0xff]
    %v750 = vld [vmem:[%s0 + $0x248] sm:$0xff]
    %v751 = vld [vmem:[%s0 + $0x278] sm:$0xff]
    %v752 = vld [vmem:[%s0 + $0x2a8] sm:$0xff]
    %v753 = vld [vmem:[%s0 + $0x2d8] sm:$0xff]
    %v770 = vunpack.c.l.b16 %v738
    %v771 = vunpack.c.h.b16 %v738
    %v772 = vunpack.c.l.b16 %v739
    %v773 = vunpack.c.h.b16 %v739
    %v774 = vunpack.c.l.b16 %v740
    %v775 = vunpack.c.h.b16 %v740
    %v776 = vunpack.c.l.b16 %v741
    %v777 = vunpack.c.h.b16 %v741
    %v778 = vunpack.c.l.b16 %v742
    %v779 = vunpack.c.h.b16 %v742
    %v780 = vunpack.c.l.b16 %v743
    %v781 = vunpack.c.h.b16 %v743
    %v782 = vunpack.c.l.b16 %v744
    %v783 = vunpack.c.h.b16 %v744
    %v784 = vunpack.c.l.b16 %v745
    %v785 = vunpack.c.h.b16 %v745
    %v786 = vunpack.c.l.b16 %v746
    %v787 = vunpack.c.h.b16 %v746
    %v788 = vunpack.c.l.b16 %v747
    %v789 = vunpack.c.h.b16 %v747
    %v790 = vunpack.c.l.b16 %v748
    %v791 = vunpack.c.h.b16 %v748
    %v792 = vunpack.c.l.b16 %v749
    %v793 = vunpack.c.h.b16 %v749
    %v794 = vunpack.c.l.b16 %v750
    %v795 = vunpack.c.h.b16 %v750
    %v796 = vunpack.c.l.b16 %v751
    %v797 = vunpack.c.h.b16 %v751
    %v798 = vunpack.c.l.b16 %v752
    %v799 = vunpack.c.h.b16 %v752
    %v800 = vunpack.c.l.b16 %v753
    %v801 = vunpack.c.h.b16 %v753
    %v802 = vpack.c.b16 %v772, %v770
    %v803 = vpack.c.b16 %v773, %v771
    %v804 = vpack.c.b16 %v776, %v774
    %v805 = vpack.c.b16 %v777, %v775
    %v806 = vpack.c.b16 %v780, %v778
    %v807 = vpack.c.b16 %v781, %v779
    %v808 = vpack.c.b16 %v784, %v782
    %v809 = vpack.c.b16 %v785, %v783
    %v810 = vpack.c.b16 %v788, %v786
    %v811 = vpack.c.b16 %v789, %v787
    %v812 = vpack.c.b16 %v792, %v790
    %v813 = vpack.c.b16 %v793, %v791
    %v814 = vpack.c.b16 %v796, %v794
    %v815 = vpack.c.b16 %v797, %v795
    %v816 = vpack.c.b16 %v800, %v798
    %v817 = vpack.c.b16 %v801, %v799
    %834 = vmatprep.subr.bf16.mxu0 %v287
    %835 = vmatpush1.bf16.msra.mxu0 %v286
    %836 = vmatprep.subr.bf16.mxu0 %v285
    %837 = vmatpush1.bf16.msra.mxu0 %v284
    %838 = vmatprep.subr.bf16.mxu0 %v283
    %839 = vmatpush1.bf16.msra.mxu0 %v282
    %840 = vmatprep.subr.bf16.mxu0 %v281
    %841 = vmatpush1.bf16.msra.mxu0 %v280
    %842 = vmatprep.subr.bf16.mxu0 %v279
    %843 = vmatpush1.bf16.msra.mxu0 %v278
    %844 = vmatprep.subr.bf16.mxu0 %v277
    %845 = vmatpush1.bf16.msra.mxu0 %v276
    %846 = vmatprep.subr.bf16.mxu0 %v275
    %847 = vmatpush1.bf16.msra.mxu0 %v274
    %848 = vmatprep.subr.bf16.mxu0 %v273
    %849 = vmatpush1.bf16.msra.mxu0 %v272
    %850 = vmatprep.subr.bf16.mxu0 %v303
    %851 = vmatpush2.bf16.msra.mxu0 %v302
    %852 = vmatprep.subr.bf16.mxu0 %v301
    %853 = vmatpush2.bf16.msra.mxu0 %v300
    %854 = vmatprep.subr.bf16.mxu0 %v299
    %855 = vmatpush2.bf16.msra.mxu0 %v298
    %856 = vmatprep.subr.bf16.mxu0 %v297
    %857 = vmatpush2.bf16.msra.mxu0 %v296
    %858 = vmatprep.subr.bf16.mxu0 %v295
    %859 = vmatpush2.bf16.msra.mxu0 %v294
    %860 = vmatprep.subr.bf16.mxu0 %v293
    %861 = vmatpush2.bf16.msra.mxu0 %v292
    %862 = vmatprep.subr.bf16.mxu0 %v291
    %863 = vmatpush2.bf16.msra.mxu0 %v290
    %864 = vmatprep.subr.bf16.mxu0 %v289
    %865 = vmatpush2.bf16.msra.mxu0 %v288
    %866 = vmatprep.mubr.bf16.mxu0 %v803
    %867 = vmatmul.mubr.bf16.gmra.mxu0 %v802
    %v868 = vpop.f32.mrf.mxu0
    %v869 = vadd.f32 0.0, %v868
    %v870 = vpop.f32.mrf.mxu0
    %v871 = vadd.f32 0.0, %v870
    %v872 = vpop.f32.mrf.mxu0
    %v873 = vadd.f32 0.0, %v872
    %v874 = vpop.f32.mrf.mxu0
    %v875 = vadd.f32 0.0, %v874
    %876 = vmatprep.mubr.bf16.mxu0 %v805
    %877 = vmatmul.mubr.bf16.gmra.mxu0 %v804
    %v878 = vpop.f32.mrf.mxu0
    %v879 = vadd.f32 0.0, %v878
    %v880 = vpop.f32.mrf.mxu0
    %v881 = vadd.f32 0.0, %v880
    %v882 = vpop.f32.mrf.mxu0
    %v883 = vadd.f32 0.0, %v882
    %v884 = vpop.f32.mrf.mxu0
    %v885 = vadd.f32 0.0, %v884
    %886 = vmatprep.mubr.bf16.mxu0 %v807
    %887 = vmatmul.mubr.bf16.gmra.mxu0 %v806
    %v888 = vpop.f32.mrf.mxu0
    %v889 = vadd.f32 0.0, %v888
    %v890 = vpop.f32.mrf.mxu0
    %v891 = vadd.f32 0.0, %v890
    %v892 = vpop.f32.mrf.mxu0
    %v893 = vadd.f32 0.0, %v892
    %v894 = vpop.f32.mrf.mxu0
    %v895 = vadd.f32 0.0, %v894
    %896 = vmatprep.mubr.bf16.mxu0 %v809
    %897 = vmatmul.mubr.bf16.gmra.mxu0 %v808
    %v898 = vpop.f32.mrf.mxu0
    %v899 = vadd.f32 0.0, %v898
    %v900 = vpop.f32.mrf.mxu0
    %v901 = vadd.f32 0.0, %v900
    %v902 = vpop.f32.mrf.mxu0
    %v903 = vadd.f32 0.0, %v902
    %v904 = vpop.f32.mrf.mxu0
    %v905 = vadd.f32 0.0, %v904
    %906 = vmatprep.mubr.bf16.mxu0 %v811
    %907 = vmatmul.mubr.bf16.gmra.mxu0 %v810
    %v908 = vpop.f32.mrf.mxu0
    %v909 = vadd.f32 0.0, %v908
    %v910 = vpop.f32.mrf.mxu0
    %v911 = vadd.f32 0.0, %v910
    %v912 = vpop.f32.mrf.mxu0
    %v913 = vadd.f32 0.0, %v912
    %v914 = vpop.f32.mrf.mxu0
    %v915 = vadd.f32 0.0, %v914
    %916 = vmatprep.mubr.bf16.mxu0 %v813
    %917 = vmatmul.mubr.bf16.gmra.mxu0 %v812
    %v918 = vpop.f32.mrf.mxu0
    %v919 = vadd.f32 0.0, %v918
    %v920 = vpop.f32.mrf.mxu0
    %v921 = vadd.f32 0.0, %v920
    %v922 = vpop.f32.mrf.mxu0
    %v923 = vadd.f32 0.0, %v922
    %v924 = vpop.f32.mrf.mxu0
    %v925 = vadd.f32 0.0, %v924
    %926 = vmatprep.mubr.bf16.mxu0 %v815
    %927 = vmatmul.mubr.bf16.gmra.mxu0 %v814
    %v928 = vpop.f32.mrf.mxu0
    %v929 = vadd.f32 0.0, %v928
    %v930 = vpop.f32.mrf.mxu0
    %v931 = vadd.f32 0.0, %v930
    %v932 = vpop.f32.mrf.mxu0
    %v933 = vadd.f32 0.0, %v932
    %v934 = vpop.f32.mrf.mxu0
    %v935 = vadd.f32 0.0, %v934
    %936 = vmatprep.mubr.bf16.mxu0 %v817
    %937 = vmatmul.mubr.bf16.gmra.mxu0 %v816
    %v938 = vpop.f32.mrf.mxu0
    %v939 = vadd.f32 0.0, %v938
    %v940 = vpop.f32.mrf.mxu0
    %v941 = vadd.f32 0.0, %v940
    %v942 = vpop.f32.mrf.mxu0
    %v943 = vadd.f32 0.0, %v942
    %v944 = vpop.f32.mrf.mxu0
    %v945 = vadd.f32 0.0, %v944
    %946 = vdwg.mxu0
    %v947 = vmax.f32 %v869, 0.0
    %v948 = vmax.f32 %v871, 0.0
    %v949 = vmax.f32 %v873, 0.0
    %v950 = vmax.f32 %v875, 0.0
    %v951 = vmax.f32 %v879, 0.0
    %v952 = vmax.f32 %v881, 0.0
    %v953 = vmax.f32 %v883, 0.0
    %v954 = vmax.f32 %v885, 0.0
    %v955 = vmax.f32 %v889, 0.0
    %v956 = vmax.f32 %v891, 0.0
    %v957 = vmax.f32 %v893, 0.0
    %v958 = vmax.f32 %v895, 0.0
    %v959 = vmax.f32 %v899, 0.0
    %v960 = vmax.f32 %v901, 0.0
    %v961 = vmax.f32 %v903, 0.0
    %v962 = vmax.f32 %v905, 0.0
    %v963 = vmax.f32 %v909, 0.0
    %v964 = vmax.f32 %v911, 0.0
    %v965 = vmax.f32 %v913, 0.0
    %v966 = vmax.f32 %v915, 0.0
    %v967 = vmax.f32 %v919, 0.0
    %v968 = vmax.f32 %v921, 0.0
    %v969 = vmax.f32 %v923, 0.0
    %v970 = vmax.f32 %v925, 0.0
    %v971 = vmax.f32 %v929, 0.0
    %v972 = vmax.f32 %v931, 0.0
    %v973 = vmax.f32 %v933, 0.0
    %v974 = vmax.f32 %v935, 0.0
    %v975 = vmax.f32 %v939, 0.0
    %v976 = vmax.f32 %v941, 0.0
    %v977 = vmax.f32 %v943, 0.0
    %v978 = vmax.f32 %v945, 0.0
    %v979 = vpack.c.bf16 %v949, %v947
    %v980 = vpack.c.bf16 %v950, %v948
    %v981 = vpack.c.bf16 %v953, %v951
    %v982 = vpack.c.bf16 %v954, %v952
    %v983 = vpack.c.bf16 %v957, %v955
    %v984 = vpack.c.bf16 %v958, %v956
    %v985 = vpack.c.bf16 %v961, %v959
    %v986 = vpack.c.bf16 %v962, %v960
    %v987 = vpack.c.bf16 %v965, %v963
    %v988 = vpack.c.bf16 %v966, %v964
    %v989 = vpack.c.bf16 %v969, %v967
    %v990 = vpack.c.bf16 %v970, %v968
    %v991 = vpack.c.bf16 %v973, %v971
    %v992 = vpack.c.bf16 %v974, %v972
    %v993 = vpack.c.bf16 %v977, %v975
    %v994 = vpack.c.bf16 %v978, %v976
    %s995 = scalar_lea.vmem %s2, 128
    %v996 = vld [vmem:[%s995] sm:$0xf]
    %v997 = vld [vmem:[%s995 + $0x4] sm:$0xf]
    %v998 = vld [vmem:[%s995 + $0x8] sm:$0xf]
    %v999 = vld [vmem:[%s995 + $0xc] sm:$0xf]
    %v1000 = vld [vmem:[%s995 + $0x10] sm:$0xf]
    %v1001 = vld [vmem:[%s995 + $0x14] sm:$0xf]
    %v1002 = vld [vmem:[%s995 + $0x18] sm:$0xf]
    %v1003 = vld [vmem:[%s995 + $0x1c] sm:$0xf]
    %v1004 = vld [vmem:[%s995 + $0x20] sm:$0xf]
    %v1005 = vld [vmem:[%s995 + $0x24] sm:$0xf]
    %v1006 = vld [vmem:[%s995 + $0x28] sm:$0xf]
    %v1007 = vld [vmem:[%s995 + $0x2c] sm:$0xf]
    %v1008 = vld [vmem:[%s995 + $0x30] sm:$0xf]
    %v1009 = vld [vmem:[%s995 + $0x34] sm:$0xf]
    %v1010 = vld [vmem:[%s995 + $0x38] sm:$0xf]
    %v1011 = vld [vmem:[%s995 + $0x3c] sm:$0xf]
    %v1012 = vld [vmem:[%s995 + $0x40] sm:$0xf]
    %v1013 = vld [vmem:[%s995 + $0x44] sm:$0xf]
    %v1014 = vld [vmem:[%s995 + $0x48] sm:$0xf]
    %v1015 = vld [vmem:[%s995 + $0x4c] sm:$0xf]
    %v1016 = vld [vmem:[%s995 + $0x50] sm:$0xf]
    %v1017 = vld [vmem:[%s995 + $0x54] sm:$0xf]
    %v1018 = vld [vmem:[%s995 + $0x58] sm:$0xf]
    %v1019 = vld [vmem:[%s995 + $0x5c] sm:$0xf]
    %v1020 = vld [vmem:[%s995 + $0x60] sm:$0xf]
    %v1021 = vld [vmem:[%s995 + $0x64] sm:$0xf]
    %v1022 = vld [vmem:[%s995 + $0x68] sm:$0xf]
    %v1023 = vld [vmem:[%s995 + $0x6c] sm:$0xf]
    %v1024 = vld [vmem:[%s995 + $0x70] sm:$0xf]
    %v1025 = vld [vmem:[%s995 + $0x74] sm:$0xf]
    %v1026 = vld [vmem:[%s995 + $0x78] sm:$0xf]
    %v1027 = vld [vmem:[%s995 + $0x7c] sm:$0xf]
    %v1060 = vunpack.c.l.b16 %v996
    %v1061 = vunpack.c.l.b16 %v997
    %v1062 = vunpack.c.l.b16 %v998
    %v1063 = vunpack.c.l.b16 %v999
    %v1064 = vunpack.c.l.b16 %v1000
    %v1065 = vunpack.c.l.b16 %v1001
    %v1066 = vunpack.c.l.b16 %v1002
    %v1067 = vunpack.c.l.b16 %v1003
    %v1068 = vunpack.c.l.b16 %v1004
    %v1069 = vunpack.c.l.b16 %v1005
    %v1070 = vunpack.c.l.b16 %v1006
    %v1071 = vunpack.c.l.b16 %v1007
    %v1072 = vunpack.c.l.b16 %v1008
    %v1073 = vunpack.c.l.b16 %v1009
    %v1074 = vunpack.c.l.b16 %v1010
    %v1075 = vunpack.c.l.b16 %v1011
    %v1076 = vunpack.c.l.b16 %v1012
    %v1077 = vunpack.c.l.b16 %v1013
    %v1078 = vunpack.c.l.b16 %v1014
    %v1079 = vunpack.c.l.b16 %v1015
    %v1080 = vunpack.c.l.b16 %v1016
    %v1081 = vunpack.c.l.b16 %v1017
    %v1082 = vunpack.c.l.b16 %v1018
    %v1083 = vunpack.c.l.b16 %v1019
    %v1084 = vunpack.c.l.b16 %v1020
    %v1085 = vunpack.c.l.b16 %v1021
    %v1086 = vunpack.c.l.b16 %v1022
    %v1087 = vunpack.c.l.b16 %v1023
    %v1088 = vunpack.c.l.b16 %v1024
    %v1089 = vunpack.c.l.b16 %v1025
    %v1090 = vunpack.c.l.b16 %v1026
    %v1091 = vunpack.c.l.b16 %v1027
    %v1092 = vpack.c.b16 %v1061, %v1060
    %v1093 = vpack.c.b16 %v1063, %v1062
    %v1094 = vpack.c.b16 %v1065, %v1064
    %v1095 = vpack.c.b16 %v1067, %v1066
    %v1096 = vpack.c.b16 %v1069, %v1068
    %v1097 = vpack.c.b16 %v1071, %v1070
    %v1098 = vpack.c.b16 %v1073, %v1072
    %v1099 = vpack.c.b16 %v1075, %v1074
    %v1100 = vpack.c.b16 %v1077, %v1076
    %v1101 = vpack.c.b16 %v1079, %v1078
    %v1102 = vpack.c.b16 %v1081, %v1080
    %v1103 = vpack.c.b16 %v1083, %v1082
    %v1104 = vpack.c.b16 %v1085, %v1084
    %v1105 = vpack.c.b16 %v1087, %v1086
    %v1106 = vpack.c.b16 %v1089, %v1088
    %v1107 = vpack.c.b16 %v1091, %v1090
    %1124 = vmatprep.subr.bf16.mxu0 0
    %1125 = vmatpush1.bf16.msra.mxu0 %v1099
    %1126 = vmatprep.subr.bf16.mxu0 0
    %1127 = vmatpush1.bf16.msra.mxu0 %v1098
    %1128 = vmatprep.subr.bf16.mxu0 0
    %1129 = vmatpush1.bf16.msra.mxu0 %v1097
    %1130 = vmatprep.subr.bf16.mxu0 0
    %1131 = vmatpush1.bf16.msra.mxu0 %v1096
    %1132 = vmatprep.subr.bf16.mxu0 0
    %1133 = vmatpush1.bf16.msra.mxu0 %v1095
    %1134 = vmatprep.subr.bf16.mxu0 0
    %1135 = vmatpush1.bf16.msra.mxu0 %v1094
    %1136 = vmatprep.subr.bf16.mxu0 0
    %1137 = vmatpush1.bf16.msra.mxu0 %v1093
    %1138 = vmatprep.subr.bf16.mxu0 0
    %1139 = vmatpush1.bf16.msra.mxu0 %v1092
    %1140 = vmatprep.subr.bf16.mxu0 0
    %1141 = vmatpush2.bf16.msra.mxu0 %v1107
    %1142 = vmatprep.subr.bf16.mxu0 0
    %1143 = vmatpush2.bf16.msra.mxu0 %v1106
    %1144 = vmatprep.subr.bf16.mxu0 0
    %1145 = vmatpush2.bf16.msra.mxu0 %v1105
    %1146 = vmatprep.subr.bf16.mxu0 0
    %1147 = vmatpush2.bf16.msra.mxu0 %v1104
    %1148 = vmatprep.subr.bf16.mxu0 0
    %1149 = vmatpush2.bf16.msra.mxu0 %v1103
    %1150 = vmatprep.subr.bf16.mxu0 0
    %1151 = vmatpush2.bf16.msra.mxu0 %v1102
    %1152 = vmatprep.subr.bf16.mxu0 0
    %1153 = vmatpush2.bf16.msra.mxu0 %v1101
    %1154 = vmatprep.subr.bf16.mxu0 0
    %1155 = vmatpush2.bf16.msra.mxu0 %v1100
    %1156 = vmatprep.mubr.bf16.mxu0 %v980
    %1157 = vmatmul.mubr.bf16.gmra.mxu0 %v979
    %v1158 = vpop.f32.mrf.mxu0
    %v1159 = vadd.f32 0.0, %v1158
    %v1160 = vpop.f32.mrf.mxu0
    %v1161 = vpop.f32.mrf.mxu0
    %v1162 = vadd.f32 0.0, %v1161
    %v1163 = vpop.f32.mrf.mxu0
    %1164 = vmatprep.mubr.bf16.mxu0 %v982
    %1165 = vmatmul.mubr.bf16.gmra.mxu0 %v981
    %v1166 = vpop.f32.mrf.mxu0
    %v1167 = vadd.f32 0.0, %v1166
    %v1168 = vpop.f32.mrf.mxu0
    %v1169 = vpop.f32.mrf.mxu0
    %v1170 = vadd.f32 0.0, %v1169
    %v1171 = vpop.f32.mrf.mxu0
    %1172 = vmatprep.mubr.bf16.mxu0 %v984
    %1173 = vmatmul.mubr.bf16.gmra.mxu0 %v983
    %v1174 = vpop.f32.mrf.mxu0
    %v1175 = vadd.f32 0.0, %v1174
    %v1176 = vpop.f32.mrf.mxu0
    %v1177 = vpop.f32.mrf.mxu0
    %v1178 = vadd.f32 0.0, %v1177
    %v1179 = vpop.f32.mrf.mxu0
    %1180 = vmatprep.mubr.bf16.mxu0 %v986
    %1181 = vmatmul.mubr.bf16.gmra.mxu0 %v985
    %v1182 = vpop.f32.mrf.mxu0
    %v1183 = vadd.f32 0.0, %v1182
    %v1184 = vpop.f32.mrf.mxu0
    %v1185 = vpop.f32.mrf.mxu0
    %v1186 = vadd.f32 0.0, %v1185
    %v1187 = vpop.f32.mrf.mxu0
    %1188 = vmatprep.mubr.bf16.mxu0 %v988
    %1189 = vmatmul.mubr.bf16.gmra.mxu0 %v987
    %v1190 = vpop.f32.mrf.mxu0
    %v1191 = vadd.f32 0.0, %v1190
    %v1192 = vpop.f32.mrf.mxu0
    %v1193 = vpop.f32.mrf.mxu0
    %v1194 = vadd.f32 0.0, %v1193
    %v1195 = vpop.f32.mrf.mxu0
    %1196 = vmatprep.mubr.bf16.mxu0 %v990
    %1197 = vmatmul.mubr.bf16.gmra.mxu0 %v989
    %v1198 = vpop.f32.mrf.mxu0
    %v1199 = vadd.f32 0.0, %v1198
    %v1200 = vpop.f32.mrf.mxu0
    %v1201 = vpop.f32.mrf.mxu0
    %v1202 = vadd.f32 0.0, %v1201
    %v1203 = vpop.f32.mrf.mxu0
    %1204 = vmatprep.mubr.bf16.mxu0 %v992
    %1205 = vmatmul.mubr.bf16.gmra.mxu0 %v991
    %v1206 = vpop.f32.mrf.mxu0
    %v1207 = vadd.f32 0.0, %v1206
    %v1208 = vpop.f32.mrf.mxu0
    %v1209 = vpop.f32.mrf.mxu0
    %v1210 = vadd.f32 0.0, %v1209
    %v1211 = vpop.f32.mrf.mxu0
    %1212 = vmatprep.mubr.bf16.mxu0 %v994
    %1213 = vmatmul.mubr.bf16.gmra.mxu0 %v993
    %v1214 = vpop.f32.mrf.mxu0
    %v1215 = vadd.f32 0.0, %v1214
    %v1216 = vpop.f32.mrf.mxu0
    %v1217 = vpop.f32.mrf.mxu0
    %v1218 = vadd.f32 0.0, %v1217
    %v1219 = vpop.f32.mrf.mxu0
    %1220 = vdwg.mxu0
    %v1221 = vadd.f32 %v722, %v1159
    %v1222 = vadd.f32 %v723, %v1162
    %v1223 = vadd.f32 %v724, %v1167
    %v1224 = vadd.f32 %v725, %v1170
    %v1225 = vadd.f32 %v726, %v1175
    %v1226 = vadd.f32 %v727, %v1178
    %v1227 = vadd.f32 %v728, %v1183
    %v1228 = vadd.f32 %v729, %v1186
    %v1229 = vadd.f32 %v730, %v1191
    %v1230 = vadd.f32 %v731, %v1194
    %v1231 = vadd.f32 %v732, %v1199
    %v1232 = vadd.f32 %v733, %v1202
    %v1233 = vadd.f32 %v734, %v1207
    %v1234 = vadd.f32 %v735, %v1210
    %v1235 = vadd.f32 %v736, %v1215
    %v1236 = vadd.f32 %v737, %v1218
    %v1237 = vld [vmem:[%s0 + $0x10] sm:$0xff]
    %v1238 = vld [vmem:[%s0 + $0x40] sm:$0xff]
    %v1239 = vld [vmem:[%s0 + $0x70] sm:$0xff]
    %v1240 = vld [vmem:[%s0 + $0xa0] sm:$0xff]
    %v1241 = vld [vmem:[%s0 + $0xd0] sm:$0xff]
    %v1242 = vld [vmem:[%s0 + $0x100] sm:$0xff]
    %v1243 = vld [vmem:[%s0 + $0x130] sm:$0xff]
    %v1244 = vld [vmem:[%s0 + $0x160] sm:$0xff]
    %v1245 = vld [vmem:[%s0 + $0x190] sm:$0xff]
    %v1246 = vld [vmem:[%s0 + $0x1c0] sm:$0xff]
    %v1247 = vld [vmem:[%s0 + $0x1f0] sm:$0xff]
    %v1248 = vld [vmem:[%s0 + $0x220] sm:$0xff]
    %v1249 = vld [vmem:[%s0 + $0x250] sm:$0xff]
    %v1250 = vld [vmem:[%s0 + $0x280] sm:$0xff]
    %v1251 = vld [vmem:[%s0 + $0x2b0] sm:$0xff]
    %v1252 = vld [vmem:[%s0 + $0x2e0] sm:$0xff]
    %v1269 = vunpack.c.l.b16 %v1237
    %v1270 = vunpack.c.h.b16 %v1237
    %v1271 = vunpack.c.l.b16 %v1238
    %v1272 = vunpack.c.h.b16 %v1238
    %v1273 = vunpack.c.l.b16 %v1239
    %v1274 = vunpack.c.h.b16 %v1239
    %v1275 = vunpack.c.l.b16 %v1240
    %v1276 = vunpack.c.h.b16 %v1240
    %v1277 = vunpack.c.l.b16 %v1241
    %v1278 = vunpack.c.h.b16 %v1241
    %v1279 = vunpack.c.l.b16 %v1242
    %v1280 = vunpack.c.h.b16 %v1242
    %v1281 = vunpack.c.l.b16 %v1243
    %v1282 = vunpack.c.h.b16 %v1243
    %v1283 = vunpack.c.l.b16 %v1244
    %v1284 = vunpack.c.h.b16 %v1244
    %v1285 = vunpack.c.l.b16 %v1245
    %v1286 = vunpack.c.h.b16 %v1245
    %v1287 = vunpack.c.l.b16 %v1246
    %v1288 = vunpack.c.h.b16 %v1246
    %v1289 = vunpack.c.l.b16 %v1247
    %v1290 = vunpack.c.h.b16 %v1247
    %v1291 = vunpack.c.l.b16 %v1248
    %v1292 = vunpack.c.h.b16 %v1248
    %v1293 = vunpack.c.l.b16 %v1249
    %v1294 = vunpack.c.h.b16 %v1249
    %v1295 = vunpack.c.l.b16 %v1250
    %v1296 = vunpack.c.h.b16 %v1250
    %v1297 = vunpack.c.l.b16 %v1251
    %v1298 = vunpack.c.h.b16 %v1251
    %v1299 = vunpack.c.l.b16 %v1252
    %v1300 = vunpack.c.h.b16 %v1252
    %v1301 = vpack.c.b16 %v1271, %v1269
    %v1302 = vpack.c.b16 %v1272, %v1270
    %v1303 = vpack.c.b16 %v1275, %v1273
    %v1304 = vpack.c.b16 %v1276, %v1274
    %v1305 = vpack.c.b16 %v1279, %v1277
    %v1306 = vpack.c.b16 %v1280, %v1278
    %v1307 = vpack.c.b16 %v1283, %v1281
    %v1308 = vpack.c.b16 %v1284, %v1282
    %v1309 = vpack.c.b16 %v1287, %v1285
    %v1310 = vpack.c.b16 %v1288, %v1286
    %v1311 = vpack.c.b16 %v1291, %v1289
    %v1312 = vpack.c.b16 %v1292, %v1290
    %v1313 = vpack.c.b16 %v1295, %v1293
    %v1314 = vpack.c.b16 %v1296, %v1294
    %v1315 = vpack.c.b16 %v1299, %v1297
    %v1316 = vpack.c.b16 %v1300, %v1298
    %1333 = vmatprep.subr.bf16.mxu0 %v287
    %1334 = vmatpush1.bf16.msra.mxu0 %v286
    %1335 = vmatprep.subr.bf16.mxu0 %v285
    %1336 = vmatpush1.bf16.msra.mxu0 %v284
    %1337 = vmatprep.subr.bf16.mxu0 %v283
    %1338 = vmatpush1.bf16.msra.mxu0 %v282
    %1339 = vmatprep.subr.bf16.mxu0 %v281
    %1340 = vmatpush1.bf16.msra.mxu0 %v280
    %1341 = vmatprep.subr.bf16.mxu0 %v279
    %1342 = vmatpush1.bf16.msra.mxu0 %v278
    %1343 = vmatprep.subr.bf16.mxu0 %v277
    %1344 = vmatpush1.bf16.msra.mxu0 %v276
    %1345 = vmatprep.subr.bf16.mxu0 %v275
    %1346 = vmatpush1.bf16.msra.mxu0 %v274
    %1347 = vmatprep.subr.bf16.mxu0 %v273
    %1348 = vmatpush1.bf16.msra.mxu0 %v272
    %1349 = vmatprep.subr.bf16.mxu0 %v303
    %1350 = vmatpush2.bf16.msra.mxu0 %v302
    %1351 = vmatprep.subr.bf16.mxu0 %v301
    %1352 = vmatpush2.bf16.msra.mxu0 %v300
    %1353 = vmatprep.subr.bf16.mxu0 %v299
    %1354 = vmatpush2.bf16.msra.mxu0 %v298
    %1355 = vmatprep.subr.bf16.mxu0 %v297
    %1356 = vmatpush2.bf16.msra.mxu0 %v296
    %1357 = vmatprep.subr.bf16.mxu0 %v295
    %1358 = vmatpush2.bf16.msra.mxu0 %v294
    %1359 = vmatprep.subr.bf16.mxu0 %v293
    %1360 = vmatpush2.bf16.msra.mxu0 %v292
    %1361 = vmatprep.subr.bf16.mxu0 %v291
    %1362 = vmatpush2.bf16.msra.mxu0 %v290
    %1363 = vmatprep.subr.bf16.mxu0 %v289
    %1364 = vmatpush2.bf16.msra.mxu0 %v288
    %1365 = vmatprep.mubr.bf16.mxu0 %v1302
    %1366 = vmatmul.mubr.bf16.gmra.mxu0 %v1301
    %v1367 = vpop.f32.mrf.mxu0
    %v1368 = vadd.f32 0.0, %v1367
    %v1369 = vpop.f32.mrf.mxu0
    %v1370 = vadd.f32 0.0, %v1369
    %v1371 = vpop.f32.mrf.mxu0
    %v1372 = vadd.f32 0.0, %v1371
    %v1373 = vpop.f32.mrf.mxu0
    %v1374 = vadd.f32 0.0, %v1373
    %1375 = vmatprep.mubr.bf16.mxu0 %v1304
    %1376 = vmatmul.mubr.bf16.gmra.mxu0 %v1303
    %v1377 = vpop.f32.mrf.mxu0
    %v1378 = vadd.f32 0.0, %v1377
    %v1379 = vpop.f32.mrf.mxu0
    %v1380 = vadd.f32 0.0, %v1379
    %v1381 = vpop.f32.mrf.mxu0
    %v1382 = vadd.f32 0.0, %v1381
    %v1383 = vpop.f32.mrf.mxu0
    %v1384 = vadd.f32 0.0, %v1383
    %1385 = vmatprep.mubr.bf16.mxu0 %v1306
    %1386 = vmatmul.mubr.bf16.gmra.mxu0 %v1305
    %v1387 = vpop.f32.mrf.mxu0
    %v1388 = vadd.f32 0.0, %v1387
    %v1389 = vpop.f32.mrf.mxu0
    %v1390 = vadd.f32 0.0, %v1389
    %v1391 = vpop.f32.mrf.mxu0
    %v1392 = vadd.f32 0.0, %v1391
    %v1393 = vpop.f32.mrf.mxu0
    %v1394 = vadd.f32 0.0, %v1393
    %1395 = vmatprep.mubr.bf16.mxu0 %v1308
    %1396 = vmatmul.mubr.bf16.gmra.mxu0 %v1307
    %v1397 = vpop.f32.mrf.mxu0
    %v1398 = vadd.f32 0.0, %v1397
    %v1399 = vpop.f32.mrf.mxu0
    %v1400 = vadd.f32 0.0, %v1399
    %v1401 = vpop.f32.mrf.mxu0
    %v1402 = vadd.f32 0.0, %v1401
    %v1403 = vpop.f32.mrf.mxu0
    %v1404 = vadd.f32 0.0, %v1403
    %1405 = vmatprep.mubr.bf16.mxu0 %v1310
    %1406 = vmatmul.mubr.bf16.gmra.mxu0 %v1309
    %v1407 = vpop.f32.mrf.mxu0
    %v1408 = vadd.f32 0.0, %v1407
    %v1409 = vpop.f32.mrf.mxu0
    %v1410 = vadd.f32 0.0, %v1409
    %v1411 = vpop.f32.mrf.mxu0
    %v1412 = vadd.f32 0.0, %v1411
    %v1413 = vpop.f32.mrf.mxu0
    %v1414 = vadd.f32 0.0, %v1413
    %1415 = vmatprep.mubr.bf16.mxu0 %v1312
    %1416 = vmatmul.mubr.bf16.gmra.mxu0 %v1311
    %v1417 = vpop.f32.mrf.mxu0
    %v1418 = vadd.f32 0.0, %v1417
    %v1419 = vpop.f32.mrf.mxu0
    %v1420 = vadd.f32 0.0, %v1419
    %v1421 = vpop.f32.mrf.mxu0
    %v1422 = vadd.f32 0.0, %v1421
    %v1423 = vpop.f32.mrf.mxu0
    %v1424 = vadd.f32 0.0, %v1423
    %1425 = vmatprep.mubr.bf16.mxu0 %v1314
    %1426 = vmatmul.mubr.bf16.gmra.mxu0 %v1313
    %v1427 = vpop.f32.mrf.mxu0
    %v1428 = vadd.f32 0.0, %v1427
    %v1429 = vpop.f32.mrf.mxu0
    %v1430 = vadd.f32 0.0, %v1429
    %v1431 = vpop.f32.mrf.mxu0
    %v1432 = vadd.f32 0.0, %v1431
    %v1433 = vpop.f32.mrf.mxu0
    %v1434 = vadd.f32 0.0, %v1433
    %1435 = vmatprep.mubr.bf16.mxu0 %v1316
    %1436 = vmatmul.mubr.bf16.gmra.mxu0 %v1315
    %v1437 = vpop.f32.mrf.mxu0
    %v1438 = vadd.f32 0.0, %v1437
    %v1439 = vpop.f32.mrf.mxu0
    %v1440 = vadd.f32 0.0, %v1439
    %v1441 = vpop.f32.mrf.mxu0
    %v1442 = vadd.f32 0.0, %v1441
    %v1443 = vpop.f32.mrf.mxu0
    %v1444 = vadd.f32 0.0, %v1443
    %1445 = vdwg.mxu0
    %v1446 = vmax.f32 %v1368, 0.0
    %v1447 = vmax.f32 %v1370, 0.0
    %v1448 = vmax.f32 %v1372, 0.0
    %v1449 = vmax.f32 %v1374, 0.0
    %v1450 = vmax.f32 %v1378, 0.0
    %v1451 = vmax.f32 %v1380, 0.0
    %v1452 = vmax.f32 %v1382, 0.0
    %v1453 = vmax.f32 %v1384, 0.0
    %v1454 = vmax.f32 %v1388, 0.0
    %v1455 = vmax.f32 %v1390, 0.0
    %v1456 = vmax.f32 %v1392, 0.0
    %v1457 = vmax.f32 %v1394, 0.0
    %v1458 = vmax.f32 %v1398, 0.0
    %v1459 = vmax.f32 %v1400, 0.0
    %v1460 = vmax.f32 %v1402, 0.0
    %v1461 = vmax.f32 %v1404, 0.0
    %v1462 = vmax.f32 %v1408, 0.0
    %v1463 = vmax.f32 %v1410, 0.0
    %v1464 = vmax.f32 %v1412, 0.0
    %v1465 = vmax.f32 %v1414, 0.0
    %v1466 = vmax.f32 %v1418, 0.0
    %v1467 = vmax.f32 %v1420, 0.0
    %v1468 = vmax.f32 %v1422, 0.0
    %v1469 = vmax.f32 %v1424, 0.0
    %v1470 = vmax.f32 %v1428, 0.0
    %v1471 = vmax.f32 %v1430, 0.0
    %v1472 = vmax.f32 %v1432, 0.0
    %v1473 = vmax.f32 %v1434, 0.0
    %v1474 = vmax.f32 %v1438, 0.0
    %v1475 = vmax.f32 %v1440, 0.0
    %v1476 = vmax.f32 %v1442, 0.0
    %v1477 = vmax.f32 %v1444, 0.0
    %v1478 = vpack.c.bf16 %v1448, %v1446
    %v1479 = vpack.c.bf16 %v1449, %v1447
    %v1480 = vpack.c.bf16 %v1452, %v1450
    %v1481 = vpack.c.bf16 %v1453, %v1451
    %v1482 = vpack.c.bf16 %v1456, %v1454
    %v1483 = vpack.c.bf16 %v1457, %v1455
    %v1484 = vpack.c.bf16 %v1460, %v1458
    %v1485 = vpack.c.bf16 %v1461, %v1459
    %v1486 = vpack.c.bf16 %v1464, %v1462
    %v1487 = vpack.c.bf16 %v1465, %v1463
    %v1488 = vpack.c.bf16 %v1468, %v1466
    %v1489 = vpack.c.bf16 %v1469, %v1467
    %v1490 = vpack.c.bf16 %v1472, %v1470
    %v1491 = vpack.c.bf16 %v1473, %v1471
    %v1492 = vpack.c.bf16 %v1476, %v1474
    %v1493 = vpack.c.bf16 %v1477, %v1475
    %s1494 = scalar_lea.vmem %s2, 256
    %v1495 = vld [vmem:[%s1494] sm:$0xf]
    %v1496 = vld [vmem:[%s1494 + $0x4] sm:$0xf]
    %v1497 = vld [vmem:[%s1494 + $0x8] sm:$0xf]
    %v1498 = vld [vmem:[%s1494 + $0xc] sm:$0xf]
    %v1499 = vld [vmem:[%s1494 + $0x10] sm:$0xf]
    %v1500 = vld [vmem:[%s1494 + $0x14] sm:$0xf]
    %v1501 = vld [vmem:[%s1494 + $0x18] sm:$0xf]
    %v1502 = vld [vmem:[%s1494 + $0x1c] sm:$0xf]
    %v1503 = vld [vmem:[%s1494 + $0x20] sm:$0xf]
    %v1504 = vld [vmem:[%s1494 + $0x24] sm:$0xf]
    %v1505 = vld [vmem:[%s1494 + $0x28] sm:$0xf]
    %v1506 = vld [vmem:[%s1494 + $0x2c] sm:$0xf]
    %v1507 = vld [vmem:[%s1494 + $0x30] sm:$0xf]
    %v1508 = vld [vmem:[%s1494 + $0x34] sm:$0xf]
    %v1509 = vld [vmem:[%s1494 + $0x38] sm:$0xf]
    %v1510 = vld [vmem:[%s1494 + $0x3c] sm:$0xf]
    %v1511 = vld [vmem:[%s1494 + $0x40] sm:$0xf]
    %v1512 = vld [vmem:[%s1494 + $0x44] sm:$0xf]
    %v1513 = vld [vmem:[%s1494 + $0x48] sm:$0xf]
    %v1514 = vld [vmem:[%s1494 + $0x4c] sm:$0xf]
    %v1515 = vld [vmem:[%s1494 + $0x50] sm:$0xf]
    %v1516 = vld [vmem:[%s1494 + $0x54] sm:$0xf]
    %v1517 = vld [vmem:[%s1494 + $0x58] sm:$0xf]
    %v1518 = vld [vmem:[%s1494 + $0x5c] sm:$0xf]
    %v1519 = vld [vmem:[%s1494 + $0x60] sm:$0xf]
    %v1520 = vld [vmem:[%s1494 + $0x64] sm:$0xf]
    %v1521 = vld [vmem:[%s1494 + $0x68] sm:$0xf]
    %v1522 = vld [vmem:[%s1494 + $0x6c] sm:$0xf]
    %v1523 = vld [vmem:[%s1494 + $0x70] sm:$0xf]
    %v1524 = vld [vmem:[%s1494 + $0x74] sm:$0xf]
    %v1525 = vld [vmem:[%s1494 + $0x78] sm:$0xf]
    %v1526 = vld [vmem:[%s1494 + $0x7c] sm:$0xf]
    %v1559 = vunpack.c.l.b16 %v1495
    %v1560 = vunpack.c.l.b16 %v1496
    %v1561 = vunpack.c.l.b16 %v1497
    %v1562 = vunpack.c.l.b16 %v1498
    %v1563 = vunpack.c.l.b16 %v1499
    %v1564 = vunpack.c.l.b16 %v1500
    %v1565 = vunpack.c.l.b16 %v1501
    %v1566 = vunpack.c.l.b16 %v1502
    %v1567 = vunpack.c.l.b16 %v1503
    %v1568 = vunpack.c.l.b16 %v1504
    %v1569 = vunpack.c.l.b16 %v1505
    %v1570 = vunpack.c.l.b16 %v1506
    %v1571 = vunpack.c.l.b16 %v1507
    %v1572 = vunpack.c.l.b16 %v1508
    %v1573 = vunpack.c.l.b16 %v1509
    %v1574 = vunpack.c.l.b16 %v1510
    %v1575 = vunpack.c.l.b16 %v1511
    %v1576 = vunpack.c.l.b16 %v1512
    %v1577 = vunpack.c.l.b16 %v1513
    %v1578 = vunpack.c.l.b16 %v1514
    %v1579 = vunpack.c.l.b16 %v1515
    %v1580 = vunpack.c.l.b16 %v1516
    %v1581 = vunpack.c.l.b16 %v1517
    %v1582 = vunpack.c.l.b16 %v1518
    %v1583 = vunpack.c.l.b16 %v1519
    %v1584 = vunpack.c.l.b16 %v1520
    %v1585 = vunpack.c.l.b16 %v1521
    %v1586 = vunpack.c.l.b16 %v1522
    %v1587 = vunpack.c.l.b16 %v1523
    %v1588 = vunpack.c.l.b16 %v1524
    %v1589 = vunpack.c.l.b16 %v1525
    %v1590 = vunpack.c.l.b16 %v1526
    %v1591 = vpack.c.b16 %v1560, %v1559
    %v1592 = vpack.c.b16 %v1562, %v1561
    %v1593 = vpack.c.b16 %v1564, %v1563
    %v1594 = vpack.c.b16 %v1566, %v1565
    %v1595 = vpack.c.b16 %v1568, %v1567
    %v1596 = vpack.c.b16 %v1570, %v1569
    %v1597 = vpack.c.b16 %v1572, %v1571
    %v1598 = vpack.c.b16 %v1574, %v1573
    %v1599 = vpack.c.b16 %v1576, %v1575
    %v1600 = vpack.c.b16 %v1578, %v1577
    %v1601 = vpack.c.b16 %v1580, %v1579
    %v1602 = vpack.c.b16 %v1582, %v1581
    %v1603 = vpack.c.b16 %v1584, %v1583
    %v1604 = vpack.c.b16 %v1586, %v1585
    %v1605 = vpack.c.b16 %v1588, %v1587
    %v1606 = vpack.c.b16 %v1590, %v1589
    %1623 = vmatprep.subr.bf16.mxu0 0
    %1624 = vmatpush1.bf16.msra.mxu0 %v1598
    %1625 = vmatprep.subr.bf16.mxu0 0
    %1626 = vmatpush1.bf16.msra.mxu0 %v1597
    %1627 = vmatprep.subr.bf16.mxu0 0
    %1628 = vmatpush1.bf16.msra.mxu0 %v1596
    %1629 = vmatprep.subr.bf16.mxu0 0
    %1630 = vmatpush1.bf16.msra.mxu0 %v1595
    %1631 = vmatprep.subr.bf16.mxu0 0
    %1632 = vmatpush1.bf16.msra.mxu0 %v1594
    %1633 = vmatprep.subr.bf16.mxu0 0
    %1634 = vmatpush1.bf16.msra.mxu0 %v1593
    %1635 = vmatprep.subr.bf16.mxu0 0
    %1636 = vmatpush1.bf16.msra.mxu0 %v1592
    %1637 = vmatprep.subr.bf16.mxu0 0
    %1638 = vmatpush1.bf16.msra.mxu0 %v1591
    %1639 = vmatprep.subr.bf16.mxu0 0
    %1640 = vmatpush2.bf16.msra.mxu0 %v1606
    %1641 = vmatprep.subr.bf16.mxu0 0
    %1642 = vmatpush2.bf16.msra.mxu0 %v1605
    %1643 = vmatprep.subr.bf16.mxu0 0
    %1644 = vmatpush2.bf16.msra.mxu0 %v1604
    %1645 = vmatprep.subr.bf16.mxu0 0
    %1646 = vmatpush2.bf16.msra.mxu0 %v1603
    %1647 = vmatprep.subr.bf16.mxu0 0
    %1648 = vmatpush2.bf16.msra.mxu0 %v1602
    %1649 = vmatprep.subr.bf16.mxu0 0
    %1650 = vmatpush2.bf16.msra.mxu0 %v1601
    %1651 = vmatprep.subr.bf16.mxu0 0
    %1652 = vmatpush2.bf16.msra.mxu0 %v1600
    %1653 = vmatprep.subr.bf16.mxu0 0
    %1654 = vmatpush2.bf16.msra.mxu0 %v1599
    %1655 = vmatprep.mubr.bf16.mxu0 %v1479
    %1656 = vmatmul.mubr.bf16.gmra.mxu0 %v1478
    %v1657 = vpop.f32.mrf.mxu0
    %v1658 = vadd.f32 0.0, %v1657
    %v1659 = vpop.f32.mrf.mxu0
    %v1660 = vpop.f32.mrf.mxu0
    %v1661 = vadd.f32 0.0, %v1660
    %v1662 = vpop.f32.mrf.mxu0
    %1663 = vmatprep.mubr.bf16.mxu0 %v1481
    %1664 = vmatmul.mubr.bf16.gmra.mxu0 %v1480
    %v1665 = vpop.f32.mrf.mxu0
    %v1666 = vadd.f32 0.0, %v1665
    %v1667 = vpop.f32.mrf.mxu0
    %v1668 = vpop.f32.mrf.mxu0
    %v1669 = vadd.f32 0.0, %v1668
    %v1670 = vpop.f32.mrf.mxu0
    %1671 = vmatprep.mubr.bf16.mxu0 %v1483
    %1672 = vmatmul.mubr.bf16.gmra.mxu0 %v1482
    %v1673 = vpop.f32.mrf.mxu0
    %v1674 = vadd.f32 0.0, %v1673
    %v1675 = vpop.f32.mrf.mxu0
    %v1676 = vpop.f32.mrf.mxu0
    %v1677 = vadd.f32 0.0, %v1676
    %v1678 = vpop.f32.mrf.mxu0
    %1679 = vmatprep.mubr.bf16.mxu0 %v1485
    %1680 = vmatmul.mubr.bf16.gmra.mxu0 %v1484
    %v1681 = vpop.f32.mrf.mxu0
    %v1682 = vadd.f32 0.0, %v1681
    %v1683 = vpop.f32.mrf.mxu0
    %v1684 = vpop.f32.mrf.mxu0
    %v1685 = vadd.f32 0.0, %v1684
    %v1686 = vpop.f32.mrf.mxu0
    %1687 = vmatprep.mubr.bf16.mxu0 %v1487
    %1688 = vmatmul.mubr.bf16.gmra.mxu0 %v1486
    %v1689 = vpop.f32.mrf.mxu0
    %v1690 = vadd.f32 0.0, %v1689
    %v1691 = vpop.f32.mrf.mxu0
    %v1692 = vpop.f32.mrf.mxu0
    %v1693 = vadd.f32 0.0, %v1692
    %v1694 = vpop.f32.mrf.mxu0
    %1695 = vmatprep.mubr.bf16.mxu0 %v1489
    %1696 = vmatmul.mubr.bf16.gmra.mxu0 %v1488
    %v1697 = vpop.f32.mrf.mxu0
    %v1698 = vadd.f32 0.0, %v1697
    %v1699 = vpop.f32.mrf.mxu0
    %v1700 = vpop.f32.mrf.mxu0
    %v1701 = vadd.f32 0.0, %v1700
    %v1702 = vpop.f32.mrf.mxu0
    %1703 = vmatprep.mubr.bf16.mxu0 %v1491
    %1704 = vmatmul.mubr.bf16.gmra.mxu0 %v1490
    %v1705 = vpop.f32.mrf.mxu0
    %v1706 = vadd.f32 0.0, %v1705
    %v1707 = vpop.f32.mrf.mxu0
    %v1708 = vpop.f32.mrf.mxu0
    %v1709 = vadd.f32 0.0, %v1708
    %v1710 = vpop.f32.mrf.mxu0
    %1711 = vmatprep.mubr.bf16.mxu0 %v1493
    %1712 = vmatmul.mubr.bf16.gmra.mxu0 %v1492
    %v1713 = vpop.f32.mrf.mxu0
    %v1714 = vadd.f32 0.0, %v1713
    %v1715 = vpop.f32.mrf.mxu0
    %v1716 = vpop.f32.mrf.mxu0
    %v1717 = vadd.f32 0.0, %v1716
    %v1718 = vpop.f32.mrf.mxu0
    %1719 = vdwg.mxu0
    %v1720 = vadd.f32 %v1221, %v1658
    %v1721 = vadd.f32 %v1222, %v1661
    %v1722 = vadd.f32 %v1223, %v1666
    %v1723 = vadd.f32 %v1224, %v1669
    %v1724 = vadd.f32 %v1225, %v1674
    %v1725 = vadd.f32 %v1226, %v1677
    %v1726 = vadd.f32 %v1227, %v1682
    %v1727 = vadd.f32 %v1228, %v1685
    %v1728 = vadd.f32 %v1229, %v1690
    %v1729 = vadd.f32 %v1230, %v1693
    %v1730 = vadd.f32 %v1231, %v1698
    %v1731 = vadd.f32 %v1232, %v1701
    %v1732 = vadd.f32 %v1233, %v1706
    %v1733 = vadd.f32 %v1234, %v1709
    %v1734 = vadd.f32 %v1235, %v1714
    %v1735 = vadd.f32 %v1236, %v1717
    %v1736 = vld [vmem:[%s0 + $0x18] sm:$0xff]
    %v1737 = vld [vmem:[%s0 + $0x48] sm:$0xff]
    %v1738 = vld [vmem:[%s0 + $0x78] sm:$0xff]
    %v1739 = vld [vmem:[%s0 + $0xa8] sm:$0xff]
    %v1740 = vld [vmem:[%s0 + $0xd8] sm:$0xff]
    %v1741 = vld [vmem:[%s0 + $0x108] sm:$0xff]
    %v1742 = vld [vmem:[%s0 + $0x138] sm:$0xff]
    %v1743 = vld [vmem:[%s0 + $0x168] sm:$0xff]
    %v1744 = vld [vmem:[%s0 + $0x198] sm:$0xff]
    %v1745 = vld [vmem:[%s0 + $0x1c8] sm:$0xff]
    %v1746 = vld [vmem:[%s0 + $0x1f8] sm:$0xff]
    %v1747 = vld [vmem:[%s0 + $0x228] sm:$0xff]
    %v1748 = vld [vmem:[%s0 + $0x258] sm:$0xff]
    %v1749 = vld [vmem:[%s0 + $0x288] sm:$0xff]
    %v1750 = vld [vmem:[%s0 + $0x2b8] sm:$0xff]
    %v1751 = vld [vmem:[%s0 + $0x2e8] sm:$0xff]
    %v1768 = vunpack.c.l.b16 %v1736
    %v1769 = vunpack.c.h.b16 %v1736
    %v1770 = vunpack.c.l.b16 %v1737
    %v1771 = vunpack.c.h.b16 %v1737
    %v1772 = vunpack.c.l.b16 %v1738
    %v1773 = vunpack.c.h.b16 %v1738
    %v1774 = vunpack.c.l.b16 %v1739
    %v1775 = vunpack.c.h.b16 %v1739
    %v1776 = vunpack.c.l.b16 %v1740
    %v1777 = vunpack.c.h.b16 %v1740
    %v1778 = vunpack.c.l.b16 %v1741
    %v1779 = vunpack.c.h.b16 %v1741
    %v1780 = vunpack.c.l.b16 %v1742
    %v1781 = vunpack.c.h.b16 %v1742
    %v1782 = vunpack.c.l.b16 %v1743
    %v1783 = vunpack.c.h.b16 %v1743
    %v1784 = vunpack.c.l.b16 %v1744
    %v1785 = vunpack.c.h.b16 %v1744
    %v1786 = vunpack.c.l.b16 %v1745
    %v1787 = vunpack.c.h.b16 %v1745
    %v1788 = vunpack.c.l.b16 %v1746
    %v1789 = vunpack.c.h.b16 %v1746
    %v1790 = vunpack.c.l.b16 %v1747
    %v1791 = vunpack.c.h.b16 %v1747
    %v1792 = vunpack.c.l.b16 %v1748
    %v1793 = vunpack.c.h.b16 %v1748
    %v1794 = vunpack.c.l.b16 %v1749
    %v1795 = vunpack.c.h.b16 %v1749
    %v1796 = vunpack.c.l.b16 %v1750
    %v1797 = vunpack.c.h.b16 %v1750
    %v1798 = vunpack.c.l.b16 %v1751
    %v1799 = vunpack.c.h.b16 %v1751
    %v1800 = vpack.c.b16 %v1770, %v1768
    %v1801 = vpack.c.b16 %v1771, %v1769
    %v1802 = vpack.c.b16 %v1774, %v1772
    %v1803 = vpack.c.b16 %v1775, %v1773
    %v1804 = vpack.c.b16 %v1778, %v1776
    %v1805 = vpack.c.b16 %v1779, %v1777
    %v1806 = vpack.c.b16 %v1782, %v1780
    %v1807 = vpack.c.b16 %v1783, %v1781
    %v1808 = vpack.c.b16 %v1786, %v1784
    %v1809 = vpack.c.b16 %v1787, %v1785
    %v1810 = vpack.c.b16 %v1790, %v1788
    %v1811 = vpack.c.b16 %v1791, %v1789
    %v1812 = vpack.c.b16 %v1794, %v1792
    %v1813 = vpack.c.b16 %v1795, %v1793
    %v1814 = vpack.c.b16 %v1798, %v1796
    %v1815 = vpack.c.b16 %v1799, %v1797
    %1832 = vmatprep.subr.bf16.mxu0 %v287
    %1833 = vmatpush1.bf16.msra.mxu0 %v286
    %1834 = vmatprep.subr.bf16.mxu0 %v285
    %1835 = vmatpush1.bf16.msra.mxu0 %v284
    %1836 = vmatprep.subr.bf16.mxu0 %v283
    %1837 = vmatpush1.bf16.msra.mxu0 %v282
    %1838 = vmatprep.subr.bf16.mxu0 %v281
    %1839 = vmatpush1.bf16.msra.mxu0 %v280
    %1840 = vmatprep.subr.bf16.mxu0 %v279
    %1841 = vmatpush1.bf16.msra.mxu0 %v278
    %1842 = vmatprep.subr.bf16.mxu0 %v277
    %1843 = vmatpush1.bf16.msra.mxu0 %v276
    %1844 = vmatprep.subr.bf16.mxu0 %v275
    %1845 = vmatpush1.bf16.msra.mxu0 %v274
    %1846 = vmatprep.subr.bf16.mxu0 %v273
    %1847 = vmatpush1.bf16.msra.mxu0 %v272
    %1848 = vmatprep.subr.bf16.mxu0 %v303
    %1849 = vmatpush2.bf16.msra.mxu0 %v302
    %1850 = vmatprep.subr.bf16.mxu0 %v301
    %1851 = vmatpush2.bf16.msra.mxu0 %v300
    %1852 = vmatprep.subr.bf16.mxu0 %v299
    %1853 = vmatpush2.bf16.msra.mxu0 %v298
    %1854 = vmatprep.subr.bf16.mxu0 %v297
    %1855 = vmatpush2.bf16.msra.mxu0 %v296
    %1856 = vmatprep.subr.bf16.mxu0 %v295
    %1857 = vmatpush2.bf16.msra.mxu0 %v294
    %1858 = vmatprep.subr.bf16.mxu0 %v293
    %1859 = vmatpush2.bf16.msra.mxu0 %v292
    %1860 = vmatprep.subr.bf16.mxu0 %v291
    %1861 = vmatpush2.bf16.msra.mxu0 %v290
    %1862 = vmatprep.subr.bf16.mxu0 %v289
    %1863 = vmatpush2.bf16.msra.mxu0 %v288
    %1864 = vmatprep.mubr.bf16.mxu0 %v1801
    %1865 = vmatmul.mubr.bf16.gmra.mxu0 %v1800
    %v1866 = vpop.f32.mrf.mxu0
    %v1867 = vadd.f32 0.0, %v1866
    %v1868 = vpop.f32.mrf.mxu0
    %v1869 = vadd.f32 0.0, %v1868
    %v1870 = vpop.f32.mrf.mxu0
    %v1871 = vadd.f32 0.0, %v1870
    %v1872 = vpop.f32.mrf.mxu0
    %v1873 = vadd.f32 0.0, %v1872
    %1874 = vmatprep.mubr.bf16.mxu0 %v1803
    %1875 = vmatmul.mubr.bf16.gmra.mxu0 %v1802
    %v1876 = vpop.f32.mrf.mxu0
    %v1877 = vadd.f32 0.0, %v1876
    %v1878 = vpop.f32.mrf.mxu0
    %v1879 = vadd.f32 0.0, %v1878
    %v1880 = vpop.f32.mrf.mxu0
    %v1881 = vadd.f32 0.0, %v1880
    %v1882 = vpop.f32.mrf.mxu0
    %v1883 = vadd.f32 0.0, %v1882
    %1884 = vmatprep.mubr.bf16.mxu0 %v1805
    %1885 = vmatmul.mubr.bf16.gmra.mxu0 %v1804
    %v1886 = vpop.f32.mrf.mxu0
    %v1887 = vadd.f32 0.0, %v1886
    %v1888 = vpop.f32.mrf.mxu0
    %v1889 = vadd.f32 0.0, %v1888
    %v1890 = vpop.f32.mrf.mxu0
    %v1891 = vadd.f32 0.0, %v1890
    %v1892 = vpop.f32.mrf.mxu0
    %v1893 = vadd.f32 0.0, %v1892
    %1894 = vmatprep.mubr.bf16.mxu0 %v1807
    %1895 = vmatmul.mubr.bf16.gmra.mxu0 %v1806
    %v1896 = vpop.f32.mrf.mxu0
    %v1897 = vadd.f32 0.0, %v1896
    %v1898 = vpop.f32.mrf.mxu0
    %v1899 = vadd.f32 0.0, %v1898
    %v1900 = vpop.f32.mrf.mxu0
    %v1901 = vadd.f32 0.0, %v1900
    %v1902 = vpop.f32.mrf.mxu0
    %v1903 = vadd.f32 0.0, %v1902
    %1904 = vmatprep.mubr.bf16.mxu0 %v1809
    %1905 = vmatmul.mubr.bf16.gmra.mxu0 %v1808
    %v1906 = vpop.f32.mrf.mxu0
    %v1907 = vadd.f32 0.0, %v1906
    %v1908 = vpop.f32.mrf.mxu0
    %v1909 = vadd.f32 0.0, %v1908
    %v1910 = vpop.f32.mrf.mxu0
    %v1911 = vadd.f32 0.0, %v1910
    %v1912 = vpop.f32.mrf.mxu0
    %v1913 = vadd.f32 0.0, %v1912
    %1914 = vmatprep.mubr.bf16.mxu0 %v1811
    %1915 = vmatmul.mubr.bf16.gmra.mxu0 %v1810
    %v1916 = vpop.f32.mrf.mxu0
    %v1917 = vadd.f32 0.0, %v1916
    %v1918 = vpop.f32.mrf.mxu0
    %v1919 = vadd.f32 0.0, %v1918
    %v1920 = vpop.f32.mrf.mxu0
    %v1921 = vadd.f32 0.0, %v1920
    %v1922 = vpop.f32.mrf.mxu0
    %v1923 = vadd.f32 0.0, %v1922
    %1924 = vmatprep.mubr.bf16.mxu0 %v1813
    %1925 = vmatmul.mubr.bf16.gmra.mxu0 %v1812
    %v1926 = vpop.f32.mrf.mxu0
    %v1927 = vadd.f32 0.0, %v1926
    %v1928 = vpop.f32.mrf.mxu0
    %v1929 = vadd.f32 0.0, %v1928
    %v1930 = vpop.f32.mrf.mxu0
    %v1931 = vadd.f32 0.0, %v1930
    %v1932 = vpop.f32.mrf.mxu0
    %v1933 = vadd.f32 0.0, %v1932
    %1934 = vmatprep.mubr.bf16.mxu0 %v1815
    %1935 = vmatmul.mubr.bf16.gmra.mxu0 %v1814
    %v1936 = vpop.f32.mrf.mxu0
    %v1937 = vadd.f32 0.0, %v1936
    %v1938 = vpop.f32.mrf.mxu0
    %v1939 = vadd.f32 0.0, %v1938
    %v1940 = vpop.f32.mrf.mxu0
    %v1941 = vadd.f32 0.0, %v1940
    %v1942 = vpop.f32.mrf.mxu0
    %v1943 = vadd.f32 0.0, %v1942
    %1944 = vdwg.mxu0
    %v1945 = vmax.f32 %v1867, 0.0
    %v1946 = vmax.f32 %v1869, 0.0
    %v1947 = vmax.f32 %v1871, 0.0
    %v1948 = vmax.f32 %v1873, 0.0
    %v1949 = vmax.f32 %v1877, 0.0
    %v1950 = vmax.f32 %v1879, 0.0
    %v1951 = vmax.f32 %v1881, 0.0
    %v1952 = vmax.f32 %v1883, 0.0
    %v1953 = vmax.f32 %v1887, 0.0
    %v1954 = vmax.f32 %v1889, 0.0
    %v1955 = vmax.f32 %v1891, 0.0
    %v1956 = vmax.f32 %v1893, 0.0
    %v1957 = vmax.f32 %v1897, 0.0
    %v1958 = vmax.f32 %v1899, 0.0
    %v1959 = vmax.f32 %v1901, 0.0
    %v1960 = vmax.f32 %v1903, 0.0
    %v1961 = vmax.f32 %v1907, 0.0
    %v1962 = vmax.f32 %v1909, 0.0
    %v1963 = vmax.f32 %v1911, 0.0
    %v1964 = vmax.f32 %v1913, 0.0
    %v1965 = vmax.f32 %v1917, 0.0
    %v1966 = vmax.f32 %v1919, 0.0
    %v1967 = vmax.f32 %v1921, 0.0
    %v1968 = vmax.f32 %v1923, 0.0
    %v1969 = vmax.f32 %v1927, 0.0
    %v1970 = vmax.f32 %v1929, 0.0
    %v1971 = vmax.f32 %v1931, 0.0
    %v1972 = vmax.f32 %v1933, 0.0
    %v1973 = vmax.f32 %v1937, 0.0
    %v1974 = vmax.f32 %v1939, 0.0
    %v1975 = vmax.f32 %v1941, 0.0
    %v1976 = vmax.f32 %v1943, 0.0
    %v1977 = vpack.c.bf16 %v1947, %v1945
    %v1978 = vpack.c.bf16 %v1948, %v1946
    %v1979 = vpack.c.bf16 %v1951, %v1949
    %v1980 = vpack.c.bf16 %v1952, %v1950
    %v1981 = vpack.c.bf16 %v1955, %v1953
    %v1982 = vpack.c.bf16 %v1956, %v1954
    %v1983 = vpack.c.bf16 %v1959, %v1957
    %v1984 = vpack.c.bf16 %v1960, %v1958
    %v1985 = vpack.c.bf16 %v1963, %v1961
    %v1986 = vpack.c.bf16 %v1964, %v1962
    %v1987 = vpack.c.bf16 %v1967, %v1965
    %v1988 = vpack.c.bf16 %v1968, %v1966
    %v1989 = vpack.c.bf16 %v1971, %v1969
    %v1990 = vpack.c.bf16 %v1972, %v1970
    %v1991 = vpack.c.bf16 %v1975, %v1973
    %v1992 = vpack.c.bf16 %v1976, %v1974
    %s1993 = scalar_lea.vmem %s2, 384
    %v1994 = vld [vmem:[%s1993] sm:$0xf]
    %v1995 = vld [vmem:[%s1993 + $0x4] sm:$0xf]
    %v1996 = vld [vmem:[%s1993 + $0x8] sm:$0xf]
    %v1997 = vld [vmem:[%s1993 + $0xc] sm:$0xf]
    %v1998 = vld [vmem:[%s1993 + $0x10] sm:$0xf]
    %v1999 = vld [vmem:[%s1993 + $0x14] sm:$0xf]
    %v2000 = vld [vmem:[%s1993 + $0x18] sm:$0xf]
    %v2001 = vld [vmem:[%s1993 + $0x1c] sm:$0xf]
    %v2002 = vld [vmem:[%s1993 + $0x20] sm:$0xf]
    %v2003 = vld [vmem:[%s1993 + $0x24] sm:$0xf]
    %v2004 = vld [vmem:[%s1993 + $0x28] sm:$0xf]
    %v2005 = vld [vmem:[%s1993 + $0x2c] sm:$0xf]
    %v2006 = vld [vmem:[%s1993 + $0x30] sm:$0xf]
    %v2007 = vld [vmem:[%s1993 + $0x34] sm:$0xf]
    %v2008 = vld [vmem:[%s1993 + $0x38] sm:$0xf]
    %v2009 = vld [vmem:[%s1993 + $0x3c] sm:$0xf]
    %v2010 = vld [vmem:[%s1993 + $0x40] sm:$0xf]
    %v2011 = vld [vmem:[%s1993 + $0x44] sm:$0xf]
    %v2012 = vld [vmem:[%s1993 + $0x48] sm:$0xf]
    %v2013 = vld [vmem:[%s1993 + $0x4c] sm:$0xf]
    %v2014 = vld [vmem:[%s1993 + $0x50] sm:$0xf]
    %v2015 = vld [vmem:[%s1993 + $0x54] sm:$0xf]
    %v2016 = vld [vmem:[%s1993 + $0x58] sm:$0xf]
    %v2017 = vld [vmem:[%s1993 + $0x5c] sm:$0xf]
    %v2018 = vld [vmem:[%s1993 + $0x60] sm:$0xf]
    %v2019 = vld [vmem:[%s1993 + $0x64] sm:$0xf]
    %v2020 = vld [vmem:[%s1993 + $0x68] sm:$0xf]
    %v2021 = vld [vmem:[%s1993 + $0x6c] sm:$0xf]
    %v2022 = vld [vmem:[%s1993 + $0x70] sm:$0xf]
    %v2023 = vld [vmem:[%s1993 + $0x74] sm:$0xf]
    %v2024 = vld [vmem:[%s1993 + $0x78] sm:$0xf]
    %v2025 = vld [vmem:[%s1993 + $0x7c] sm:$0xf]
    %v2058 = vunpack.c.l.b16 %v1994
    %v2059 = vunpack.c.l.b16 %v1995
    %v2060 = vunpack.c.l.b16 %v1996
    %v2061 = vunpack.c.l.b16 %v1997
    %v2062 = vunpack.c.l.b16 %v1998
    %v2063 = vunpack.c.l.b16 %v1999
    %v2064 = vunpack.c.l.b16 %v2000
    %v2065 = vunpack.c.l.b16 %v2001
    %v2066 = vunpack.c.l.b16 %v2002
    %v2067 = vunpack.c.l.b16 %v2003
    %v2068 = vunpack.c.l.b16 %v2004
    %v2069 = vunpack.c.l.b16 %v2005
    %v2070 = vunpack.c.l.b16 %v2006
    %v2071 = vunpack.c.l.b16 %v2007
    %v2072 = vunpack.c.l.b16 %v2008
    %v2073 = vunpack.c.l.b16 %v2009
    %v2074 = vunpack.c.l.b16 %v2010
    %v2075 = vunpack.c.l.b16 %v2011
    %v2076 = vunpack.c.l.b16 %v2012
    %v2077 = vunpack.c.l.b16 %v2013
    %v2078 = vunpack.c.l.b16 %v2014
    %v2079 = vunpack.c.l.b16 %v2015
    %v2080 = vunpack.c.l.b16 %v2016
    %v2081 = vunpack.c.l.b16 %v2017
    %v2082 = vunpack.c.l.b16 %v2018
    %v2083 = vunpack.c.l.b16 %v2019
    %v2084 = vunpack.c.l.b16 %v2020
    %v2085 = vunpack.c.l.b16 %v2021
    %v2086 = vunpack.c.l.b16 %v2022
    %v2087 = vunpack.c.l.b16 %v2023
    %v2088 = vunpack.c.l.b16 %v2024
    %v2089 = vunpack.c.l.b16 %v2025
    %v2090 = vpack.c.b16 %v2059, %v2058
    %v2091 = vpack.c.b16 %v2061, %v2060
    %v2092 = vpack.c.b16 %v2063, %v2062
    %v2093 = vpack.c.b16 %v2065, %v2064
    %v2094 = vpack.c.b16 %v2067, %v2066
    %v2095 = vpack.c.b16 %v2069, %v2068
    %v2096 = vpack.c.b16 %v2071, %v2070
    %v2097 = vpack.c.b16 %v2073, %v2072
    %v2098 = vpack.c.b16 %v2075, %v2074
    %v2099 = vpack.c.b16 %v2077, %v2076
    %v2100 = vpack.c.b16 %v2079, %v2078
    %v2101 = vpack.c.b16 %v2081, %v2080
    %v2102 = vpack.c.b16 %v2083, %v2082
    %v2103 = vpack.c.b16 %v2085, %v2084
    %v2104 = vpack.c.b16 %v2087, %v2086
    %v2105 = vpack.c.b16 %v2089, %v2088
    %2122 = vmatprep.subr.bf16.mxu0 0
    %2123 = vmatpush1.bf16.msra.mxu0 %v2097
    %2124 = vmatprep.subr.bf16.mxu0 0
    %2125 = vmatpush1.bf16.msra.mxu0 %v2096
    %2126 = vmatprep.subr.bf16.mxu0 0
    %2127 = vmatpush1.bf16.msra.mxu0 %v2095
    %2128 = vmatprep.subr.bf16.mxu0 0
    %2129 = vmatpush1.bf16.msra.mxu0 %v2094
    %2130 = vmatprep.subr.bf16.mxu0 0
    %2131 = vmatpush1.bf16.msra.mxu0 %v2093
    %2132 = vmatprep.subr.bf16.mxu0 0
    %2133 = vmatpush1.bf16.msra.mxu0 %v2092
    %2134 = vmatprep.subr.bf16.mxu0 0
    %2135 = vmatpush1.bf16.msra.mxu0 %v2091
    %2136 = vmatprep.subr.bf16.mxu0 0
    %2137 = vmatpush1.bf16.msra.mxu0 %v2090
    %2138 = vmatprep.subr.bf16.mxu0 0
    %2139 = vmatpush2.bf16.msra.mxu0 %v2105
    %2140 = vmatprep.subr.bf16.mxu0 0
    %2141 = vmatpush2.bf16.msra.mxu0 %v2104
    %2142 = vmatprep.subr.bf16.mxu0 0
    %2143 = vmatpush2.bf16.msra.mxu0 %v2103
    %2144 = vmatprep.subr.bf16.mxu0 0
    %2145 = vmatpush2.bf16.msra.mxu0 %v2102
    %2146 = vmatprep.subr.bf16.mxu0 0
    %2147 = vmatpush2.bf16.msra.mxu0 %v2101
    %2148 = vmatprep.subr.bf16.mxu0 0
    %2149 = vmatpush2.bf16.msra.mxu0 %v2100
    %2150 = vmatprep.subr.bf16.mxu0 0
    %2151 = vmatpush2.bf16.msra.mxu0 %v2099
    %2152 = vmatprep.subr.bf16.mxu0 0
    %2153 = vmatpush2.bf16.msra.mxu0 %v2098
    %2154 = vmatprep.mubr.bf16.mxu0 %v1978
    %2155 = vmatmul.mubr.bf16.gmra.mxu0 %v1977
    %v2156 = vpop.f32.mrf.mxu0
    %v2157 = vadd.f32 0.0, %v2156
    %v2158 = vpop.f32.mrf.mxu0
    %v2159 = vpop.f32.mrf.mxu0
    %v2160 = vadd.f32 0.0, %v2159
    %v2161 = vpop.f32.mrf.mxu0
    %2162 = vmatprep.mubr.bf16.mxu0 %v1980
    %2163 = vmatmul.mubr.bf16.gmra.mxu0 %v1979
    %v2164 = vpop.f32.mrf.mxu0
    %v2165 = vadd.f32 0.0, %v2164
    %v2166 = vpop.f32.mrf.mxu0
    %v2167 = vpop.f32.mrf.mxu0
    %v2168 = vadd.f32 0.0, %v2167
    %v2169 = vpop.f32.mrf.mxu0
    %2170 = vmatprep.mubr.bf16.mxu0 %v1982
    %2171 = vmatmul.mubr.bf16.gmra.mxu0 %v1981
    %v2172 = vpop.f32.mrf.mxu0
    %v2173 = vadd.f32 0.0, %v2172
    %v2174 = vpop.f32.mrf.mxu0
    %v2175 = vpop.f32.mrf.mxu0
    %v2176 = vadd.f32 0.0, %v2175
    %v2177 = vpop.f32.mrf.mxu0
    %2178 = vmatprep.mubr.bf16.mxu0 %v1984
    %2179 = vmatmul.mubr.bf16.gmra.mxu0 %v1983
    %v2180 = vpop.f32.mrf.mxu0
    %v2181 = vadd.f32 0.0, %v2180
    %v2182 = vpop.f32.mrf.mxu0
    %v2183 = vpop.f32.mrf.mxu0
    %v2184 = vadd.f32 0.0, %v2183
    %v2185 = vpop.f32.mrf.mxu0
    %2186 = vmatprep.mubr.bf16.mxu0 %v1986
    %2187 = vmatmul.mubr.bf16.gmra.mxu0 %v1985
    %v2188 = vpop.f32.mrf.mxu0
    %v2189 = vadd.f32 0.0, %v2188
    %v2190 = vpop.f32.mrf.mxu0
    %v2191 = vpop.f32.mrf.mxu0
    %v2192 = vadd.f32 0.0, %v2191
    %v2193 = vpop.f32.mrf.mxu0
    %2194 = vmatprep.mubr.bf16.mxu0 %v1988
    %2195 = vmatmul.mubr.bf16.gmra.mxu0 %v1987
    %v2196 = vpop.f32.mrf.mxu0
    %v2197 = vadd.f32 0.0, %v2196
    %v2198 = vpop.f32.mrf.mxu0
    %v2199 = vpop.f32.mrf.mxu0
    %v2200 = vadd.f32 0.0, %v2199
    %v2201 = vpop.f32.mrf.mxu0
    %2202 = vmatprep.mubr.bf16.mxu0 %v1990
    %2203 = vmatmul.mubr.bf16.gmra.mxu0 %v1989
    %v2204 = vpop.f32.mrf.mxu0
    %v2205 = vadd.f32 0.0, %v2204
    %v2206 = vpop.f32.mrf.mxu0
    %v2207 = vpop.f32.mrf.mxu0
    %v2208 = vadd.f32 0.0, %v2207
    %v2209 = vpop.f32.mrf.mxu0
    %2210 = vmatprep.mubr.bf16.mxu0 %v1992
    %2211 = vmatmul.mubr.bf16.gmra.mxu0 %v1991
    %v2212 = vpop.f32.mrf.mxu0
    %v2213 = vadd.f32 0.0, %v2212
    %v2214 = vpop.f32.mrf.mxu0
    %v2215 = vpop.f32.mrf.mxu0
    %v2216 = vadd.f32 0.0, %v2215
    %v2217 = vpop.f32.mrf.mxu0
    %2218 = vdwg.mxu0
    %v2219 = vadd.f32 %v1720, %v2157
    %v2220 = vadd.f32 %v1721, %v2160
    %v2221 = vadd.f32 %v1722, %v2165
    %v2222 = vadd.f32 %v1723, %v2168
    %v2223 = vadd.f32 %v1724, %v2173
    %v2224 = vadd.f32 %v1725, %v2176
    %v2225 = vadd.f32 %v1726, %v2181
    %v2226 = vadd.f32 %v1727, %v2184
    %v2227 = vadd.f32 %v1728, %v2189
    %v2228 = vadd.f32 %v1729, %v2192
    %v2229 = vadd.f32 %v1730, %v2197
    %v2230 = vadd.f32 %v1731, %v2200
    %v2231 = vadd.f32 %v1732, %v2205
    %v2232 = vadd.f32 %v1733, %v2208
    %v2233 = vadd.f32 %v1734, %v2213
    %v2234 = vadd.f32 %v1735, %v2216
    %v2235 = vld [vmem:[%s0 + $0x20] sm:$0xff]
    %v2236 = vld [vmem:[%s0 + $0x50] sm:$0xff]
    %v2237 = vld [vmem:[%s0 + $0x80] sm:$0xff]
    %v2238 = vld [vmem:[%s0 + $0xb0] sm:$0xff]
    %v2239 = vld [vmem:[%s0 + $0xe0] sm:$0xff]
    %v2240 = vld [vmem:[%s0 + $0x110] sm:$0xff]
    %v2241 = vld [vmem:[%s0 + $0x140] sm:$0xff]
    %v2242 = vld [vmem:[%s0 + $0x170] sm:$0xff]
    %v2243 = vld [vmem:[%s0 + $0x1a0] sm:$0xff]
    %v2244 = vld [vmem:[%s0 + $0x1d0] sm:$0xff]
    %v2245 = vld [vmem:[%s0 + $0x200] sm:$0xff]
    %v2246 = vld [vmem:[%s0 + $0x230] sm:$0xff]
    %v2247 = vld [vmem:[%s0 + $0x260] sm:$0xff]
    %v2248 = vld [vmem:[%s0 + $0x290] sm:$0xff]
    %v2249 = vld [vmem:[%s0 + $0x2c0] sm:$0xff]
    %v2250 = vld [vmem:[%s0 + $0x2f0] sm:$0xff]
    %v2267 = vunpack.c.l.b16 %v2235
    %v2268 = vunpack.c.h.b16 %v2235
    %v2269 = vunpack.c.l.b16 %v2236
    %v2270 = vunpack.c.h.b16 %v2236
    %v2271 = vunpack.c.l.b16 %v2237
    %v2272 = vunpack.c.h.b16 %v2237
    %v2273 = vunpack.c.l.b16 %v2238
    %v2274 = vunpack.c.h.b16 %v2238
    %v2275 = vunpack.c.l.b16 %v2239
    %v2276 = vunpack.c.h.b16 %v2239
    %v2277 = vunpack.c.l.b16 %v2240
    %v2278 = vunpack.c.h.b16 %v2240
    %v2279 = vunpack.c.l.b16 %v2241
    %v2280 = vunpack.c.h.b16 %v2241
    %v2281 = vunpack.c.l.b16 %v2242
    %v2282 = vunpack.c.h.b16 %v2242
    %v2283 = vunpack.c.l.b16 %v2243
    %v2284 = vunpack.c.h.b16 %v2243
    %v2285 = vunpack.c.l.b16 %v2244
    %v2286 = vunpack.c.h.b16 %v2244
    %v2287 = vunpack.c.l.b16 %v2245
    %v2288 = vunpack.c.h.b16 %v2245
    %v2289 = vunpack.c.l.b16 %v2246
    %v2290 = vunpack.c.h.b16 %v2246
    %v2291 = vunpack.c.l.b16 %v2247
    %v2292 = vunpack.c.h.b16 %v2247
    %v2293 = vunpack.c.l.b16 %v2248
    %v2294 = vunpack.c.h.b16 %v2248
    %v2295 = vunpack.c.l.b16 %v2249
    %v2296 = vunpack.c.h.b16 %v2249
    %v2297 = vunpack.c.l.b16 %v2250
    %v2298 = vunpack.c.h.b16 %v2250
    %v2299 = vpack.c.b16 %v2269, %v2267
    %v2300 = vpack.c.b16 %v2270, %v2268
    %v2301 = vpack.c.b16 %v2273, %v2271
    %v2302 = vpack.c.b16 %v2274, %v2272
    %v2303 = vpack.c.b16 %v2277, %v2275
    %v2304 = vpack.c.b16 %v2278, %v2276
    %v2305 = vpack.c.b16 %v2281, %v2279
    %v2306 = vpack.c.b16 %v2282, %v2280
    %v2307 = vpack.c.b16 %v2285, %v2283
    %v2308 = vpack.c.b16 %v2286, %v2284
    %v2309 = vpack.c.b16 %v2289, %v2287
    %v2310 = vpack.c.b16 %v2290, %v2288
    %v2311 = vpack.c.b16 %v2293, %v2291
    %v2312 = vpack.c.b16 %v2294, %v2292
    %v2313 = vpack.c.b16 %v2297, %v2295
    %v2314 = vpack.c.b16 %v2298, %v2296
    %2331 = vmatprep.subr.bf16.mxu0 %v287
    %2332 = vmatpush1.bf16.msra.mxu0 %v286
    %2333 = vmatprep.subr.bf16.mxu0 %v285
    %2334 = vmatpush1.bf16.msra.mxu0 %v284
    %2335 = vmatprep.subr.bf16.mxu0 %v283
    %2336 = vmatpush1.bf16.msra.mxu0 %v282
    %2337 = vmatprep.subr.bf16.mxu0 %v281
    %2338 = vmatpush1.bf16.msra.mxu0 %v280
    %2339 = vmatprep.subr.bf16.mxu0 %v279
    %2340 = vmatpush1.bf16.msra.mxu0 %v278
    %2341 = vmatprep.subr.bf16.mxu0 %v277
    %2342 = vmatpush1.bf16.msra.mxu0 %v276
    %2343 = vmatprep.subr.bf16.mxu0 %v275
    %2344 = vmatpush1.bf16.msra.mxu0 %v274
    %2345 = vmatprep.subr.bf16.mxu0 %v273
    %2346 = vmatpush1.bf16.msra.mxu0 %v272
    %2347 = vmatprep.subr.bf16.mxu0 %v303
    %2348 = vmatpush2.bf16.msra.mxu0 %v302
    %2349 = vmatprep.subr.bf16.mxu0 %v301
    %2350 = vmatpush2.bf16.msra.mxu0 %v300
    %2351 = vmatprep.subr.bf16.mxu0 %v299
    %2352 = vmatpush2.bf16.msra.mxu0 %v298
    %2353 = vmatprep.subr.bf16.mxu0 %v297
    %2354 = vmatpush2.bf16.msra.mxu0 %v296
    %2355 = vmatprep.subr.bf16.mxu0 %v295
    %2356 = vmatpush2.bf16.msra.mxu0 %v294
    %2357 = vmatprep.subr.bf16.mxu0 %v293
    %2358 = vmatpush2.bf16.msra.mxu0 %v292
    %2359 = vmatprep.subr.bf16.mxu0 %v291
    %2360 = vmatpush2.bf16.msra.mxu0 %v290
    %2361 = vmatprep.subr.bf16.mxu0 %v289
    %2362 = vmatpush2.bf16.msra.mxu0 %v288
    %2363 = vmatprep.mubr.bf16.mxu0 %v2300
    %2364 = vmatmul.mubr.bf16.gmra.mxu0 %v2299
    %v2365 = vpop.f32.mrf.mxu0
    %v2366 = vadd.f32 0.0, %v2365
    %v2367 = vpop.f32.mrf.mxu0
    %v2368 = vadd.f32 0.0, %v2367
    %v2369 = vpop.f32.mrf.mxu0
    %v2370 = vadd.f32 0.0, %v2369
    %v2371 = vpop.f32.mrf.mxu0
    %v2372 = vadd.f32 0.0, %v2371
    %2373 = vmatprep.mubr.bf16.mxu0 %v2302
    %2374 = vmatmul.mubr.bf16.gmra.mxu0 %v2301
    %v2375 = vpop.f32.mrf.mxu0
    %v2376 = vadd.f32 0.0, %v2375
    %v2377 = vpop.f32.mrf.mxu0
    %v2378 = vadd.f32 0.0, %v2377
    %v2379 = vpop.f32.mrf.mxu0
    %v2380 = vadd.f32 0.0, %v2379
    %v2381 = vpop.f32.mrf.mxu0
    %v2382 = vadd.f32 0.0, %v2381
    %2383 = vmatprep.mubr.bf16.mxu0 %v2304
    %2384 = vmatmul.mubr.bf16.gmra.mxu0 %v2303
    %v2385 = vpop.f32.mrf.mxu0
    %v2386 = vadd.f32 0.0, %v2385
    %v2387 = vpop.f32.mrf.mxu0
    %v2388 = vadd.f32 0.0, %v2387
    %v2389 = vpop.f32.mrf.mxu0
    %v2390 = vadd.f32 0.0, %v2389
    %v2391 = vpop.f32.mrf.mxu0
    %v2392 = vadd.f32 0.0, %v2391
    %2393 = vmatprep.mubr.bf16.mxu0 %v2306
    %2394 = vmatmul.mubr.bf16.gmra.mxu0 %v2305
    %v2395 = vpop.f32.mrf.mxu0
    %v2396 = vadd.f32 0.0, %v2395
    %v2397 = vpop.f32.mrf.mxu0
    %v2398 = vadd.f32 0.0, %v2397
    %v2399 = vpop.f32.mrf.mxu0
    %v2400 = vadd.f32 0.0, %v2399
    %v2401 = vpop.f32.mrf.mxu0
    %v2402 = vadd.f32 0.0, %v2401
    %2403 = vmatprep.mubr.bf16.mxu0 %v2308
    %2404 = vmatmul.mubr.bf16.gmra.mxu0 %v2307
    %v2405 = vpop.f32.mrf.mxu0
    %v2406 = vadd.f32 0.0, %v2405
    %v2407 = vpop.f32.mrf.mxu0
    %v2408 = vadd.f32 0.0, %v2407
    %v2409 = vpop.f32.mrf.mxu0
    %v2410 = vadd.f32 0.0, %v2409
    %v2411 = vpop.f32.mrf.mxu0
    %v2412 = vadd.f32 0.0, %v2411
    %2413 = vmatprep.mubr.bf16.mxu0 %v2310
    %2414 = vmatmul.mubr.bf16.gmra.mxu0 %v2309
    %v2415 = vpop.f32.mrf.mxu0
    %v2416 = vadd.f32 0.0, %v2415
    %v2417 = vpop.f32.mrf.mxu0
    %v2418 = vadd.f32 0.0, %v2417
    %v2419 = vpop.f32.mrf.mxu0
    %v2420 = vadd.f32 0.0, %v2419
    %v2421 = vpop.f32.mrf.mxu0
    %v2422 = vadd.f32 0.0, %v2421
    %2423 = vmatprep.mubr.bf16.mxu0 %v2312
    %2424 = vmatmul.mubr.bf16.gmra.mxu0 %v2311
    %v2425 = vpop.f32.mrf.mxu0
    %v2426 = vadd.f32 0.0, %v2425
    %v2427 = vpop.f32.mrf.mxu0
    %v2428 = vadd.f32 0.0, %v2427
    %v2429 = vpop.f32.mrf.mxu0
    %v2430 = vadd.f32 0.0, %v2429
    %v2431 = vpop.f32.mrf.mxu0
    %v2432 = vadd.f32 0.0, %v2431
    %2433 = vmatprep.mubr.bf16.mxu0 %v2314
    %2434 = vmatmul.mubr.bf16.gmra.mxu0 %v2313
    %v2435 = vpop.f32.mrf.mxu0
    %v2436 = vadd.f32 0.0, %v2435
    %v2437 = vpop.f32.mrf.mxu0
    %v2438 = vadd.f32 0.0, %v2437
    %v2439 = vpop.f32.mrf.mxu0
    %v2440 = vadd.f32 0.0, %v2439
    %v2441 = vpop.f32.mrf.mxu0
    %v2442 = vadd.f32 0.0, %v2441
    %2443 = vdwg.mxu0
    %v2444 = vmax.f32 %v2366, 0.0
    %v2445 = vmax.f32 %v2368, 0.0
    %v2446 = vmax.f32 %v2370, 0.0
    %v2447 = vmax.f32 %v2372, 0.0
    %v2448 = vmax.f32 %v2376, 0.0
    %v2449 = vmax.f32 %v2378, 0.0
    %v2450 = vmax.f32 %v2380, 0.0
    %v2451 = vmax.f32 %v2382, 0.0
    %v2452 = vmax.f32 %v2386, 0.0
    %v2453 = vmax.f32 %v2388, 0.0
    %v2454 = vmax.f32 %v2390, 0.0
    %v2455 = vmax.f32 %v2392, 0.0
    %v2456 = vmax.f32 %v2396, 0.0
    %v2457 = vmax.f32 %v2398, 0.0
    %v2458 = vmax.f32 %v2400, 0.0
    %v2459 = vmax.f32 %v2402, 0.0
    %v2460 = vmax.f32 %v2406, 0.0
    %v2461 = vmax.f32 %v2408, 0.0
    %v2462 = vmax.f32 %v2410, 0.0
    %v2463 = vmax.f32 %v2412, 0.0
    %v2464 = vmax.f32 %v2416, 0.0
    %v2465 = vmax.f32 %v2418, 0.0
    %v2466 = vmax.f32 %v2420, 0.0
    %v2467 = vmax.f32 %v2422, 0.0
    %v2468 = vmax.f32 %v2426, 0.0
    %v2469 = vmax.f32 %v2428, 0.0
    %v2470 = vmax.f32 %v2430, 0.0
    %v2471 = vmax.f32 %v2432, 0.0
    %v2472 = vmax.f32 %v2436, 0.0
    %v2473 = vmax.f32 %v2438, 0.0
    %v2474 = vmax.f32 %v2440, 0.0
    %v2475 = vmax.f32 %v2442, 0.0
    %v2476 = vpack.c.bf16 %v2446, %v2444
    %v2477 = vpack.c.bf16 %v2447, %v2445
    %v2478 = vpack.c.bf16 %v2450, %v2448
    %v2479 = vpack.c.bf16 %v2451, %v2449
    %v2480 = vpack.c.bf16 %v2454, %v2452
    %v2481 = vpack.c.bf16 %v2455, %v2453
    %v2482 = vpack.c.bf16 %v2458, %v2456
    %v2483 = vpack.c.bf16 %v2459, %v2457
    %v2484 = vpack.c.bf16 %v2462, %v2460
    %v2485 = vpack.c.bf16 %v2463, %v2461
    %v2486 = vpack.c.bf16 %v2466, %v2464
    %v2487 = vpack.c.bf16 %v2467, %v2465
    %v2488 = vpack.c.bf16 %v2470, %v2468
    %v2489 = vpack.c.bf16 %v2471, %v2469
    %v2490 = vpack.c.bf16 %v2474, %v2472
    %v2491 = vpack.c.bf16 %v2475, %v2473
    %s2492 = scalar_lea.vmem %s2, 512
    %v2493 = vld [vmem:[%s2492] sm:$0xf]
    %v2494 = vld [vmem:[%s2492 + $0x4] sm:$0xf]
    %v2495 = vld [vmem:[%s2492 + $0x8] sm:$0xf]
    %v2496 = vld [vmem:[%s2492 + $0xc] sm:$0xf]
    %v2497 = vld [vmem:[%s2492 + $0x10] sm:$0xf]
    %v2498 = vld [vmem:[%s2492 + $0x14] sm:$0xf]
    %v2499 = vld [vmem:[%s2492 + $0x18] sm:$0xf]
    %v2500 = vld [vmem:[%s2492 + $0x1c] sm:$0xf]
    %v2501 = vld [vmem:[%s2492 + $0x20] sm:$0xf]
    %v2502 = vld [vmem:[%s2492 + $0x24] sm:$0xf]
    %v2503 = vld [vmem:[%s2492 + $0x28] sm:$0xf]
    %v2504 = vld [vmem:[%s2492 + $0x2c] sm:$0xf]
    %v2505 = vld [vmem:[%s2492 + $0x30] sm:$0xf]
    %v2506 = vld [vmem:[%s2492 + $0x34] sm:$0xf]
    %v2507 = vld [vmem:[%s2492 + $0x38] sm:$0xf]
    %v2508 = vld [vmem:[%s2492 + $0x3c] sm:$0xf]
    %v2509 = vld [vmem:[%s2492 + $0x40] sm:$0xf]
    %v2510 = vld [vmem:[%s2492 + $0x44] sm:$0xf]
    %v2511 = vld [vmem:[%s2492 + $0x48] sm:$0xf]
    %v2512 = vld [vmem:[%s2492 + $0x4c] sm:$0xf]
    %v2513 = vld [vmem:[%s2492 + $0x50] sm:$0xf]
    %v2514 = vld [vmem:[%s2492 + $0x54] sm:$0xf]
    %v2515 = vld [vmem:[%s2492 + $0x58] sm:$0xf]
    %v2516 = vld [vmem:[%s2492 + $0x5c] sm:$0xf]
    %v2517 = vld [vmem:[%s2492 + $0x60] sm:$0xf]
    %v2518 = vld [vmem:[%s2492 + $0x64] sm:$0xf]
    %v2519 = vld [vmem:[%s2492 + $0x68] sm:$0xf]
    %v2520 = vld [vmem:[%s2492 + $0x6c] sm:$0xf]
    %v2521 = vld [vmem:[%s2492 + $0x70] sm:$0xf]
    %v2522 = vld [vmem:[%s2492 + $0x74] sm:$0xf]
    %v2523 = vld [vmem:[%s2492 + $0x78] sm:$0xf]
    %v2524 = vld [vmem:[%s2492 + $0x7c] sm:$0xf]
    %v2557 = vunpack.c.l.b16 %v2493
    %v2558 = vunpack.c.l.b16 %v2494
    %v2559 = vunpack.c.l.b16 %v2495
    %v2560 = vunpack.c.l.b16 %v2496
    %v2561 = vunpack.c.l.b16 %v2497
    %v2562 = vunpack.c.l.b16 %v2498
    %v2563 = vunpack.c.l.b16 %v2499
    %v2564 = vunpack.c.l.b16 %v2500
    %v2565 = vunpack.c.l.b16 %v2501
    %v2566 = vunpack.c.l.b16 %v2502
    %v2567 = vunpack.c.l.b16 %v2503
    %v2568 = vunpack.c.l.b16 %v2504
    %v2569 = vunpack.c.l.b16 %v2505
    %v2570 = vunpack.c.l.b16 %v2506
    %v2571 = vunpack.c.l.b16 %v2507
    %v2572 = vunpack.c.l.b16 %v2508
    %v2573 = vunpack.c.l.b16 %v2509
    %v2574 = vunpack.c.l.b16 %v2510
    %v2575 = vunpack.c.l.b16 %v2511
    %v2576 = vunpack.c.l.b16 %v2512
    %v2577 = vunpack.c.l.b16 %v2513
    %v2578 = vunpack.c.l.b16 %v2514
    %v2579 = vunpack.c.l.b16 %v2515
    %v2580 = vunpack.c.l.b16 %v2516
    %v2581 = vunpack.c.l.b16 %v2517
    %v2582 = vunpack.c.l.b16 %v2518
    %v2583 = vunpack.c.l.b16 %v2519
    %v2584 = vunpack.c.l.b16 %v2520
    %v2585 = vunpack.c.l.b16 %v2521
    %v2586 = vunpack.c.l.b16 %v2522
    %v2587 = vunpack.c.l.b16 %v2523
    %v2588 = vunpack.c.l.b16 %v2524
    %v2589 = vpack.c.b16 %v2558, %v2557
    %v2590 = vpack.c.b16 %v2560, %v2559
    %v2591 = vpack.c.b16 %v2562, %v2561
    %v2592 = vpack.c.b16 %v2564, %v2563
    %v2593 = vpack.c.b16 %v2566, %v2565
    %v2594 = vpack.c.b16 %v2568, %v2567
    %v2595 = vpack.c.b16 %v2570, %v2569
    %v2596 = vpack.c.b16 %v2572, %v2571
    %v2597 = vpack.c.b16 %v2574, %v2573
    %v2598 = vpack.c.b16 %v2576, %v2575
    %v2599 = vpack.c.b16 %v2578, %v2577
    %v2600 = vpack.c.b16 %v2580, %v2579
    %v2601 = vpack.c.b16 %v2582, %v2581
    %v2602 = vpack.c.b16 %v2584, %v2583
    %v2603 = vpack.c.b16 %v2586, %v2585
    %v2604 = vpack.c.b16 %v2588, %v2587
    %2621 = vmatprep.subr.bf16.mxu0 0
    %2622 = vmatpush1.bf16.msra.mxu0 %v2596
    %2623 = vmatprep.subr.bf16.mxu0 0
    %2624 = vmatpush1.bf16.msra.mxu0 %v2595
    %2625 = vmatprep.subr.bf16.mxu0 0
    %2626 = vmatpush1.bf16.msra.mxu0 %v2594
    %2627 = vmatprep.subr.bf16.mxu0 0
    %2628 = vmatpush1.bf16.msra.mxu0 %v2593
    %2629 = vmatprep.subr.bf16.mxu0 0
    %2630 = vmatpush1.bf16.msra.mxu0 %v2592
    %2631 = vmatprep.subr.bf16.mxu0 0
    %2632 = vmatpush1.bf16.msra.mxu0 %v2591
    %2633 = vmatprep.subr.bf16.mxu0 0
    %2634 = vmatpush1.bf16.msra.mxu0 %v2590
    %2635 = vmatprep.subr.bf16.mxu0 0
    %2636 = vmatpush1.bf16.msra.mxu0 %v2589
    %2637 = vmatprep.subr.bf16.mxu0 0
    %2638 = vmatpush2.bf16.msra.mxu0 %v2604
    %2639 = vmatprep.subr.bf16.mxu0 0
    %2640 = vmatpush2.bf16.msra.mxu0 %v2603
    %2641 = vmatprep.subr.bf16.mxu0 0
    %2642 = vmatpush2.bf16.msra.mxu0 %v2602
    %2643 = vmatprep.subr.bf16.mxu0 0
    %2644 = vmatpush2.bf16.msra.mxu0 %v2601
    %2645 = vmatprep.subr.bf16.mxu0 0
    %2646 = vmatpush2.bf16.msra.mxu0 %v2600
    %2647 = vmatprep.subr.bf16.mxu0 0
    %2648 = vmatpush2.bf16.msra.mxu0 %v2599
    %2649 = vmatprep.subr.bf16.mxu0 0
    %2650 = vmatpush2.bf16.msra.mxu0 %v2598
    %2651 = vmatprep.subr.bf16.mxu0 0
    %2652 = vmatpush2.bf16.msra.mxu0 %v2597
    %2653 = vmatprep.mubr.bf16.mxu0 %v2477
    %2654 = vmatmul.mubr.bf16.gmra.mxu0 %v2476
    %v2655 = vpop.f32.mrf.mxu0
    %v2656 = vadd.f32 0.0, %v2655
    %v2657 = vpop.f32.mrf.mxu0
    %v2658 = vpop.f32.mrf.mxu0
    %v2659 = vadd.f32 0.0, %v2658
    %v2660 = vpop.f32.mrf.mxu0
    %2661 = vmatprep.mubr.bf16.mxu0 %v2479
    %2662 = vmatmul.mubr.bf16.gmra.mxu0 %v2478
    %v2663 = vpop.f32.mrf.mxu0
    %v2664 = vadd.f32 0.0, %v2663
    %v2665 = vpop.f32.mrf.mxu0
    %v2666 = vpop.f32.mrf.mxu0
    %v2667 = vadd.f32 0.0, %v2666
    %v2668 = vpop.f32.mrf.mxu0
    %2669 = vmatprep.mubr.bf16.mxu0 %v2481
    %2670 = vmatmul.mubr.bf16.gmra.mxu0 %v2480
    %v2671 = vpop.f32.mrf.mxu0
    %v2672 = vadd.f32 0.0, %v2671
    %v2673 = vpop.f32.mrf.mxu0
    %v2674 = vpop.f32.mrf.mxu0
    %v2675 = vadd.f32 0.0, %v2674
    %v2676 = vpop.f32.mrf.mxu0
    %2677 = vmatprep.mubr.bf16.mxu0 %v2483
    %2678 = vmatmul.mubr.bf16.gmra.mxu0 %v2482
    %v2679 = vpop.f32.mrf.mxu0
    %v2680 = vadd.f32 0.0, %v2679
    %v2681 = vpop.f32.mrf.mxu0
    %v2682 = vpop.f32.mrf.mxu0
    %v2683 = vadd.f32 0.0, %v2682
    %v2684 = vpop.f32.mrf.mxu0
    %2685 = vmatprep.mubr.bf16.mxu0 %v2485
    %2686 = vmatmul.mubr.bf16.gmra.mxu0 %v2484
    %v2687 = vpop.f32.mrf.mxu0
    %v2688 = vadd.f32 0.0, %v2687
    %v2689 = vpop.f32.mrf.mxu0
    %v2690 = vpop.f32.mrf.mxu0
    %v2691 = vadd.f32 0.0, %v2690
    %v2692 = vpop.f32.mrf.mxu0
    %2693 = vmatprep.mubr.bf16.mxu0 %v2487
    %2694 = vmatmul.mubr.bf16.gmra.mxu0 %v2486
    %v2695 = vpop.f32.mrf.mxu0
    %v2696 = vadd.f32 0.0, %v2695
    %v2697 = vpop.f32.mrf.mxu0
    %v2698 = vpop.f32.mrf.mxu0
    %v2699 = vadd.f32 0.0, %v2698
    %v2700 = vpop.f32.mrf.mxu0
    %2701 = vmatprep.mubr.bf16.mxu0 %v2489
    %2702 = vmatmul.mubr.bf16.gmra.mxu0 %v2488
    %v2703 = vpop.f32.mrf.mxu0
    %v2704 = vadd.f32 0.0, %v2703
    %v2705 = vpop.f32.mrf.mxu0
    %v2706 = vpop.f32.mrf.mxu0
    %v2707 = vadd.f32 0.0, %v2706
    %v2708 = vpop.f32.mrf.mxu0
    %2709 = vmatprep.mubr.bf16.mxu0 %v2491
    %2710 = vmatmul.mubr.bf16.gmra.mxu0 %v2490
    %v2711 = vpop.f32.mrf.mxu0
    %v2712 = vadd.f32 0.0, %v2711
    %v2713 = vpop.f32.mrf.mxu0
    %v2714 = vpop.f32.mrf.mxu0
    %v2715 = vadd.f32 0.0, %v2714
    %v2716 = vpop.f32.mrf.mxu0
    %2717 = vdwg.mxu0
    %v2718 = vadd.f32 %v2219, %v2656
    %v2719 = vadd.f32 %v2220, %v2659
    %v2720 = vadd.f32 %v2221, %v2664
    %v2721 = vadd.f32 %v2222, %v2667
    %v2722 = vadd.f32 %v2223, %v2672
    %v2723 = vadd.f32 %v2224, %v2675
    %v2724 = vadd.f32 %v2225, %v2680
    %v2725 = vadd.f32 %v2226, %v2683
    %v2726 = vadd.f32 %v2227, %v2688
    %v2727 = vadd.f32 %v2228, %v2691
    %v2728 = vadd.f32 %v2229, %v2696
    %v2729 = vadd.f32 %v2230, %v2699
    %v2730 = vadd.f32 %v2231, %v2704
    %v2731 = vadd.f32 %v2232, %v2707
    %v2732 = vadd.f32 %v2233, %v2712
    %v2733 = vadd.f32 %v2234, %v2715
    %v2734 = vld [vmem:[%s0 + $0x28] sm:$0xff]
    %v2735 = vld [vmem:[%s0 + $0x58] sm:$0xff]
    %v2736 = vld [vmem:[%s0 + $0x88] sm:$0xff]
    %v2737 = vld [vmem:[%s0 + $0xb8] sm:$0xff]
    %v2738 = vld [vmem:[%s0 + $0xe8] sm:$0xff]
    %v2739 = vld [vmem:[%s0 + $0x118] sm:$0xff]
    %v2740 = vld [vmem:[%s0 + $0x148] sm:$0xff]
    %v2741 = vld [vmem:[%s0 + $0x178] sm:$0xff]
    %v2742 = vld [vmem:[%s0 + $0x1a8] sm:$0xff]
    %v2743 = vld [vmem:[%s0 + $0x1d8] sm:$0xff]
    %v2744 = vld [vmem:[%s0 + $0x208] sm:$0xff]
    %v2745 = vld [vmem:[%s0 + $0x238] sm:$0xff]
    %v2746 = vld [vmem:[%s0 + $0x268] sm:$0xff]
    %v2747 = vld [vmem:[%s0 + $0x298] sm:$0xff]
    %v2748 = vld [vmem:[%s0 + $0x2c8] sm:$0xff]
    %v2749 = vld [vmem:[%s0 + $0x2f8] sm:$0xff]
    %v2766 = vunpack.c.l.b16 %v2734
    %v2767 = vunpack.c.h.b16 %v2734
    %v2768 = vunpack.c.l.b16 %v2735
    %v2769 = vunpack.c.h.b16 %v2735
    %v2770 = vunpack.c.l.b16 %v2736
    %v2771 = vunpack.c.h.b16 %v2736
    %v2772 = vunpack.c.l.b16 %v2737
    %v2773 = vunpack.c.h.b16 %v2737
    %v2774 = vunpack.c.l.b16 %v2738
    %v2775 = vunpack.c.h.b16 %v2738
    %v2776 = vunpack.c.l.b16 %v2739
    %v2777 = vunpack.c.h.b16 %v2739
    %v2778 = vunpack.c.l.b16 %v2740
    %v2779 = vunpack.c.h.b16 %v2740
    %v2780 = vunpack.c.l.b16 %v2741
    %v2781 = vunpack.c.h.b16 %v2741
    %v2782 = vunpack.c.l.b16 %v2742
    %v2783 = vunpack.c.h.b16 %v2742
    %v2784 = vunpack.c.l.b16 %v2743
    %v2785 = vunpack.c.h.b16 %v2743
    %v2786 = vunpack.c.l.b16 %v2744
    %v2787 = vunpack.c.h.b16 %v2744
    %v2788 = vunpack.c.l.b16 %v2745
    %v2789 = vunpack.c.h.b16 %v2745
    %v2790 = vunpack.c.l.b16 %v2746
    %v2791 = vunpack.c.h.b16 %v2746
    %v2792 = vunpack.c.l.b16 %v2747
    %v2793 = vunpack.c.h.b16 %v2747
    %v2794 = vunpack.c.l.b16 %v2748
    %v2795 = vunpack.c.h.b16 %v2748
    %v2796 = vunpack.c.l.b16 %v2749
    %v2797 = vunpack.c.h.b16 %v2749
    %v2798 = vpack.c.b16 %v2768, %v2766
    %v2799 = vpack.c.b16 %v2769, %v2767
    %v2800 = vpack.c.b16 %v2772, %v2770
    %v2801 = vpack.c.b16 %v2773, %v2771
    %v2802 = vpack.c.b16 %v2776, %v2774
    %v2803 = vpack.c.b16 %v2777, %v2775
    %v2804 = vpack.c.b16 %v2780, %v2778
    %v2805 = vpack.c.b16 %v2781, %v2779
    %v2806 = vpack.c.b16 %v2784, %v2782
    %v2807 = vpack.c.b16 %v2785, %v2783
    %v2808 = vpack.c.b16 %v2788, %v2786
    %v2809 = vpack.c.b16 %v2789, %v2787
    %v2810 = vpack.c.b16 %v2792, %v2790
    %v2811 = vpack.c.b16 %v2793, %v2791
    %v2812 = vpack.c.b16 %v2796, %v2794
    %v2813 = vpack.c.b16 %v2797, %v2795
    %2830 = vmatprep.subr.bf16.mxu0 %v287
    %2831 = vmatpush1.bf16.msra.mxu0 %v286
    %2832 = vmatprep.subr.bf16.mxu0 %v285
    %2833 = vmatpush1.bf16.msra.mxu0 %v284
    %2834 = vmatprep.subr.bf16.mxu0 %v283
    %2835 = vmatpush1.bf16.msra.mxu0 %v282
    %2836 = vmatprep.subr.bf16.mxu0 %v281
    %2837 = vmatpush1.bf16.msra.mxu0 %v280
    %2838 = vmatprep.subr.bf16.mxu0 %v279
    %2839 = vmatpush1.bf16.msra.mxu0 %v278
    %2840 = vmatprep.subr.bf16.mxu0 %v277
    %2841 = vmatpush1.bf16.msra.mxu0 %v276
    %2842 = vmatprep.subr.bf16.mxu0 %v275
    %2843 = vmatpush1.bf16.msra.mxu0 %v274
    %2844 = vmatprep.subr.bf16.mxu0 %v273
    %2845 = vmatpush1.bf16.msra.mxu0 %v272
    %2846 = vmatprep.subr.bf16.mxu0 %v303
    %2847 = vmatpush2.bf16.msra.mxu0 %v302
    %2848 = vmatprep.subr.bf16.mxu0 %v301
    %2849 = vmatpush2.bf16.msra.mxu0 %v300
    %2850 = vmatprep.subr.bf16.mxu0 %v299
    %2851 = vmatpush2.bf16.msra.mxu0 %v298
    %2852 = vmatprep.subr.bf16.mxu0 %v297
    %2853 = vmatpush2.bf16.msra.mxu0 %v296
    %2854 = vmatprep.subr.bf16.mxu0 %v295
    %2855 = vmatpush2.bf16.msra.mxu0 %v294
    %2856 = vmatprep.subr.bf16.mxu0 %v293
    %2857 = vmatpush2.bf16.msra.mxu0 %v292
    %2858 = vmatprep.subr.bf16.mxu0 %v291
    %2859 = vmatpush2.bf16.msra.mxu0 %v290
    %2860 = vmatprep.subr.bf16.mxu0 %v289
    %2861 = vmatpush2.bf16.msra.mxu0 %v288
    %2862 = vmatprep.mubr.bf16.mxu0 %v2799
    %2863 = vmatmul.mubr.bf16.gmra.mxu0 %v2798
    %v2864 = vpop.f32.mrf.mxu0
    %v2865 = vadd.f32 0.0, %v2864
    %v2866 = vpop.f32.mrf.mxu0
    %v2867 = vadd.f32 0.0, %v2866
    %v2868 = vpop.f32.mrf.mxu0
    %v2869 = vadd.f32 0.0, %v2868
    %v2870 = vpop.f32.mrf.mxu0
    %v2871 = vadd.f32 0.0, %v2870
    %2872 = vmatprep.mubr.bf16.mxu0 %v2801
    %2873 = vmatmul.mubr.bf16.gmra.mxu0 %v2800
    %v2874 = vpop.f32.mrf.mxu0
    %v2875 = vadd.f32 0.0, %v2874
    %v2876 = vpop.f32.mrf.mxu0
    %v2877 = vadd.f32 0.0, %v2876
    %v2878 = vpop.f32.mrf.mxu0
    %v2879 = vadd.f32 0.0, %v2878
    %v2880 = vpop.f32.mrf.mxu0
    %v2881 = vadd.f32 0.0, %v2880
    %2882 = vmatprep.mubr.bf16.mxu0 %v2803
    %2883 = vmatmul.mubr.bf16.gmra.mxu0 %v2802
    %v2884 = vpop.f32.mrf.mxu0
    %v2885 = vadd.f32 0.0, %v2884
    %v2886 = vpop.f32.mrf.mxu0
    %v2887 = vadd.f32 0.0, %v2886
    %v2888 = vpop.f32.mrf.mxu0
    %v2889 = vadd.f32 0.0, %v2888
    %v2890 = vpop.f32.mrf.mxu0
    %v2891 = vadd.f32 0.0, %v2890
    %2892 = vmatprep.mubr.bf16.mxu0 %v2805
    %2893 = vmatmul.mubr.bf16.gmra.mxu0 %v2804
    %v2894 = vpop.f32.mrf.mxu0
    %v2895 = vadd.f32 0.0, %v2894
    %v2896 = vpop.f32.mrf.mxu0
    %v2897 = vadd.f32 0.0, %v2896
    %v2898 = vpop.f32.mrf.mxu0
    %v2899 = vadd.f32 0.0, %v2898
    %v2900 = vpop.f32.mrf.mxu0
    %v2901 = vadd.f32 0.0, %v2900
    %2902 = vmatprep.mubr.bf16.mxu0 %v2807
    %2903 = vmatmul.mubr.bf16.gmra.mxu0 %v2806
    %v2904 = vpop.f32.mrf.mxu0
    %v2905 = vadd.f32 0.0, %v2904
    %v2906 = vpop.f32.mrf.mxu0
    %v2907 = vadd.f32 0.0, %v2906
    %v2908 = vpop.f32.mrf.mxu0
    %v2909 = vadd.f32 0.0, %v2908
    %v2910 = vpop.f32.mrf.mxu0
    %v2911 = vadd.f32 0.0, %v2910
    %2912 = vmatprep.mubr.bf16.mxu0 %v2809
    %2913 = vmatmul.mubr.bf16.gmra.mxu0 %v2808
    %v2914 = vpop.f32.mrf.mxu0
    %v2915 = vadd.f32 0.0, %v2914
    %v2916 = vpop.f32.mrf.mxu0
    %v2917 = vadd.f32 0.0, %v2916
    %v2918 = vpop.f32.mrf.mxu0
    %v2919 = vadd.f32 0.0, %v2918
    %v2920 = vpop.f32.mrf.mxu0
    %v2921 = vadd.f32 0.0, %v2920
    %2922 = vmatprep.mubr.bf16.mxu0 %v2811
    %2923 = vmatmul.mubr.bf16.gmra.mxu0 %v2810
    %v2924 = vpop.f32.mrf.mxu0
    %v2925 = vadd.f32 0.0, %v2924
    %v2926 = vpop.f32.mrf.mxu0
    %v2927 = vadd.f32 0.0, %v2926
    %v2928 = vpop.f32.mrf.mxu0
    %v2929 = vadd.f32 0.0, %v2928
    %v2930 = vpop.f32.mrf.mxu0
    %v2931 = vadd.f32 0.0, %v2930
    %2932 = vmatprep.mubr.bf16.mxu0 %v2813
    %2933 = vmatmul.mubr.bf16.gmra.mxu0 %v2812
    %v2934 = vpop.f32.mrf.mxu0
    %v2935 = vadd.f32 0.0, %v2934
    %v2936 = vpop.f32.mrf.mxu0
    %v2937 = vadd.f32 0.0, %v2936
    %v2938 = vpop.f32.mrf.mxu0
    %v2939 = vadd.f32 0.0, %v2938
    %v2940 = vpop.f32.mrf.mxu0
    %v2941 = vadd.f32 0.0, %v2940
    %2942 = vdwg.mxu0
    %v2943 = vmax.f32 %v2865, 0.0
    %v2944 = vmax.f32 %v2867, 0.0
    %v2945 = vmax.f32 %v2869, 0.0
    %v2946 = vmax.f32 %v2871, 0.0
    %v2947 = vmax.f32 %v2875, 0.0
    %v2948 = vmax.f32 %v2877, 0.0
    %v2949 = vmax.f32 %v2879, 0.0
    %v2950 = vmax.f32 %v2881, 0.0
    %v2951 = vmax.f32 %v2885, 0.0
    %v2952 = vmax.f32 %v2887, 0.0
    %v2953 = vmax.f32 %v2889, 0.0
    %v2954 = vmax.f32 %v2891, 0.0
    %v2955 = vmax.f32 %v2895, 0.0
    %v2956 = vmax.f32 %v2897, 0.0
    %v2957 = vmax.f32 %v2899, 0.0
    %v2958 = vmax.f32 %v2901, 0.0
    %v2959 = vmax.f32 %v2905, 0.0
    %v2960 = vmax.f32 %v2907, 0.0
    %v2961 = vmax.f32 %v2909, 0.0
    %v2962 = vmax.f32 %v2911, 0.0
    %v2963 = vmax.f32 %v2915, 0.0
    %v2964 = vmax.f32 %v2917, 0.0
    %v2965 = vmax.f32 %v2919, 0.0
    %v2966 = vmax.f32 %v2921, 0.0
    %v2967 = vmax.f32 %v2925, 0.0
    %v2968 = vmax.f32 %v2927, 0.0
    %v2969 = vmax.f32 %v2929, 0.0
    %v2970 = vmax.f32 %v2931, 0.0
    %v2971 = vmax.f32 %v2935, 0.0
    %v2972 = vmax.f32 %v2937, 0.0
    %v2973 = vmax.f32 %v2939, 0.0
    %v2974 = vmax.f32 %v2941, 0.0
    %v2975 = vpack.c.bf16 %v2945, %v2943
    %v2976 = vpack.c.bf16 %v2946, %v2944
    %v2977 = vpack.c.bf16 %v2949, %v2947
    %v2978 = vpack.c.bf16 %v2950, %v2948
    %v2979 = vpack.c.bf16 %v2953, %v2951
    %v2980 = vpack.c.bf16 %v2954, %v2952
    %v2981 = vpack.c.bf16 %v2957, %v2955
    %v2982 = vpack.c.bf16 %v2958, %v2956
    %v2983 = vpack.c.bf16 %v2961, %v2959
    %v2984 = vpack.c.bf16 %v2962, %v2960
    %v2985 = vpack.c.bf16 %v2965, %v2963
    %v2986 = vpack.c.bf16 %v2966, %v2964
    %v2987 = vpack.c.bf16 %v2969, %v2967
    %v2988 = vpack.c.bf16 %v2970, %v2968
    %v2989 = vpack.c.bf16 %v2973, %v2971
    %v2990 = vpack.c.bf16 %v2974, %v2972
    %s2991 = scalar_lea.vmem %s2, 640
    %v2992 = vld [vmem:[%s2991] sm:$0xf]
    %v2993 = vld [vmem:[%s2991 + $0x4] sm:$0xf]
    %v2994 = vld [vmem:[%s2991 + $0x8] sm:$0xf]
    %v2995 = vld [vmem:[%s2991 + $0xc] sm:$0xf]
    %v2996 = vld [vmem:[%s2991 + $0x10] sm:$0xf]
    %v2997 = vld [vmem:[%s2991 + $0x14] sm:$0xf]
    %v2998 = vld [vmem:[%s2991 + $0x18] sm:$0xf]
    %v2999 = vld [vmem:[%s2991 + $0x1c] sm:$0xf]
    %v3000 = vld [vmem:[%s2991 + $0x20] sm:$0xf]
    %v3001 = vld [vmem:[%s2991 + $0x24] sm:$0xf]
    %v3002 = vld [vmem:[%s2991 + $0x28] sm:$0xf]
    %v3003 = vld [vmem:[%s2991 + $0x2c] sm:$0xf]
    %v3004 = vld [vmem:[%s2991 + $0x30] sm:$0xf]
    %v3005 = vld [vmem:[%s2991 + $0x34] sm:$0xf]
    %v3006 = vld [vmem:[%s2991 + $0x38] sm:$0xf]
    %v3007 = vld [vmem:[%s2991 + $0x3c] sm:$0xf]
    %v3008 = vld [vmem:[%s2991 + $0x40] sm:$0xf]
    %v3009 = vld [vmem:[%s2991 + $0x44] sm:$0xf]
    %v3010 = vld [vmem:[%s2991 + $0x48] sm:$0xf]
    %v3011 = vld [vmem:[%s2991 + $0x4c] sm:$0xf]
    %v3012 = vld [vmem:[%s2991 + $0x50] sm:$0xf]
    %v3013 = vld [vmem:[%s2991 + $0x54] sm:$0xf]
    %v3014 = vld [vmem:[%s2991 + $0x58] sm:$0xf]
    %v3015 = vld [vmem:[%s2991 + $0x5c] sm:$0xf]
    %v3016 = vld [vmem:[%s2991 + $0x60] sm:$0xf]
    %v3017 = vld [vmem:[%s2991 + $0x64] sm:$0xf]
    %v3018 = vld [vmem:[%s2991 + $0x68] sm:$0xf]
    %v3019 = vld [vmem:[%s2991 + $0x6c] sm:$0xf]
    %v3020 = vld [vmem:[%s2991 + $0x70] sm:$0xf]
    %v3021 = vld [vmem:[%s2991 + $0x74] sm:$0xf]
    %v3022 = vld [vmem:[%s2991 + $0x78] sm:$0xf]
    %v3023 = vld [vmem:[%s2991 + $0x7c] sm:$0xf]
    %v3056 = vunpack.c.l.b16 %v2992
    %v3057 = vunpack.c.l.b16 %v2993
    %v3058 = vunpack.c.l.b16 %v2994
    %v3059 = vunpack.c.l.b16 %v2995
    %v3060 = vunpack.c.l.b16 %v2996
    %v3061 = vunpack.c.l.b16 %v2997
    %v3062 = vunpack.c.l.b16 %v2998
    %v3063 = vunpack.c.l.b16 %v2999
    %v3064 = vunpack.c.l.b16 %v3000
    %v3065 = vunpack.c.l.b16 %v3001
    %v3066 = vunpack.c.l.b16 %v3002
    %v3067 = vunpack.c.l.b16 %v3003
    %v3068 = vunpack.c.l.b16 %v3004
    %v3069 = vunpack.c.l.b16 %v3005
    %v3070 = vunpack.c.l.b16 %v3006
    %v3071 = vunpack.c.l.b16 %v3007
    %v3072 = vunpack.c.l.b16 %v3008
    %v3073 = vunpack.c.l.b16 %v3009
    %v3074 = vunpack.c.l.b16 %v3010
    %v3075 = vunpack.c.l.b16 %v3011
    %v3076 = vunpack.c.l.b16 %v3012
    %v3077 = vunpack.c.l.b16 %v3013
    %v3078 = vunpack.c.l.b16 %v3014
    %v3079 = vunpack.c.l.b16 %v3015
    %v3080 = vunpack.c.l.b16 %v3016
    %v3081 = vunpack.c.l.b16 %v3017
    %v3082 = vunpack.c.l.b16 %v3018
    %v3083 = vunpack.c.l.b16 %v3019
    %v3084 = vunpack.c.l.b16 %v3020
    %v3085 = vunpack.c.l.b16 %v3021
    %v3086 = vunpack.c.l.b16 %v3022
    %v3087 = vunpack.c.l.b16 %v3023
    %v3088 = vpack.c.b16 %v3057, %v3056
    %v3089 = vpack.c.b16 %v3059, %v3058
    %v3090 = vpack.c.b16 %v3061, %v3060
    %v3091 = vpack.c.b16 %v3063, %v3062
    %v3092 = vpack.c.b16 %v3065, %v3064
    %v3093 = vpack.c.b16 %v3067, %v3066
    %v3094 = vpack.c.b16 %v3069, %v3068
    %v3095 = vpack.c.b16 %v3071, %v3070
    %v3096 = vpack.c.b16 %v3073, %v3072
    %v3097 = vpack.c.b16 %v3075, %v3074
    %v3098 = vpack.c.b16 %v3077, %v3076
    %v3099 = vpack.c.b16 %v3079, %v3078
    %v3100 = vpack.c.b16 %v3081, %v3080
    %v3101 = vpack.c.b16 %v3083, %v3082
    %v3102 = vpack.c.b16 %v3085, %v3084
    %v3103 = vpack.c.b16 %v3087, %v3086
    %3120 = vmatprep.subr.bf16.mxu0 0
    %3121 = vmatpush1.bf16.msra.mxu0 %v3095
    %3122 = vmatprep.subr.bf16.mxu0 0
    %3123 = vmatpush1.bf16.msra.mxu0 %v3094
    %3124 = vmatprep.subr.bf16.mxu0 0
    %3125 = vmatpush1.bf16.msra.mxu0 %v3093
    %3126 = vmatprep.subr.bf16.mxu0 0
    %3127 = vmatpush1.bf16.msra.mxu0 %v3092
    %3128 = vmatprep.subr.bf16.mxu0 0
    %3129 = vmatpush1.bf16.msra.mxu0 %v3091
    %3130 = vmatprep.subr.bf16.mxu0 0
    %3131 = vmatpush1.bf16.msra.mxu0 %v3090
    %3132 = vmatprep.subr.bf16.mxu0 0
    %3133 = vmatpush1.bf16.msra.mxu0 %v3089
    %3134 = vmatprep.subr.bf16.mxu0 0
    %3135 = vmatpush1.bf16.msra.mxu0 %v3088
    %3136 = vmatprep.subr.bf16.mxu0 0
    %3137 = vmatpush2.bf16.msra.mxu0 %v3103
    %3138 = vmatprep.subr.bf16.mxu0 0
    %3139 = vmatpush2.bf16.msra.mxu0 %v3102
    %3140 = vmatprep.subr.bf16.mxu0 0
    %3141 = vmatpush2.bf16.msra.mxu0 %v3101
    %3142 = vmatprep.subr.bf16.mxu0 0
    %3143 = vmatpush2.bf16.msra.mxu0 %v3100
    %3144 = vmatprep.subr.bf16.mxu0 0
    %3145 = vmatpush2.bf16.msra.mxu0 %v3099
    %3146 = vmatprep.subr.bf16.mxu0 0
    %3147 = vmatpush2.bf16.msra.mxu0 %v3098
    %3148 = vmatprep.subr.bf16.mxu0 0
    %3149 = vmatpush2.bf16.msra.mxu0 %v3097
    %3150 = vmatprep.subr.bf16.mxu0 0
    %3151 = vmatpush2.bf16.msra.mxu0 %v3096
    %3152 = vmatprep.mubr.bf16.mxu0 %v2976
    %3153 = vmatmul.mubr.bf16.gmra.mxu0 %v2975
    %v3154 = vpop.f32.mrf.mxu0
    %v3155 = vadd.f32 0.0, %v3154
    %v3156 = vpop.f32.mrf.mxu0
    %v3157 = vpop.f32.mrf.mxu0
    %v3158 = vadd.f32 0.0, %v3157
    %v3159 = vpop.f32.mrf.mxu0
    %3160 = vmatprep.mubr.bf16.mxu0 %v2978
    %3161 = vmatmul.mubr.bf16.gmra.mxu0 %v2977
    %v3162 = vpop.f32.mrf.mxu0
    %v3163 = vadd.f32 0.0, %v3162
    %v3164 = vpop.f32.mrf.mxu0
    %v3165 = vpop.f32.mrf.mxu0
    %v3166 = vadd.f32 0.0, %v3165
    %v3167 = vpop.f32.mrf.mxu0
    %3168 = vmatprep.mubr.bf16.mxu0 %v2980
    %3169 = vmatmul.mubr.bf16.gmra.mxu0 %v2979
    %v3170 = vpop.f32.mrf.mxu0
    %v3171 = vadd.f32 0.0, %v3170
    %v3172 = vpop.f32.mrf.mxu0
    %v3173 = vpop.f32.mrf.mxu0
    %v3174 = vadd.f32 0.0, %v3173
    %v3175 = vpop.f32.mrf.mxu0
    %3176 = vmatprep.mubr.bf16.mxu0 %v2982
    %3177 = vmatmul.mubr.bf16.gmra.mxu0 %v2981
    %v3178 = vpop.f32.mrf.mxu0
    %v3179 = vadd.f32 0.0, %v3178
    %v3180 = vpop.f32.mrf.mxu0
    %v3181 = vpop.f32.mrf.mxu0
    %v3182 = vadd.f32 0.0, %v3181
    %v3183 = vpop.f32.mrf.mxu0
    %3184 = vmatprep.mubr.bf16.mxu0 %v2984
    %3185 = vmatmul.mubr.bf16.gmra.mxu0 %v2983
    %v3186 = vpop.f32.mrf.mxu0
    %v3187 = vadd.f32 0.0, %v3186
    %v3188 = vpop.f32.mrf.mxu0
    %v3189 = vpop.f32.mrf.mxu0
    %v3190 = vadd.f32 0.0, %v3189
    %v3191 = vpop.f32.mrf.mxu0
    %3192 = vmatprep.mubr.bf16.mxu0 %v2986
    %3193 = vmatmul.mubr.bf16.gmra.mxu0 %v2985
    %v3194 = vpop.f32.mrf.mxu0
    %v3195 = vadd.f32 0.0, %v3194
    %v3196 = vpop.f32.mrf.mxu0
    %v3197 = vpop.f32.mrf.mxu0
    %v3198 = vadd.f32 0.0, %v3197
    %v3199 = vpop.f32.mrf.mxu0
    %3200 = vmatprep.mubr.bf16.mxu0 %v2988
    %3201 = vmatmul.mubr.bf16.gmra.mxu0 %v2987
    %v3202 = vpop.f32.mrf.mxu0
    %v3203 = vadd.f32 0.0, %v3202
    %v3204 = vpop.f32.mrf.mxu0
    %v3205 = vpop.f32.mrf.mxu0
    %v3206 = vadd.f32 0.0, %v3205
    %v3207 = vpop.f32.mrf.mxu0
    %3208 = vmatprep.mubr.bf16.mxu0 %v2990
    %3209 = vmatmul.mubr.bf16.gmra.mxu0 %v2989
    %v3210 = vpop.f32.mrf.mxu0
    %v3211 = vadd.f32 0.0, %v3210
    %v3212 = vpop.f32.mrf.mxu0
    %v3213 = vpop.f32.mrf.mxu0
    %v3214 = vadd.f32 0.0, %v3213
    %v3215 = vpop.f32.mrf.mxu0
    %3216 = vdwg.mxu0
    %v3217 = vadd.f32 %v2718, %v3155
    %v3218 = vadd.f32 %v2719, %v3158
    %v3219 = vadd.f32 %v2720, %v3163
    %v3220 = vadd.f32 %v2721, %v3166
    %v3221 = vadd.f32 %v2722, %v3171
    %v3222 = vadd.f32 %v2723, %v3174
    %v3223 = vadd.f32 %v2724, %v3179
    %v3224 = vadd.f32 %v2725, %v3182
    %v3225 = vadd.f32 %v2726, %v3187
    %v3226 = vadd.f32 %v2727, %v3190
    %v3227 = vadd.f32 %v2728, %v3195
    %v3228 = vadd.f32 %v2729, %v3198
    %v3229 = vadd.f32 %v2730, %v3203
    %v3230 = vadd.f32 %v2731, %v3206
    %v3231 = vadd.f32 %v2732, %v3211
    %v3232 = vadd.f32 %v2733, %v3214
    %v3233 = vmax.f32 %v3217, 0.0
    %v3234 = vmax.f32 %v3218, 0.0
    %v3235 = vmax.f32 %v3219, 0.0
    %v3236 = vmax.f32 %v3220, 0.0
    %v3237 = vmax.f32 %v3221, 0.0
    %v3238 = vmax.f32 %v3222, 0.0
    %v3239 = vmax.f32 %v3223, 0.0
    %v3240 = vmax.f32 %v3224, 0.0
    %v3241 = vmax.f32 %v3225, 0.0
    %v3242 = vmax.f32 %v3226, 0.0
    %v3243 = vmax.f32 %v3227, 0.0
    %v3244 = vmax.f32 %v3228, 0.0
    %v3245 = vmax.f32 %v3229, 0.0
    %v3246 = vmax.f32 %v3230, 0.0
    %v3247 = vmax.f32 %v3231, 0.0
    %v3248 = vmax.f32 %v3232, 0.0
    %3249 = vxpose.xlu0.b32.start [1/16] %v3233, 128
    %3250 = vxpose.xlu0.b32.cont [2/16] %v3234, 128
    %3251 = vxpose.xlu0.b32.cont [3/16] %v3235, 128
    %3252 = vxpose.xlu0.b32.cont [4/16] %v3236, 128
    %3253 = vxpose.xlu0.b32.cont [5/16] %v3237, 128
    %3254 = vxpose.xlu0.b32.cont [6/16] %v3238, 128
    %3255 = vxpose.xlu0.b32.cont [7/16] %v3239, 128
    %3256 = vxpose.xlu0.b32.cont [8/16] %v3240, 128
    %3257 = vxpose.xlu0.b32.cont [9/16] %v3241, 128
    %3258 = vxpose.xlu0.b32.cont [10/16] %v3242, 128
    %3259 = vxpose.xlu0.b32.cont [11/16] %v3243, 128
    %3260 = vxpose.xlu0.b32.cont [12/16] %v3244, 128
    %3261 = vxpose.xlu0.b32.cont [13/16] %v3245, 128
    %3262 = vxpose.xlu0.b32.cont [14/16] %v3246, 128
    %3263 = vxpose.xlu0.b32.cont [15/16] %v3247, 128
    %3264 = vxpose.xlu0.b32.end [16/16] %v3248, 128
    %v3265 = vpop.trf.xlu0
    %v3266 = vpop.trf.xlu0
    %v3267 = vpop.trf.xlu0
    %v3268 = vpop.trf.xlu0
    %v3269 = vpop.trf.xlu0
    %v3270 = vpop.trf.xlu0
    %v3271 = vpop.trf.xlu0
    %v3272 = vpop.trf.xlu0
    %v3273 = vpop.trf.xlu0
    %v3274 = vpop.trf.xlu0
    %v3275 = vpop.trf.xlu0
    %v3276 = vpop.trf.xlu0
    %v3277 = vpop.trf.xlu0
    %v3278 = vpop.trf.xlu0
    %v3279 = vpop.trf.xlu0
    %v3280 = vpop.trf.xlu0
    %v3281 = vld [vmem:[%s4] sm:$0xff]
    %v3282 = vld [vmem:[%s4 + $0x8] sm:$0xff]
    %3284 = vset.pattern.permute.xlu0 0
    %3285 = vperm.xlu0 %3284, %v3281
    %v3286 = vpop.permute.xlu0 %3285
    %3289 = vset.pattern.permute.xlu0 0
    %3290 = vperm.xlu0 %3289, %v3282
    %v3291 = vpop.permute.xlu0 %3290
    %v3293 = vmul.f32 %v3265, %v3286
    %v3294 = vmul.f32 %v3266, %v3291
    %v3295 = vadd.f32 %v3293, %v3294
    %v3296 = vrot.slane %v3295, 4
    %v3297 = vadd.f32 %v3295, %v3296
    %v3298 = vrot.slane %v3297, 2
    %v3299 = vadd.f32 %v3297, %v3298
    %v3300 = vrot.slane %v3299, 1
    %v3301 = vadd.f32 %v3299, %v3300
    %v3302 = vld [vmem:[#allocation2] sm:$0x1]
    %3304 = vset.pattern.permute.xlu0 0
    %3305 = vperm.xlu0 %3304, %v3302
    %v3306 = vpop.permute.xlu0 %3305
    %v3308 = vlaneseq
    %v3309 = vshrl.u32 %v3308, 7
    %v3310 = vsub.s32 0, %v3309
    %v3311 = vrot.slane %v3306, %v3310
    %v3312 = vadd.f32 %v3301, %v3311
    %3313 = vst [vmem:[#allocation6] sm:$0x1] %v3312
    // Predicated region
    $region30: #{tpu_custom_call.1} parent=1 // pred_check
      _
    $region31: #{tpu_custom_call.1} parent=1 // pred_check_branch
      %3315 = sbr.rel (0) target = $region33
    $region32: #{tpu_custom_call.1} parent=1 // pred_region
      %s3317 = ssub.s32 16, 16
      %3318 = vsyncadd [#allocation5], %s3317
      %s3320 = sshll.u32 [#allocation6], 4
      %s3321 = int_to_ptr.vmem [resolvable:$true] %s3320
      %3323 = dma.vmem_to_hbm [thread:$0]  %s3321, 16, %s6, [#allocation5]
    $region33: #{tpu_custom_call.1} parent=1 // pred_fallthru
      _
    // Predicated region
    $region34: #{tpu_custom_call.1} parent=1 // pred_check
      _
    $region35: #{tpu_custom_call.1} parent=1 // pred_check_branch
      %3325 = sbr.rel (0) target = $region37
    $region36: #{tpu_custom_call.1} parent=1 // pred_region
      %3326 = dma.done [#allocation5], 16
    $region37: #{tpu_custom_call.1} parent=1 // pred_fallthru
      _
    %3327 = vsyncpa [#allocation4], 1
    %3328 = vsyncpa [#allocation5], 1

</llo_original>
